<compile_context>
chip_gen: v6e
topology: v6e:2x2x1
jax: 0.10.0
libtpu: 0.0.40
codegen_flags: <defaults>
</compile_context>

<pallas_src>
import math
import jax
import jax.numpy as jnp
from jax.experimental import pallas as pl
from jax.experimental.pallas import tpu as pltpu

# ---- Configuration (mirrors the PyTorch Configuration dataclass) ----
N_DECODER_LAYERS = 4
D_MODEL = 512
N_HEADS = 8
D_FF = 512           # d_ff == d_model in the config
MAX_SEQ_LENGTH = 32
LN_EPS = 1e-5        # nn.LayerNorm default for norm1/2/3
FINAL_LN_EPS = 1e-4  # explicit eps=0.0001 on the top-level layer_norm
NEG_INF = -1e30      # additive mask for off-block attention entries


def _make_decoder_kernel(head_dim: int, n_layers: int, d_model: int, d_ff: int,
                         two_masks: bool):
    scale = 1.0 / math.sqrt(head_dim)
    D = d_model

    def kernel(*refs):
        if two_masks:
            (x0_ref, enc_ref, smask_ref, cmask_ref,
             w_ref, vecs_ref, final_ln_ref, out_ref, x_carry) = refs
        else:
            (x0_ref, enc_ref, smask_ref,
             w_ref, vecs_ref, final_ln_ref, out_ref, x_carry) = refs
            cmask_ref = smask_ref          # tgt_mask=None: self mask == block mask

        l = pl.program_id(0)

        def layernorm(y, g, b, eps):
            mu = jnp.mean(y, axis=-1, keepdims=True)
            var = jnp.mean((y - mu) ** 2, axis=-1, keepdims=True)
            return (y - mu) * jax.lax.rsqrt(var + eps) * g + b

        def softmax(s):
            m = jnp.max(s, axis=-1, keepdims=True)
            e = jnp.exp(s - m)
            return e * pl.reciprocal(jnp.sum(e, axis=-1, keepdims=True),
                                     approx=True)

        # layer 0: initialize the VMEM carry with x0 = encoder_output + PE
        @pl.when(l == 0)
        def _init():
            x_carry[...] = x0_ref[...]

        x = x_carry[...]                     # [SB, D] f32
        enc_b = enc_ref[...]                 # [SB, D] bf16 (resident, DMA'd once)

        # merged per-layer weight slab (bf16, (in, out) layout);
        # 128-lane-aligned static views — no extra DMA, no copies.
        w_self  = w_ref[0, :, 0:D]                       # [D, D]
        w_cross = w_ref[0, :, D:2 * D]                   # [D, D]
        w1      = w_ref[0, :, 2 * D:2 * D + d_ff]        # [D, D_ff]
        w2      = w_ref[0, :, 2 * D + d_ff:2 * D + d_ff + D]   # [D_ff, D]

        vecs = vecs_ref[0]                   # [8, D] f32: b1,b2,g1,be1,g2,be2,g3,be3
        b1, b2  = vecs[0:1], vecs[1:2]
        g1, be1 = vecs[2:3], vecs[3:4]
        g2, be2 = vecs[4:5], vecs[5:6]
        g3, be3 = vecs[6:7], vecs[7:8]

        def attention(qb, kvb, w_out, mask):
            # block-diagonal masked attention == exact per-position attention
            s = jnp.einsum('id,jd->ij', qb, kvb,
                           preferred_element_type=jnp.float32) * scale + mask
            p = softmax(s).astype(jnp.bfloat16)          # off-block probs == 0
            o = jnp.dot(p, kvb, preferred_element_type=jnp.float32)
            return jnp.dot(o.astype(jnp.bfloat16), w_out,
                           preferred_element_type=jnp.float32)

        # ---- one DecoderLayer (dropout == identity at inference) ----
        xb = x.astype(jnp.bfloat16)
        sa = attention(xb, xb, w_self, smask_ref[...])
        x = layernorm(x + sa, g1, be1, LN_EPS)

        xb = x.astype(jnp.bfloat16)
        ca = attention(xb, enc_b, w_cross, cmask_ref[...])
        x = layernorm(x + ca, g2, be2, LN_EPS)

        h = jnp.maximum(
            jnp.dot(x.astype(jnp.bfloat16), w1,
                    preferred_element_type=jnp.float32) + b1, 0.0)
        f = jnp.dot(h.astype(jnp.bfloat16), w2,
                    preferred_element_type=jnp.float32) + b2
        x = layernorm(x + f, g3, be3, LN_EPS)

        x_carry[...] = x

        # last layer: apply the top-level LayerNorm(eps=1e-4) and write output
        @pl.when(l == n_layers - 1)
        def _final():
            fl = final_ln_ref[...]
            out_ref[...] = layernorm(x, fl[0:1], fl[1:2],
                                     FINAL_LN_EPS).astype(out_ref.dtype)

    return kernel


def pack_decoder_weights(w_self, w_cross, w1, w2):
    """Pack pre-transposed (in,out) weights into one [L, D, 3D+D_ff] bf16 slab."""
    L, D, _ = w_self.shape
    assert w2.shape[1] == D and w1.shape[1] == D, \
        "packing assumes d_ff == d_model (true for this Configuration)"
    return jnp.concatenate([w_self, w_cross, w1, w2], axis=-1).astype(jnp.bfloat16)


def sonata_decoder(encoder_output, pe, w_cat, vecs, final_ln, tgt_mask=None):
    S, B, D = encoder_output.shape
    SB = S * B
    L = w_cat.shape[0]
    d_ff = w_cat.shape[-1] - 3 * D
    w_width = w_cat.shape[-1]

    # Flatten activations to [SB, D]; fold the PE add into the wrapper (x0).
    enc_f32 = encoder_output.reshape(SB, D).astype(jnp.float32)
    pe_flat = jnp.broadcast_to(pe.astype(jnp.float32), (S, B, D)).reshape(SB, D)
    x0 = enc_f32 + pe_flat                              # [SB, D] f32
    enc_b = enc_f32.astype(jnp.bfloat16)                # cross-attn K/V stream (bf16)

    # Block-diagonal additive mask (exactness of the flattened attention).
    blk = jnp.arange(SB, dtype=jnp.int32) // B
    in_block = blk[:, None] == blk[None, :]
    block_mask = jnp.where(in_block, 0.0, NEG_INF).astype(jnp.float32)

    two_masks = tgt_mask is not None
    if two_masks:
        # position-independent [B,B] tgt_mask tiled into the in-block entries
        self_mask = jnp.where(in_block,
                              jnp.tile(tgt_mask.astype(jnp.float32), (S, S)),
                              NEG_INF).astype(jnp.float32)
        mask_inputs = (self_mask, block_mask)
    else:
        mask_inputs = (block_mask,)
    mask_specs = [pl.BlockSpec((SB, SB), lambda l: (0, 0))
                  for _ in range(len(mask_inputs))]

    kernel = _make_decoder_kernel(D // N_HEADS, L, D, d_ff, two_masks)

    grid_spec = pltpu.PrefetchScalarGridSpec(
        num_scalar_prefetch=0,
        grid=(L,),                                           # one step per decoder layer
        in_specs=[
            pl.BlockSpec((SB, D), lambda l: (0, 0)),         # x0 = enc + PE (resident)
            pl.BlockSpec((SB, D), lambda l: (0, 0)),         # enc bf16 (resident K/V)
            *mask_specs,                                     # block mask(s) (resident)
            pl.BlockSpec((1, D, w_width), lambda l: (l, 0, 0)),  # merged bf16 weight slab
            pl.BlockSpec((1, 8, D), lambda l: (l, 0, 0)),    # [b1,b2,ln1_g,ln1_b,ln2_g,ln2_b,ln3_g,ln3_b]
            pl.BlockSpec((2, D), lambda l: (0, 0)),          # final LayerNorm [gamma, beta]
        ],
        out_specs=pl.BlockSpec((SB, D), lambda l: (0, 0)),
        scratch_shapes=[pltpu.VMEM((SB, D), jnp.float32)],   # x carry across layers
    )

    # Advisory cost estimate (kernel is DMA-bound; lets XLA overlap neighbors).
    flops = L * (8 * SB * SB * D + 4 * SB * D * D + 4 * SB * D * d_ff)
    transcendentals = L * (2 * SB * SB + 5 * SB) + SB
    bytes_accessed = (L * D * w_width * 2 + L * 8 * D * 4 + 2 * D * 4
                      + SB * D * (4 + 2 + 4) + len(mask_inputs) * SB * SB * 4)

    out_flat = pl.pallas_call(
        kernel,
        out_shape=jax.ShapeDtypeStruct((SB, D), jnp.float32),
        grid_spec=grid_spec,
        compiler_params=pltpu.CompilerParams(
            dimension_semantics=("arbitrary",),              # layers are sequential
            vmem_limit_bytes=32 * 1024 * 1024),               # v7x-safe (64 MiB physical)
        cost_estimate=pl.CostEstimate(flops=int(flops),
                                      transcendentals=int(transcendentals),
                                      bytes_accessed=int(bytes_accessed)),
    )(x0, enc_b, *mask_inputs, w_cat, vecs, final_ln)

    return out_flat.reshape(S, B, D)


# ---- pure-JAX reference (mirrors the PyTorch forward, eval mode, f32) ----
def reference(enc, pe, mask, w_self, w_cross, w1, w2, vecs, final_ln, head_dim):
    def ln(y, g, b, eps):
        mu = y.mean(-1, keepdims=True)
        var = ((y - mu) ** 2).mean(-1, keepdims=True)
        return (y - mu) / jnp.sqrt(var + eps) * g + b

    scale = 1.0 / math.sqrt(head_dim)
    x = enc + pe
    for l in range(w_self.shape[0]):
        s = jnp.einsum('sbd,scd->sbc', x, x, precision='highest') * scale + mask
        sa = jnp.einsum('sbc,scd->sbd', jax.nn.softmax(s, -1), x,
                        precision='highest') @ w_self[l]
        x = ln(x + sa, vecs[l, 2], vecs[l, 3], LN_EPS)
        s = jnp.einsum('sbd,scd->sbc', x, enc, precision='highest') * scale
        ca = jnp.einsum('sbc,scd->sbd', jax.nn.softmax(s, -1), enc,
                        precision='highest') @ w_cross[l]
        x = ln(x + ca, vecs[l, 4], vecs[l, 5], LN_EPS)
        h = jnp.maximum(x @ w1[l] + vecs[l, 0], 0.0)
        f = h @ w2[l] + vecs[l, 1]
        x = ln(x + f, vecs[l, 6], vecs[l, 7], LN_EPS)
    return ln(x, final_ln[0], final_ln[1], FINAL_LN_EPS)


if __name__ == "__main__":
    S, B, D, L = 8, 4, D_MODEL, N_DECODER_LAYERS
    key = jax.random.PRNGKey(0)
    keys = jax.random.split(key, 8)

    # encoder_output (float path, separation=0)
    enc = jax.random.normal(keys[0], (S, B, D), jnp.float32)

    # positional-encoding buffer (same formula as the PyTorch module)
    position = jnp.arange(MAX_SEQ_LENGTH, dtype=jnp.float32)[:, None]
    div_term = jnp.exp(jnp.arange(0, D, 2, dtype=jnp.float32)
                       * (-math.log(10000.0) / D))
    pe_full = jnp.zeros((MAX_SEQ_LENGTH, 1, D), jnp.float32)
    pe_full = pe_full.at[:, 0, 0::2].set(jnp.sin(position * div_term))
    pe_full = pe_full.at[:, 0, 1::2].set(jnp.cos(position * div_term))
    pe = pe_full[:S]

    std = 0.02
    w_self = jax.random.normal(keys[1], (L, D, D), jnp.float32) * std      # out_proj^T
    w_cross = jax.random.normal(keys[2], (L, D, D), jnp.float32) * std     # out_proj^T
    w1 = jax.random.normal(keys[3], (L, D, D_FF), jnp.float32) * std       # ffn W1^T
    w2 = jax.random.normal(keys[4], (L, D_FF, D), jnp.float32) * std       # ffn W2^T

    vecs = jnp.zeros((L, 8, D), jnp.float32)
    vecs = vecs.at[:, 0].set(jax.random.normal(keys[5], (L, D)) * std)     # ffn b1
    vecs = vecs.at[:, 1].set(jax.random.normal(keys[6], (L, D)) * std)     # ffn b2
    vecs = vecs.at[:, 2].set(1.0)                                          # ln1 gamma
    vecs = vecs.at[:, 4].set(1.0)                                          # ln2 gamma
    vecs = vecs.at[:, 6].set(1.0)                                          # ln3 gamma
    final_ln = jnp.stack([jnp.ones((D,), jnp.float32),
                          jnp.zeros((D,), jnp.float32)])

    # one-time weight packing (bf16 slab) — done outside the per-call path
    w_cat = pack_decoder_weights(w_self, w_cross, w1, w2)
    w_cat = jax.block_until_ready(w_cat)

    out = jax.jit(sonata_decoder)(enc, pe, w_cat, vecs, final_ln)
    out = jax.block_until_ready(out)

    mask0 = jnp.zeros((B, B), jnp.float32)   # tgt_mask=None in the reference
    ref = reference(enc, pe, mask0, w_self, w_cross, w1, w2, vecs, final_ln,
                    D // N_HEADS)
    assert out.shape == (S, B, D) and out.dtype == jnp.float32
    err = float(jnp.max(jnp.abs(out - ref)))
    assert jnp.allclose(out, ref, atol=5e-2, rtol=5e-2), f"max abs err {err}"
    print("KERNEL_OK")
</pallas_src>

<mosaic_0001>
module attributes {stable_mosaic.version = 11 : i64} {
  func.func @kernel(%arg0: i32, %arg1: memref<32x512xf32, #tpu.memory_space<vmem>>, %arg2: memref<32x512xbf16, #tpu.memory_space<vmem>>, %arg3: memref<32x32xf32, #tpu.memory_space<vmem>>, %arg4: memref<1x512x2048xbf16, #tpu.memory_space<vmem>>, %arg5: memref<1x8x512xf32, #tpu.memory_space<vmem>>, %arg6: memref<2x512xf32, #tpu.memory_space<vmem>>, %arg7: memref<32x512xf32, #tpu.memory_space<vmem>>, %arg8: memref<32x512xf32, #tpu.memory_space<vmem>>) attributes {dimension_semantics = [#tpu.dimension_semantics<arbitrary>], iteration_bounds = array<i64: 4>, scalar_prefetch = 0 : i64, scratch_operands = 1 : i64, tpu.core_type = #tpu.core_type<tc>, window_params = [{pipeline_mode = #tpu.pipeline_mode<synchronous>, transform_indices = @transform_0, window_bounds = array<i64: 32, 512>}, {pipeline_mode = #tpu.pipeline_mode<synchronous>, transform_indices = @transform_1, window_bounds = array<i64: 32, 512>}, {pipeline_mode = #tpu.pipeline_mode<synchronous>, transform_indices = @transform_2, window_bounds = array<i64: 32, 32>}, {transform_indices = @transform_3, window_bounds = array<i64: 1, 512, 2048>}, {transform_indices = @transform_4, window_bounds = array<i64: 1, 8, 512>}, {pipeline_mode = #tpu.pipeline_mode<synchronous>, transform_indices = @transform_5, window_bounds = array<i64: 2, 512>}, {pipeline_mode = #tpu.pipeline_mode<synchronous>, transform_indices = @transform_6, window_bounds = array<i64: 32, 512>}]} {
    %c0_i32 = arith.constant 0 : i32
    %0 = arith.cmpi eq, %arg0, %c0_i32 : i32
    %1 = arith.extui %0 : i1 to i32
    %c0_i32_0 = arith.constant 0 : i32
    %2 = arith.cmpi ne, %1, %c0_i32_0 : i32
    scf.if %2 {
      %c0_52 = arith.constant 0 : index
      %c0_53 = arith.constant 0 : index
      %146 = vector.load %arg1[%c0_52, %c0_53] : memref<32x512xf32, #tpu.memory_space<vmem>>, vector<32x512xf32>
      %c0_54 = arith.constant 0 : index
      %c0_55 = arith.constant 0 : index
      %147 = vector.load %arg8[%c0_54, %c0_55] : memref<32x512xf32, #tpu.memory_space<vmem>>, vector<32x512xf32>
      tpu.vector_store %arg8[%c0_54, %c0_55], %146 {strides = array<i32>} : memref<32x512xf32, #tpu.memory_space<vmem>>, vector<32x512xf32>,
    } else {
    }
    %c0 = arith.constant 0 : index
    %c0_1 = arith.constant 0 : index
    %3 = vector.load %arg8[%c0, %c0_1] : memref<32x512xf32, #tpu.memory_space<vmem>>, vector<32x512xf32>
    %c0_2 = arith.constant 0 : index
    %c0_3 = arith.constant 0 : index
    %4 = vector.load %arg2[%c0_2, %c0_3] : memref<32x512xbf16, #tpu.memory_space<vmem>>, vector<32x512xbf16>
    %c0_4 = arith.constant 0 : index
    %c0_5 = arith.constant 0 : index
    %c0_6 = arith.constant 0 : index
    %5 = vector.load %arg4[%c0_4, %c0_5, %c0_6] : memref<1x512x2048xbf16, #tpu.memory_space<vmem>>, vector<1x512x512xbf16>
    %6 = vector.shape_cast %5 : vector<1x512x512xbf16> to vector<512x512xbf16>
    %c0_7 = arith.constant 0 : index
    %c0_8 = arith.constant 0 : index
    %c512 = arith.constant 512 : index
    %7 = vector.load %arg4[%c0_7, %c0_8, %c512] : memref<1x512x2048xbf16, #tpu.memory_space<vmem>>, vector<1x512x512xbf16>
    %8 = vector.shape_cast %7 : vector<1x512x512xbf16> to vector<512x512xbf16>
    %c0_9 = arith.constant 0 : index
    %c0_10 = arith.constant 0 : index
    %c1024 = arith.constant 1024 : index
    %9 = vector.load %arg4[%c0_9, %c0_10, %c1024] : memref<1x512x2048xbf16, #tpu.memory_space<vmem>>, vector<1x512x512xbf16>
    %10 = vector.shape_cast %9 : vector<1x512x512xbf16> to vector<512x512xbf16>
    %c0_11 = arith.constant 0 : index
    %c0_12 = arith.constant 0 : index
    %c1536 = arith.constant 1536 : index
    %11 = vector.load %arg4[%c0_11, %c0_12, %c1536] : memref<1x512x2048xbf16, #tpu.memory_space<vmem>>, vector<1x512x512xbf16>
    %12 = vector.shape_cast %11 : vector<1x512x512xbf16> to vector<512x512xbf16>
    %c0_13 = arith.constant 0 : index
    %c0_14 = arith.constant 0 : index
    %c0_15 = arith.constant 0 : index
    %13 = vector.load %arg5[%c0_13, %c0_14, %c0_15] : memref<1x8x512xf32, #tpu.memory_space<vmem>>, vector<1x8x512xf32>
    %14 = vector.shape_cast %13 : vector<1x8x512xf32> to vector<8x512xf32>
    %15 = vector.extract_strided_slice %14 {offsets = [0, 0], sizes = [1, 512], strides = [1, 1]} : vector<8x512xf32> to vector<1x512xf32>
    %16 = vector.extract_strided_slice %14 {offsets = [1, 0], sizes = [1, 512], strides = [1, 1]} : vector<8x512xf32> to vector<1x512xf32>
    %17 = vector.extract_strided_slice %14 {offsets = [2, 0], sizes = [1, 512], strides = [1, 1]} : vector<8x512xf32> to vector<1x512xf32>
    %18 = vector.extract_strided_slice %14 {offsets = [3, 0], sizes = [1, 512], strides = [1, 1]} : vector<8x512xf32> to vector<1x512xf32>
    %19 = vector.extract_strided_slice %14 {offsets = [4, 0], sizes = [1, 512], strides = [1, 1]} : vector<8x512xf32> to vector<1x512xf32>
    %20 = vector.extract_strided_slice %14 {offsets = [5, 0], sizes = [1, 512], strides = [1, 1]} : vector<8x512xf32> to vector<1x512xf32>
    %21 = vector.extract_strided_slice %14 {offsets = [6, 0], sizes = [1, 512], strides = [1, 1]} : vector<8x512xf32> to vector<1x512xf32>
    %22 = vector.extract_strided_slice %14 {offsets = [7, 0], sizes = [1, 512], strides = [1, 1]} : vector<8x512xf32> to vector<1x512xf32>
    %23 = arith.truncf %3 : vector<32x512xf32> to vector<32x512xbf16>
    %c0_16 = arith.constant 0 : index
    %c0_17 = arith.constant 0 : index
    %24 = vector.load %arg3[%c0_16, %c0_17] : memref<32x32xf32, #tpu.memory_space<vmem>>, vector<32x32xf32>
    "tpu.trace_start"() <{level = 10 : i32, message = "id,jd->ij"}> : () -> ()
    %cst = arith.constant dense<0.000000e+00> : vector<32x32xf32>
    %25 = tpu.matmul %23, %23, %cst {dimension_numbers = #tpu.dot_dimension_numbers<[1], [1], [0], [0], [0, 0, 1, 0], [], []>} : vector<32x512xbf16>, vector<32x512xbf16>, vector<32x32xf32> -> vector<32x32xf32>
    "tpu.trace_stop"() : () -> ()
    %cst_18 = arith.constant 1.250000e-01 : f32
    %26 = vector.broadcast %cst_18 : f32 to vector<32x32xf32>
    %27 = arith.mulf %25, %26 : vector<32x32xf32>
    %28 = arith.addf %27, %24 : vector<32x32xf32>
    %cst_19 = arith.constant dense<0xFF800000> : vector<32xf32>
    %29 = vector.multi_reduction <maximumf>, %28, %cst_19 [1] : vector<32x32xf32> to vector<32xf32>
    %30 = vector.shape_cast %29 : vector<32xf32> to vector<32x1xf32>
    %31 = vector.broadcast %30 : vector<32x1xf32> to vector<32x32xf32>
    %32 = arith.subf %28, %31 : vector<32x32xf32>
    %33 = math.exp %32 : vector<32x32xf32>
    %cst_20 = arith.constant dense<0.000000e+00> : vector<32xf32>
    %34 = vector.multi_reduction <add>, %33, %cst_20 [1] : vector<32x32xf32> to vector<32xf32>
    %35 = vector.shape_cast %34 : vector<32xf32> to vector<32x1xf32>
    %36 = tpu.reciprocal %35 {approx = true} : vector<32x1xf32> -> vector<32x1xf32>
    %37 = vector.broadcast %36 : vector<32x1xf32> to vector<32x32xf32>
    %38 = arith.mulf %33, %37 : vector<32x32xf32>
    %39 = arith.truncf %38 : vector<32x32xf32> to vector<32x32xbf16>
    %cst_21 = arith.constant dense<0.000000e+00> : vector<32x512xf32>
    %40 = tpu.matmul %39, %23, %cst_21 {dimension_numbers = #tpu.dot_dimension_numbers<[1], [0], [0], [1], [0, 0, 1, 1], [], []>} : vector<32x32xbf16>, vector<32x512xbf16>, vector<32x512xf32> -> vector<32x512xf32>
    %41 = arith.truncf %40 : vector<32x512xf32> to vector<32x512xbf16>
    %cst_22 = arith.constant dense<0.000000e+00> : vector<32x512xf32>
    %42 = tpu.matmul %41, %6, %cst_22 {dimension_numbers = #tpu.dot_dimension_numbers<[1], [0], [0], [1], [0, 0, 1, 1], [], []>} : vector<32x512xbf16>, vector<512x512xbf16>, vector<32x512xf32> -> vector<32x512xf32>
    %43 = arith.addf %3, %42 : vector<32x512xf32>
    %cst_23 = arith.constant dense<0.000000e+00> : vector<32xf32>
    %44 = vector.multi_reduction <add>, %43, %cst_23 [1] : vector<32x512xf32> to vector<32xf32>
    %45 = vector.shape_cast %44 : vector<32xf32> to vector<32x1xf32>
    %cst_24 = arith.constant 5.120000e+02 : f32
    %46 = vector.broadcast %cst_24 : f32 to vector<32x1xf32>
    %47 = arith.divf %45, %46 : vector<32x1xf32>
    %48 = vector.broadcast %47 : vector<32x1xf32> to vector<32x512xf32>
    %49 = arith.subf %43, %48 : vector<32x512xf32>
    %50 = arith.mulf %49, %49 : vector<32x512xf32>
    %cst_25 = arith.constant dense<0.000000e+00> : vector<32xf32>
    %51 = vector.multi_reduction <add>, %50, %cst_25 [1] : vector<32x512xf32> to vector<32xf32>
    %52 = vector.shape_cast %51 : vector<32xf32> to vector<32x1xf32>
    %cst_26 = arith.constant 5.120000e+02 : f32
    %53 = vector.broadcast %cst_26 : f32 to vector<32x1xf32>
    %54 = arith.divf %52, %53 : vector<32x1xf32>
    %55 = vector.broadcast %47 : vector<32x1xf32> to vector<32x512xf32>
    %56 = arith.subf %43, %55 : vector<32x512xf32>
    %cst_27 = arith.constant 9.99999974E-6 : f32
    %57 = vector.broadcast %cst_27 : f32 to vector<32x1xf32>
    %58 = arith.addf %54, %57 : vector<32x1xf32>
    %59 = math.rsqrt %58 : vector<32x1xf32>
    %60 = vector.broadcast %59 : vector<32x1xf32> to vector<32x512xf32>
    %61 = arith.mulf %56, %60 : vector<32x512xf32>
    %62 = vector.broadcast %17 : vector<1x512xf32> to vector<32x512xf32>
    %63 = arith.mulf %61, %62 : vector<32x512xf32>
    %64 = vector.broadcast %18 : vector<1x512xf32> to vector<32x512xf32>
    %65 = arith.addf %63, %64 : vector<32x512xf32>
    %66 = arith.truncf %65 : vector<32x512xf32> to vector<32x512xbf16>
    %c0_28 = arith.constant 0 : index
    %c0_29 = arith.constant 0 : index
    %67 = vector.load %arg3[%c0_28, %c0_29] : memref<32x32xf32, #tpu.memory_space<vmem>>, vector<32x32xf32>
    "tpu.trace_start"() <{level = 10 : i32, message = "id,jd->ij"}> : () -> ()
    %cst_30 = arith.constant dense<0.000000e+00> : vector<32x32xf32>
    %68 = tpu.matmul %66, %4, %cst_30 {dimension_numbers = #tpu.dot_dimension_numbers<[1], [1], [0], [0], [0, 0, 1, 0], [], []>} : vector<32x512xbf16>, vector<32x512xbf16>, vector<32x32xf32> -> vector<32x32xf32>
    "tpu.trace_stop"() : () -> ()
    %cst_31 = arith.constant 1.250000e-01 : f32
    %69 = vector.broadcast %cst_31 : f32 to vector<32x32xf32>
    %70 = arith.mulf %68, %69 : vector<32x32xf32>
    %71 = arith.addf %70, %67 : vector<32x32xf32>
    %cst_32 = arith.constant dense<0xFF800000> : vector<32xf32>
    %72 = vector.multi_reduction <maximumf>, %71, %cst_32 [1] : vector<32x32xf32> to vector<32xf32>
    %73 = vector.shape_cast %72 : vector<32xf32> to vector<32x1xf32>
    %74 = vector.broadcast %73 : vector<32x1xf32> to vector<32x32xf32>
    %75 = arith.subf %71, %74 : vector<32x32xf32>
    %76 = math.exp %75 : vector<32x32xf32>
    %cst_33 = arith.constant dense<0.000000e+00> : vector<32xf32>
    %77 = vector.multi_reduction <add>, %76, %cst_33 [1] : vector<32x32xf32> to vector<32xf32>
    %78 = vector.shape_cast %77 : vector<32xf32> to vector<32x1xf32>
    %79 = tpu.reciprocal %78 {approx = true} : vector<32x1xf32> -> vector<32x1xf32>
    %80 = vector.broadcast %79 : vector<32x1xf32> to vector<32x32xf32>
    %81 = arith.mulf %76, %80 : vector<32x32xf32>
    %82 = arith.truncf %81 : vector<32x32xf32> to vector<32x32xbf16>
    %cst_34 = arith.constant dense<0.000000e+00> : vector<32x512xf32>
    %83 = tpu.matmul %82, %4, %cst_34 {dimension_numbers = #tpu.dot_dimension_numbers<[1], [0], [0], [1], [0, 0, 1, 1], [], []>} : vector<32x32xbf16>, vector<32x512xbf16>, vector<32x512xf32> -> vector<32x512xf32>
    %84 = arith.truncf %83 : vector<32x512xf32> to vector<32x512xbf16>
    %cst_35 = arith.constant dense<0.000000e+00> : vector<32x512xf32>
    %85 = tpu.matmul %84, %8, %cst_35 {dimension_numbers = #tpu.dot_dimension_numbers<[1], [0], [0], [1], [0, 0, 1, 1], [], []>} : vector<32x512xbf16>, vector<512x512xbf16>, vector<32x512xf32> -> vector<32x512xf32>
    %86 = arith.addf %65, %85 : vector<32x512xf32>
    %cst_36 = arith.constant dense<0.000000e+00> : vector<32xf32>
    %87 = vector.multi_reduction <add>, %86, %cst_36 [1] : vector<32x512xf32> to vector<32xf32>
    %88 = vector.shape_cast %87 : vector<32xf32> to vector<32x1xf32>
    %cst_37 = arith.constant 5.120000e+02 : f32
    %89 = vector.broadcast %cst_37 : f32 to vector<32x1xf32>
    %90 = arith.divf %88, %89 : vector<32x1xf32>
    %91 = vector.broadcast %90 : vector<32x1xf32> to vector<32x512xf32>
    %92 = arith.subf %86, %91 : vector<32x512xf32>
    %93 = arith.mulf %92, %92 : vector<32x512xf32>
    %cst_38 = arith.constant dense<0.000000e+00> : vector<32xf32>
    %94 = vector.multi_reduction <add>, %93, %cst_38 [1] : vector<32x512xf32> to vector<32xf32>
    %95 = vector.shape_cast %94 : vector<32xf32> to vector<32x1xf32>
    %cst_39 = arith.constant 5.120000e+02 : f32
    %96 = vector.broadcast %cst_39 : f32 to vector<32x1xf32>
    %97 = arith.divf %95, %96 : vector<32x1xf32>
    %98 = vector.broadcast %90 : vector<32x1xf32> to vector<32x512xf32>
    %99 = arith.subf %86, %98 : vector<32x512xf32>
    %cst_40 = arith.constant 9.99999974E-6 : f32
    %100 = vector.broadcast %cst_40 : f32 to vector<32x1xf32>
    %101 = arith.addf %97, %100 : vector<32x1xf32>
    %102 = math.rsqrt %101 : vector<32x1xf32>
    %103 = vector.broadcast %102 : vector<32x1xf32> to vector<32x512xf32>
    %104 = arith.mulf %99, %103 : vector<32x512xf32>
    %105 = vector.broadcast %19 : vector<1x512xf32> to vector<32x512xf32>
    %106 = arith.mulf %104, %105 : vector<32x512xf32>
    %107 = vector.broadcast %20 : vector<1x512xf32> to vector<32x512xf32>
    %108 = arith.addf %106, %107 : vector<32x512xf32>
    %109 = arith.truncf %108 : vector<32x512xf32> to vector<32x512xbf16>
    %cst_41 = arith.constant dense<0.000000e+00> : vector<32x512xf32>
    %110 = tpu.matmul %109, %10, %cst_41 {dimension_numbers = #tpu.dot_dimension_numbers<[1], [0], [0], [1], [0, 0, 1, 1], [], []>} : vector<32x512xbf16>, vector<512x512xbf16>, vector<32x512xf32> -> vector<32x512xf32>
    %111 = vector.broadcast %15 : vector<1x512xf32> to vector<32x512xf32>
    %112 = arith.addf %110, %111 : vector<32x512xf32>
    %cst_42 = arith.constant 0.000000e+00 : f32
    %113 = vector.broadcast %cst_42 : f32 to vector<32x512xf32>
    %114 = arith.maximumf %112, %113 : vector<32x512xf32>
    %115 = arith.truncf %114 : vector<32x512xf32> to vector<32x512xbf16>
    %cst_43 = arith.constant dense<0.000000e+00> : vector<32x512xf32>
    %116 = tpu.matmul %115, %12, %cst_43 {dimension_numbers = #tpu.dot_dimension_numbers<[1], [0], [0], [1], [0, 0, 1, 1], [], []>} : vector<32x512xbf16>, vector<512x512xbf16>, vector<32x512xf32> -> vector<32x512xf32>
    %117 = vector.broadcast %16 : vector<1x512xf32> to vector<32x512xf32>
    %118 = arith.addf %116, %117 : vector<32x512xf32>
    %119 = arith.addf %108, %118 : vector<32x512xf32>
    %cst_44 = arith.constant dense<0.000000e+00> : vector<32xf32>
    %120 = vector.multi_reduction <add>, %119, %cst_44 [1] : vector<32x512xf32> to vector<32xf32>
    %121 = vector.shape_cast %120 : vector<32xf32> to vector<32x1xf32>
    %cst_45 = arith.constant 5.120000e+02 : f32
    %122 = vector.broadcast %cst_45 : f32 to vector<32x1xf32>
    %123 = arith.divf %121, %122 : vector<32x1xf32>
    %124 = vector.broadcast %123 : vector<32x1xf32> to vector<32x512xf32>
    %125 = arith.subf %119, %124 : vector<32x512xf32>
    %126 = arith.mulf %125, %125 : vector<32x512xf32>
    %cst_46 = arith.constant dense<0.000000e+00> : vector<32xf32>
    %127 = vector.multi_reduction <add>, %126, %cst_46 [1] : vector<32x512xf32> to vector<32xf32>
    %128 = vector.shape_cast %127 : vector<32xf32> to vector<32x1xf32>
    %cst_47 = arith.constant 5.120000e+02 : f32
    %129 = vector.broadcast %cst_47 : f32 to vector<32x1xf32>
    %130 = arith.divf %128, %129 : vector<32x1xf32>
    %131 = vector.broadcast %123 : vector<32x1xf32> to vector<32x512xf32>
    %132 = arith.subf %119, %131 : vector<32x512xf32>
    %cst_48 = arith.constant 9.99999974E-6 : f32
    %133 = vector.broadcast %cst_48 : f32 to vector<32x1xf32>
    %134 = arith.addf %130, %133 : vector<32x1xf32>
    %135 = math.rsqrt %134 : vector<32x1xf32>
    %136 = vector.broadcast %135 : vector<32x1xf32> to vector<32x512xf32>
    %137 = arith.mulf %132, %136 : vector<32x512xf32>
    %138 = vector.broadcast %21 : vector<1x512xf32> to vector<32x512xf32>
    %139 = arith.mulf %137, %138 : vector<32x512xf32>
    %140 = vector.broadcast %22 : vector<1x512xf32> to vector<32x512xf32>
    %141 = arith.addf %139, %140 : vector<32x512xf32>
    %c0_49 = arith.constant 0 : index
    %c0_50 = arith.constant 0 : index
    %142 = vector.load %arg8[%c0_49, %c0_50] : memref<32x512xf32, #tpu.memory_space<vmem>>, vector<32x512xf32>
    tpu.vector_store %arg8[%c0_49, %c0_50], %141 {strides = array<i32>} : memref<32x512xf32, #tpu.memory_space<vmem>>, vector<32x512xf32>,
    %c3_i32 = arith.constant 3 : i32
    %143 = arith.cmpi eq, %arg0, %c3_i32 : i32
    %144 = arith.extui %143 : i1 to i32
    %c0_i32_51 = arith.constant 0 : i32
    %145 = arith.cmpi ne, %144, %c0_i32_51 : i32
    scf.if %145 {
      %c0_52 = arith.constant 0 : index
      %c0_53 = arith.constant 0 : index
      %146 = vector.load %arg6[%c0_52, %c0_53] : memref<2x512xf32, #tpu.memory_space<vmem>>, vector<2x512xf32>
      %147 = vector.extract_strided_slice %146 {offsets = [0, 0], sizes = [1, 512], strides = [1, 1]} : vector<2x512xf32> to vector<1x512xf32>
      %148 = vector.extract_strided_slice %146 {offsets = [1, 0], sizes = [1, 512], strides = [1, 1]} : vector<2x512xf32> to vector<1x512xf32>
      %cst_54 = arith.constant dense<0.000000e+00> : vector<32xf32>
      %149 = vector.multi_reduction <add>, %141, %cst_54 [1] : vector<32x512xf32> to vector<32xf32>
      %150 = vector.shape_cast %149 : vector<32xf32> to vector<32x1xf32>
      %cst_55 = arith.constant 5.120000e+02 : f32
      %151 = vector.broadcast %cst_55 : f32 to vector<32x1xf32>
      %152 = arith.divf %150, %151 : vector<32x1xf32>
      %153 = vector.broadcast %152 : vector<32x1xf32> to vector<32x512xf32>
      %154 = arith.subf %141, %153 : vector<32x512xf32>
      %155 = arith.mulf %154, %154 : vector<32x512xf32>
      %cst_56 = arith.constant dense<0.000000e+00> : vector<32xf32>
      %156 = vector.multi_reduction <add>, %155, %cst_56 [1] : vector<32x512xf32> to vector<32xf32>
      %157 = vector.shape_cast %156 : vector<32xf32> to vector<32x1xf32>
      %cst_57 = arith.constant 5.120000e+02 : f32
      %158 = vector.broadcast %cst_57 : f32 to vector<32x1xf32>
      %159 = arith.divf %157, %158 : vector<32x1xf32>
      %160 = vector.broadcast %152 : vector<32x1xf32> to vector<32x512xf32>
      %161 = arith.subf %141, %160 : vector<32x512xf32>
      %cst_58 = arith.constant 9.99999974E-5 : f32
      %162 = vector.broadcast %cst_58 : f32 to vector<32x1xf32>
      %163 = arith.addf %159, %162 : vector<32x1xf32>
      %164 = math.rsqrt %163 : vector<32x1xf32>
      %165 = vector.broadcast %164 : vector<32x1xf32> to vector<32x512xf32>
      %166 = arith.mulf %161, %165 : vector<32x512xf32>
      %167 = vector.broadcast %147 : vector<1x512xf32> to vector<32x512xf32>
      %168 = arith.mulf %166, %167 : vector<32x512xf32>
      %169 = vector.broadcast %148 : vector<1x512xf32> to vector<32x512xf32>
      %170 = arith.addf %168, %169 : vector<32x512xf32>
      %c0_59 = arith.constant 0 : index
      %c0_60 = arith.constant 0 : index
      %171 = vector.load %arg7[%c0_59, %c0_60] : memref<32x512xf32, #tpu.memory_space<vmem>>, vector<32x512xf32>
      tpu.vector_store %arg7[%c0_59, %c0_60], %170 {strides = array<i32>} : memref<32x512xf32, #tpu.memory_space<vmem>>, vector<32x512xf32>,
    } else {
    }
    return
  }
  func.func @transform_0(%arg0: i32) -> (i32, i32) {
    %c0_i32 = arith.constant 0 : i32
    %c0_i32_0 = arith.constant 0 : i32
    %c0_i32_1 = arith.constant 0 : i32
    return %c0_i32, %c0_i32_0 : i32, i32
  }
  func.func @transform_1(%arg0: i32) -> (i32, i32) {
    %c0_i32 = arith.constant 0 : i32
    %c0_i32_0 = arith.constant 0 : i32
    %c0_i32_1 = arith.constant 0 : i32
    return %c0_i32, %c0_i32_0 : i32, i32
  }
  func.func @transform_2(%arg0: i32) -> (i32, i32) {
    %c0_i32 = arith.constant 0 : i32
    %c0_i32_0 = arith.constant 0 : i32
    %c0_i32_1 = arith.constant 0 : i32
    return %c0_i32, %c0_i32_0 : i32, i32
  }
  func.func @transform_3(%arg0: i32) -> (i32, i32, i32) {
    %c0_i32 = arith.constant 0 : i32
    %c0_i32_0 = arith.constant 0 : i32
    %c0_i32_1 = arith.constant 0 : i32
    return %arg0, %c0_i32, %c0_i32_0 : i32, i32, i32
  }
  func.func @transform_4(%arg0: i32) -> (i32, i32, i32) {
    %c0_i32 = arith.constant 0 : i32
    %c0_i32_0 = arith.constant 0 : i32
    %c0_i32_1 = arith.constant 0 : i32
    return %arg0, %c0_i32, %c0_i32_0 : i32, i32, i32
  }
  func.func @transform_5(%arg0: i32) -> (i32, i32) {
    %c0_i32 = arith.constant 0 : i32
    %c0_i32_0 = arith.constant 0 : i32
    %c0_i32_1 = arith.constant 0 : i32
    return %c0_i32, %c0_i32_0 : i32, i32
  }
  func.func @transform_6(%arg0: i32) -> (i32, i32) {
    %c0_i32 = arith.constant 0 : i32
    %c0_i32_0 = arith.constant 0 : i32
    %c0_i32_1 = arith.constant 0 : i32
    return %c0_i32, %c0_i32_0 : i32, i32
  }
}

</mosaic_0001>

<llo_original>
// kernel: sonata_decoder.1
$region0: #{sonata_decoder.1}
  #allocation0 [shape = 'u32[]', space=smem, size = 0x4, offset = 0x4, fixed_abs, tag = 'smem constant byte address 0x4 - core index']
  #allocation1 [shape = 'u32[144,128]{1,0:T(1,128)}', space=vmem, size = 0x12000, scoped, tag = 'internal scratch']
  #allocation2 [shape = 'f32[32,512]{1,0:T(8,128)}', space=vmem, size = 0x10000, scoped, tag = 'scratch operand']
  %s0 = inlined_call_operand.vmem [shape: f32[32,512], index: 0, kind: input, shape index: {}]
  %s1 = inlined_call_operand.vmem [shape: bf16[32,512], index: 1, kind: input, shape index: {}]
  %s2 = inlined_call_operand.vmem [shape: f32[32,32], index: 2, kind: input, shape index: {}]
  %s3 = inlined_call_operand.hbm [shape: bf16[4,512,2048], index: 3, kind: input, shape index: {}]
  %s4 = inlined_call_operand.hbm [shape: f32[4,8,512], index: 4, kind: input, shape index: {}]
  %s5 = inlined_call_operand.hbm [shape: f32[2,512], index: 5, kind: input, shape index: {}]
  %s6 = inlined_call_operand.vmem [shape: f32[32,512], index: 6, kind: output, shape index: {}]
  %s7 = sld [smem:[#allocation0]]
  $region77: #{sonata_decoder.1} parent=0
    _
  %s9 = ssub.s32 1, %s7
  %s10 = scalar_select 0, %s9, %s7
  $region1: #{sonata_decoder.1} parent=0
    #allocation3 [shape = 'u8[4194304]{0}', space=vmem, size = 0x400000, scoped, tag = 'input window, operand 3']
    #allocation4 [shape = 's32[2]{0}', space=sflag, size = 0x8, scoped, tag = 'scoped memory for sonata_decoder.1']
    #allocation5 [shape = 'u8[32768]{0}', space=vmem, size = 0x8000, scoped, tag = 'input window, operand 4']
    #allocation6 [shape = 's32[2]{0}', space=sflag, size = 0x8, scoped, tag = 'scoped memory for sonata_decoder.1']
    #allocation7 [shape = 'u8[4096]{0}', space=vmem, size = 0x1000, scoped, tag = 'input window, operand 5, single buffered']
    %11 = vsyncpa [#allocation4], 0
    %s12 = scalar_lea.sflag [#allocation4], 1
    %13 = vsyncpa %s12, 0
    %14 = vsyncpa [#allocation6], 0
    %s15 = scalar_lea.sflag [#allocation6], 1
    %16 = vsyncpa %s15, 0
    loop: start=0, step=1, limit=6
    $region2: #{sonata_decoder.1} parent=1 // loop_pre_header
      _
    $region3: #{sonata_decoder.1} parent=1 // loop_header
      %s18 = sphi 0, %s22
      %p19 = scmp.ge.s32.totalorder %s18, 6
      %s26 = sphi 0, %s26
      %s28 = sphi 0, %s26
      %s29 = sphi 0, %s28
      %s43 = sphi 0, %s29
      %s47 = sphi 0, %s47
      %s49 = sphi 0, %s47
      %s50 = sphi 0, %s49
      %s64 = sphi 0, %s50
      %s68 = sphi 0, %s68
      %s70 = sphi 0, %s68
      %s71 = sphi 0, %s70
      %s85 = sphi 0, %s71
      %s91 = sphi 0, %s93
      %s94 = sphi 0, %s91
      %s95 = sphi 0, %s94
      %s111 = sphi 0, %s95
      %s117 = sphi 0, %s119
      %s120 = sphi 0, %s117
      %s121 = sphi 0, %s120
      %s137 = sphi 0, %s121
      %s141 = sphi 0, %s141
      %s143 = sphi 0, %s141
      %s144 = sphi 0, %s143
      %s158 = sphi 0, %s144
      %s162 = sphi 0, %s162
      %s164 = sphi 0, %s162
      %s165 = sphi 0, %s164
      %s179 = sphi 0, %s165
    $region4: #{sonata_decoder.1} parent=1 // loop_header_branch
      %21 = sbr.rel (%p19) target = $region8
    $region5: #{sonata_decoder.1} parent=1 // loop_body
      %s23 = ssub.s32 %s18, 1
      %s24 = ssub.s32 %s18, 2
      %s25 = sadd.s32 %s18, 1
      %s27 = sadd.s32 %s26, 1
      %p30 = scmp.eq.s32.totalorder %s18, 3
      %p31 = scmp.ne.s32.totalorder %s26, %s28
      %p32 = scmp.eq.s32.totalorder %s18, 0
      %p33 = por %p31, %p32
      %p34 = scmp.ne.s32.totalorder %s26, %s28
      %p35 = scmp.eq.s32.totalorder %s23, 3
      %p36 = por %p34, %p35
      %p37 = scmp.ne.s32.totalorder %s28, %s29
      %p38 = scmp.eq.s32.totalorder %s23, 0
      %p39 = por %p37, %p38
      %p40 = scmp.ne.s32.totalorder %s28, %s29
      %p41 = scmp.eq.s32.totalorder %s24, 3
      %p42 = por %p40, %p41
      %p44 = scmp.ne.s32.totalorder %s29, %s43
      %p45 = scmp.eq.s32.totalorder %s24, 0
      %p46 = por %p44, %p45
      %s48 = sadd.s32 %s47, 1
      %p51 = scmp.eq.s32.totalorder %s18, 3
      %p52 = scmp.ne.s32.totalorder %s47, %s49
      %p53 = scmp.eq.s32.totalorder %s18, 0
      %p54 = por %p52, %p53
      %p55 = scmp.ne.s32.totalorder %s47, %s49
      %p56 = scmp.eq.s32.totalorder %s23, 3
      %p57 = por %p55, %p56
      %p58 = scmp.ne.s32.totalorder %s49, %s50
      %p59 = scmp.eq.s32.totalorder %s23, 0
      %p60 = por %p58, %p59
      %p61 = scmp.ne.s32.totalorder %s49, %s50
      %p62 = scmp.eq.s32.totalorder %s24, 3
      %p63 = por %p61, %p62
      %p65 = scmp.ne.s32.totalorder %s50, %s64
      %p66 = scmp.eq.s32.totalorder %s24, 0
      %p67 = por %p65, %p66
      %s69 = sadd.s32 %s68, 1
      %p72 = scmp.eq.s32.totalorder %s18, 3
      %p73 = scmp.ne.s32.totalorder %s68, %s70
      %p74 = scmp.eq.s32.totalorder %s18, 0
      %p75 = por %p73, %p74
      %p76 = scmp.ne.s32.totalorder %s68, %s70
      %p77 = scmp.eq.s32.totalorder %s23, 3
      %p78 = por %p76, %p77
      %p79 = scmp.ne.s32.totalorder %s70, %s71
      %p80 = scmp.eq.s32.totalorder %s23, 0
      %p81 = por %p79, %p80
      %p82 = scmp.ne.s32.totalorder %s70, %s71
      %p83 = scmp.eq.s32.totalorder %s24, 3
      %p84 = por %p82, %p83
      %p86 = scmp.ne.s32.totalorder %s71, %s85
      %p87 = scmp.eq.s32.totalorder %s24, 0
      %p88 = por %p86, %p87
      %s89 = ssub.s32 %s18, %s25
      %p90 = scmp.eq.s32.totalorder %s89, 0
      %s92 = sadd.s32 %s91, 1
      %s93 = scalar_select %p90, %s91, %s92
      %p96 = pneg %p90
      %p97 = scmp.eq.s32.totalorder %s18, 3
      %p98 = por %p96, %p97
      %p99 = scmp.ne.s32.totalorder %s91, %s94
      %p100 = scmp.eq.s32.totalorder %s18, 0
      %p101 = por %p99, %p100
      %p102 = scmp.ne.s32.totalorder %s91, %s94
      %p103 = scmp.eq.s32.totalorder %s23, 3
      %p104 = por %p102, %p103
      %p105 = scmp.ne.s32.totalorder %s94, %s95
      %p106 = scmp.eq.s32.totalorder %s23, 0
      %p107 = por %p105, %p106
      %p108 = scmp.ne.s32.totalorder %s94, %s95
      %p109 = scmp.eq.s32.totalorder %s24, 3
      %p110 = por %p108, %p109
      %p112 = scmp.ne.s32.totalorder %s95, %s111
      %p113 = scmp.eq.s32.totalorder %s24, 0
      %p114 = por %p112, %p113
      %s115 = ssub.s32 %s18, %s25
      %p116 = scmp.eq.s32.totalorder %s115, 0
      %s118 = sadd.s32 %s117, 1
      %s119 = scalar_select %p116, %s117, %s118
      %p122 = pneg %p116
      %p123 = scmp.eq.s32.totalorder %s18, 3
      %p124 = por %p122, %p123
      %p125 = scmp.ne.s32.totalorder %s117, %s120
      %p126 = scmp.eq.s32.totalorder %s18, 0
      %p127 = por %p125, %p126
      %p128 = scmp.ne.s32.totalorder %s117, %s120
      %p129 = scmp.eq.s32.totalorder %s23, 3
      %p130 = por %p128, %p129
      %p131 = scmp.ne.s32.totalorder %s120, %s121
      %p132 = scmp.eq.s32.totalorder %s23, 0
      %p133 = por %p131, %p132
      %p134 = scmp.ne.s32.totalorder %s120, %s121
      %p135 = scmp.eq.s32.totalorder %s24, 3
      %p136 = por %p134, %p135
      %p138 = scmp.ne.s32.totalorder %s121, %s137
      %p139 = scmp.eq.s32.totalorder %s24, 0
      %p140 = por %p138, %p139
      %s142 = sadd.s32 %s141, 1
      %p145 = scmp.eq.s32.totalorder %s18, 3
      %p146 = scmp.ne.s32.totalorder %s141, %s143
      %p147 = scmp.eq.s32.totalorder %s18, 0
      %p148 = por %p146, %p147
      %p149 = scmp.ne.s32.totalorder %s141, %s143
      %p150 = scmp.eq.s32.totalorder %s23, 3
      %p151 = por %p149, %p150
      %p152 = scmp.ne.s32.totalorder %s143, %s144
      %p153 = scmp.eq.s32.totalorder %s23, 0
      %p154 = por %p152, %p153
      %p155 = scmp.ne.s32.totalorder %s143, %s144
      %p156 = scmp.eq.s32.totalorder %s24, 3
      %p157 = por %p155, %p156
      %p159 = scmp.ne.s32.totalorder %s144, %s158
      %p160 = scmp.eq.s32.totalorder %s24, 0
      %p161 = por %p159, %p160
      %s163 = sadd.s32 %s162, 1
      %p166 = scmp.eq.s32.totalorder %s18, 3
      %p167 = scmp.ne.s32.totalorder %s162, %s164
      %p168 = scmp.eq.s32.totalorder %s18, 0
      %p169 = por %p167, %p168
      %p170 = scmp.ne.s32.totalorder %s162, %s164
      %p171 = scmp.eq.s32.totalorder %s23, 3
      %p172 = por %p170, %p171
      %p173 = scmp.ne.s32.totalorder %s164, %s165
      %p174 = scmp.eq.s32.totalorder %s23, 0
      %p175 = por %p173, %p174
      %p176 = scmp.ne.s32.totalorder %s164, %s165
      %p177 = scmp.eq.s32.totalorder %s24, 3
      %p178 = por %p176, %p177
      %p180 = scmp.ne.s32.totalorder %s165, %s179
      %p181 = scmp.eq.s32.totalorder %s24, 0
      %p182 = por %p180, %p181
      %p183 = scmp.le.s32.totalorder 1, %s18
      %p184 = scmp.lt.s32.totalorder %s18, 5
      %p185 = pnand %p183, %p184
      %p186 = pneg %p185
      // Predicated region
      $region9: #{sonata_decoder.1} parent=5 // pred_check
        _
      $region10: #{sonata_decoder.1} parent=5 // pred_check_branch
        %188 = sbr.rel (%p185) target = $region12
      $region11: #{sonata_decoder.1} parent=5 // pred_region
        %s189 = ssub.s32 %s18, 1
        // Predicated region
        $region13: #{sonata_decoder.1} parent=11 // pred_check
          %p190 = pneg %p39
        $region14: #{sonata_decoder.1} parent=11 // pred_check_branch
          %192 = sbr.rel (%p190) target = $region16
        $region15: #{sonata_decoder.1} parent=11 // pred_region
          _
        $region16: #{sonata_decoder.1} parent=11 // pred_fallthru
          _
        // Predicated region
        $region17: #{sonata_decoder.1} parent=11 // pred_check
          %p193 = pneg %p60
        $region18: #{sonata_decoder.1} parent=11 // pred_check_branch
          %195 = sbr.rel (%p193) target = $region20
        $region19: #{sonata_decoder.1} parent=11 // pred_region
          _
        $region20: #{sonata_decoder.1} parent=11 // pred_fallthru
          _
        // Predicated region
        $region21: #{sonata_decoder.1} parent=11 // pred_check
          %p196 = pneg %p81
        $region22: #{sonata_decoder.1} parent=11 // pred_check_branch
          %198 = sbr.rel (%p196) target = $region24
        $region23: #{sonata_decoder.1} parent=11 // pred_region
          _
        $region24: #{sonata_decoder.1} parent=11 // pred_fallthru
          _
        // Predicated region
        $region25: #{sonata_decoder.1} parent=11 // pred_check
          %p199 = pneg %p154
        $region26: #{sonata_decoder.1} parent=11 // pred_check_branch
          %201 = sbr.rel (%p199) target = $region28
        $region27: #{sonata_decoder.1} parent=11 // pred_region
          %s203 = ssub.s32 128, 128
          %204 = vsyncadd [#allocation6], %s203
          %s206 = sshll.u32 [#allocation7], 4
          %s207 = int_to_ptr.vmem [resolvable:$true] %s206
          %209 = dma.hbm_to_vmem [thread:$0]  %s5, 128, %s207, [#allocation6]
        $region28: #{sonata_decoder.1} parent=11 // pred_fallthru
          _
      $region12: #{sonata_decoder.1} parent=5 // pred_fallthru
        _
      %p210 = scmp.lt.s32.totalorder %s18, 4
      // Predicated region
      $region29: #{sonata_decoder.1} parent=5 // pred_check
        %p211 = pneg %p210
      $region30: #{sonata_decoder.1} parent=5 // pred_check_branch
        %213 = sbr.rel (%p211) target = $region32
      $region31: #{sonata_decoder.1} parent=5 // pred_region
        // Predicated region
        $region33: #{sonata_decoder.1} parent=31 // pred_check
          %p214 = pneg %p101
        $region34: #{sonata_decoder.1} parent=31 // pred_check_branch
          %216 = sbr.rel (%p214) target = $region36
        $region35: #{sonata_decoder.1} parent=31 // pred_region
          %s217 = sand.u32 %s91, 1
          %s218 = scalar_lea.sflag [#allocation4], %s217
          %s219 = sand.u32 %s91, 1
          %s220 = smul.addr %s219, 4096
          %s221 = scalar_lea.vmem [#allocation3], %s220
          %s223 = ssub.s32 65536, 65536
          %224 = vsyncadd %s218, %s223
          %s225 = smul.addr %s18, 1024
          %s226 = smul.addr %s225, 64
          %s227 = scalar_lea.hbm %s3, %s226
          %s228 = sshll.u32 %s221, 4
          %s229 = int_to_ptr.vmem [resolvable:$true] %s228
          %234 = dma.hbm_to_vmem [thread:$0]  %s227, 65536, %s229, %s218, 1024, 1024, 64
        $region36: #{sonata_decoder.1} parent=31 // pred_fallthru
          _
        // Predicated region
        $region37: #{sonata_decoder.1} parent=31 // pred_check
          %p235 = pneg %p127
        $region38: #{sonata_decoder.1} parent=31 // pred_check_branch
          %237 = sbr.rel (%p235) target = $region40
        $region39: #{sonata_decoder.1} parent=31 // pred_region
          %s238 = sand.u32 %s18, 1
          %s239 = scalar_lea.sflag [#allocation6], %s238
          %s240 = sand.u32 %s117, 1
          %s241 = smul.addr %s240, 32
          %s242 = scalar_lea.vmem [#allocation5], %s241
          %s244 = ssub.s32 512, 512
          %245 = vsyncadd %s239, %s244
          %s246 = smul.addr %s18, 4
          %s247 = smul.addr %s246, 128
          %s248 = scalar_lea.hbm %s4, %s247
          %s250 = sshll.u32 %s242, 4
          %s251 = int_to_ptr.vmem [resolvable:$true] %s250
          %253 = dma.hbm_to_vmem [thread:$0]  %s248, 512, %s251, %s239
        $region40: #{sonata_decoder.1} parent=31 // pred_fallthru
          _
      $region32: #{sonata_decoder.1} parent=5 // pred_fallthru
        _
      %p254 = scmp.le.s32.totalorder 1, %s18
      %p255 = scmp.lt.s32.totalorder %s18, 5
      %p256 = pnand %p254, %p255
      %p257 = pneg %p256
      // Predicated region
      $region41: #{sonata_decoder.1} parent=5 // pred_check
        _
      $region42: #{sonata_decoder.1} parent=5 // pred_check_branch
        %259 = sbr.rel (%p256) target = $region44
      $region43: #{sonata_decoder.1} parent=5 // pred_region
        %s260 = ssub.s32 %s18, 1
        %s261 = sand.u32 %s94, 1
        %s262 = scalar_lea.sflag [#allocation4], %s261
        %s263 = sand.u32 %s94, 1
        %s264 = smul.addr %s263, 4096
        %s265 = scalar_lea.vmem [#allocation3], %s264
        // Predicated region
        $region45: #{sonata_decoder.1} parent=43 // pred_check
          %p266 = pneg %p107
        $region46: #{sonata_decoder.1} parent=43 // pred_check_branch
          %268 = sbr.rel (%p266) target = $region48
        $region47: #{sonata_decoder.1} parent=43 // pred_region
          %269 = dma.done %s262, 65536
        $region48: #{sonata_decoder.1} parent=43 // pred_fallthru
          _
        %s270 = sand.u32 %s23, 1
        %s271 = scalar_lea.sflag [#allocation6], %s270
        %s272 = sand.u32 %s120, 1
        %s273 = smul.addr %s272, 32
        %s274 = scalar_lea.vmem [#allocation5], %s273
        // Predicated region
        $region49: #{sonata_decoder.1} parent=43 // pred_check
          %p275 = pneg %p133
        $region50: #{sonata_decoder.1} parent=43 // pred_check_branch
          %277 = sbr.rel (%p275) target = $region52
        $region51: #{sonata_decoder.1} parent=43 // pred_region
          %278 = dma.done %s271, 512
        $region52: #{sonata_decoder.1} parent=43 // pred_fallthru
          _
        // Predicated region
        $region53: #{sonata_decoder.1} parent=43 // pred_check
          %p279 = pneg %p154
        $region54: #{sonata_decoder.1} parent=43 // pred_check_branch
          %281 = sbr.rel (%p279) target = $region56
        $region55: #{sonata_decoder.1} parent=43 // pred_region
          %282 = dma.done [#allocation6], 128
        $region56: #{sonata_decoder.1} parent=43 // pred_fallthru
          _
        %p283 = pneg %p39
        %p284 = pneg %p36
        %p285 = pneg %p60
        %p286 = pneg %p57
        %p287 = pneg %p81
        %p288 = pneg %p78
        %s289 = sand.u32 %s94, 1
        %s290 = scalar_lea.sflag [#allocation4], %s289
        %s291 = sand.u32 %s94, 1
        %s292 = smul.addr %s291, 4096
        %s293 = scalar_lea.vmem [#allocation3], %s292
        %p294 = pneg %p107
        %p295 = pneg %p104
        %s296 = sand.u32 %s23, 1
        %s297 = scalar_lea.sflag [#allocation6], %s296
        %s298 = sand.u32 %s120, 1
        %s299 = smul.addr %s298, 32
        %s300 = scalar_lea.vmem [#allocation5], %s299
        %p301 = pneg %p133
        %p302 = pneg %p130
        %p303 = pneg %p154
        %p304 = pneg %p151
        %p305 = pneg %p175
        %p306 = pneg %p172
        %p308 = scmp.eq.s32.totalorder %s23, 0
        // Predicated region
        $region57: #{sonata_decoder.1} parent=43 // pred_check
          %p309 = pneg %p308
        $region58: #{sonata_decoder.1} parent=43 // pred_check_branch
          %311 = sbr.rel (%p309) target = $region60
        $region59: #{sonata_decoder.1} parent=43 // pred_region
          %v312 = vld [vmem:[%s0] sm:$0xff]
          %v313 = vld [vmem:[%s0 + $0x8] sm:$0xff]
          %v314 = vld [vmem:[%s0 + $0x10] sm:$0xff]
          %v315 = vld [vmem:[%s0 + $0x18] sm:$0xff]
          %v316 = vld [vmem:[%s0 + $0x20] sm:$0xff]
          %v317 = vld [vmem:[%s0 + $0x28] sm:$0xff]
          %v318 = vld [vmem:[%s0 + $0x30] sm:$0xff]
          %v319 = vld [vmem:[%s0 + $0x38] sm:$0xff]
          %v320 = vld [vmem:[%s0 + $0x40] sm:$0xff]
          %v321 = vld [vmem:[%s0 + $0x48] sm:$0xff]
          %v322 = vld [vmem:[%s0 + $0x50] sm:$0xff]
          %v323 = vld [vmem:[%s0 + $0x58] sm:$0xff]
          %v324 = vld [vmem:[%s0 + $0x60] sm:$0xff]
          %v325 = vld [vmem:[%s0 + $0x68] sm:$0xff]
          %v326 = vld [vmem:[%s0 + $0x70] sm:$0xff]
          %v327 = vld [vmem:[%s0 + $0x78] sm:$0xff]
          %328 = vst [vmem:[#allocation2] sm:$0xff] %v312
          %329 = vst [vmem:[#allocation2 + $0x8] sm:$0xff] %v313
          %330 = vst [vmem:[#allocation2 + $0x10] sm:$0xff] %v314
          %331 = vst [vmem:[#allocation2 + $0x18] sm:$0xff] %v315
          %332 = vst [vmem:[#allocation2 + $0x20] sm:$0xff] %v316
          %333 = vst [vmem:[#allocation2 + $0x28] sm:$0xff] %v317
          %334 = vst [vmem:[#allocation2 + $0x30] sm:$0xff] %v318
          %335 = vst [vmem:[#allocation2 + $0x38] sm:$0xff] %v319
          %336 = vst [vmem:[#allocation2 + $0x40] sm:$0xff] %v320
          %337 = vst [vmem:[#allocation2 + $0x48] sm:$0xff] %v321
          %338 = vst [vmem:[#allocation2 + $0x50] sm:$0xff] %v322
          %339 = vst [vmem:[#allocation2 + $0x58] sm:$0xff] %v323
          %340 = vst [vmem:[#allocation2 + $0x60] sm:$0xff] %v324
          %341 = vst [vmem:[#allocation2 + $0x68] sm:$0xff] %v325
          %342 = vst [vmem:[#allocation2 + $0x70] sm:$0xff] %v326
          %343 = vst [vmem:[#allocation2 + $0x78] sm:$0xff] %v327
        $region60: #{sonata_decoder.1} parent=43 // pred_fallthru
          _
        %v344 = vld [vmem:[#allocation2] sm:$0xff]
        %v345 = vld [vmem:[#allocation2 + $0x8] sm:$0xff]
        %v346 = vld [vmem:[#allocation2 + $0x10] sm:$0xff]
        %v347 = vld [vmem:[#allocation2 + $0x18] sm:$0xff]
        %v348 = vld [vmem:[#allocation2 + $0x20] sm:$0xff]
        %v349 = vld [vmem:[#allocation2 + $0x28] sm:$0xff]
        %v350 = vld [vmem:[#allocation2 + $0x30] sm:$0xff]
        %v351 = vld [vmem:[#allocation2 + $0x38] sm:$0xff]
        %v352 = vld [vmem:[#allocation2 + $0x40] sm:$0xff]
        %v353 = vld [vmem:[#allocation2 + $0x48] sm:$0xff]
        %v354 = vld [vmem:[#allocation2 + $0x50] sm:$0xff]
        %v355 = vld [vmem:[#allocation2 + $0x58] sm:$0xff]
        %v356 = vld [vmem:[#allocation2 + $0x60] sm:$0xff]
        %v357 = vld [vmem:[#allocation2 + $0x68] sm:$0xff]
        %v358 = vld [vmem:[#allocation2 + $0x70] sm:$0xff]
        %v359 = vld [vmem:[#allocation2 + $0x78] sm:$0xff]
        %v360 = vld [vmem:[%s1] sm:$0xff]
        %v361 = vld [vmem:[%s1 + $0x8] sm:$0xff]
        %v362 = vld [vmem:[%s1 + $0x10] sm:$0xff]
        %v363 = vld [vmem:[%s1 + $0x18] sm:$0xff]
        %v364 = vld [vmem:[%s1 + $0x20] sm:$0xff]
        %v365 = vld [vmem:[%s1 + $0x28] sm:$0xff]
        %v366 = vld [vmem:[%s1 + $0x30] sm:$0xff]
        %v367 = vld [vmem:[%s1 + $0x38] sm:$0xff]
        %v368 = vld [vmem:[%s265] sm:$0xff]
        %v369 = vld [vmem:[%s265 + $0x8] sm:$0xff]
        %v370 = vld [vmem:[%s265 + $0x40] sm:$0xff]
        %v371 = vld [vmem:[%s265 + $0x48] sm:$0xff]
        %v372 = vld [vmem:[%s265 + $0x80] sm:$0xff]
        %v373 = vld [vmem:[%s265 + $0x88] sm:$0xff]
        %v374 = vld [vmem:[%s265 + $0xc0] sm:$0xff]
        %v375 = vld [vmem:[%s265 + $0xc8] sm:$0xff]
        %v376 = vld [vmem:[%s265 + $0x100] sm:$0xff]
        %v377 = vld [vmem:[%s265 + $0x108] sm:$0xff]
        %v378 = vld [vmem:[%s265 + $0x140] sm:$0xff]
        %v379 = vld [vmem:[%s265 + $0x148] sm:$0xff]
        %v380 = vld [vmem:[%s265 + $0x180] sm:$0xff]
        %v381 = vld [vmem:[%s265 + $0x188] sm:$0xff]
        %v382 = vld [vmem:[%s265 + $0x1c0] sm:$0xff]
        %v383 = vld [vmem:[%s265 + $0x1c8] sm:$0xff]
        %v384 = vld [vmem:[%s265 + $0x200] sm:$0xff]
        %v385 = vld [vmem:[%s265 + $0x208] sm:$0xff]
        %v386 = vld [vmem:[%s265 + $0x240] sm:$0xff]
        %v387 = vld [vmem:[%s265 + $0x248] sm:$0xff]
        %v388 = vld [vmem:[%s265 + $0x280] sm:$0xff]
        %v389 = vld [vmem:[%s265 + $0x288] sm:$0xff]
        %v390 = vld [vmem:[%s265 + $0x2c0] sm:$0xff]
        %v391 = vld [vmem:[%s265 + $0x2c8] sm:$0xff]
        %v392 = vld [vmem:[%s265 + $0x300] sm:$0xff]
        %v393 = vld [vmem:[%s265 + $0x308] sm:$0xff]
        %v394 = vld [vmem:[%s265 + $0x340] sm:$0xff]
        %v395 = vld [vmem:[%s265 + $0x348] sm:$0xff]
        %v396 = vld [vmem:[%s265 + $0x380] sm:$0xff]
        %v397 = vld [vmem:[%s265 + $0x388] sm:$0xff]
        %v398 = vld [vmem:[%s265 + $0x3c0] sm:$0xff]
        %v399 = vld [vmem:[%s265 + $0x3c8] sm:$0xff]
        %v400 = vld [vmem:[%s265 + $0x400] sm:$0xff]
        %v401 = vld [vmem:[%s265 + $0x408] sm:$0xff]
        %v402 = vld [vmem:[%s265 + $0x440] sm:$0xff]
        %v403 = vld [vmem:[%s265 + $0x448] sm:$0xff]
        %v404 = vld [vmem:[%s265 + $0x480] sm:$0xff]
        %v405 = vld [vmem:[%s265 + $0x488] sm:$0xff]
        %v406 = vld [vmem:[%s265 + $0x4c0] sm:$0xff]
        %v407 = vld [vmem:[%s265 + $0x4c8] sm:$0xff]
        %v408 = vld [vmem:[%s265 + $0x500] sm:$0xff]
        %v409 = vld [vmem:[%s265 + $0x508] sm:$0xff]
        %v410 = vld [vmem:[%s265 + $0x540] sm:$0xff]
        %v411 = vld [vmem:[%s265 + $0x548] sm:$0xff]
        %v412 = vld [vmem:[%s265 + $0x580] sm:$0xff]
        %v413 = vld [vmem:[%s265 + $0x588] sm:$0xff]
        %v414 = vld [vmem:[%s265 + $0x5c0] sm:$0xff]
        %v415 = vld [vmem:[%s265 + $0x5c8] sm:$0xff]
        %v416 = vld [vmem:[%s265 + $0x600] sm:$0xff]
        %v417 = vld [vmem:[%s265 + $0x608] sm:$0xff]
        %v418 = vld [vmem:[%s265 + $0x640] sm:$0xff]
        %v419 = vld [vmem:[%s265 + $0x648] sm:$0xff]
        %v420 = vld [vmem:[%s265 + $0x680] sm:$0xff]
        %v421 = vld [vmem:[%s265 + $0x688] sm:$0xff]
        %v422 = vld [vmem:[%s265 + $0x6c0] sm:$0xff]
        %v423 = vld [vmem:[%s265 + $0x6c8] sm:$0xff]
        %v424 = vld [vmem:[%s265 + $0x700] sm:$0xff]
        %v425 = vld [vmem:[%s265 + $0x708] sm:$0xff]
        %v426 = vld [vmem:[%s265 + $0x740] sm:$0xff]
        %v427 = vld [vmem:[%s265 + $0x748] sm:$0xff]
        %v428 = vld [vmem:[%s265 + $0x780] sm:$0xff]
        %v429 = vld [vmem:[%s265 + $0x788] sm:$0xff]
        %v430 = vld [vmem:[%s265 + $0x7c0] sm:$0xff]
        %v431 = vld [vmem:[%s265 + $0x7c8] sm:$0xff]
        %v432 = vld [vmem:[%s265 + $0x800] sm:$0xff]
        %v433 = vld [vmem:[%s265 + $0x808] sm:$0xff]
        %v434 = vld [vmem:[%s265 + $0x840] sm:$0xff]
        %v435 = vld [vmem:[%s265 + $0x848] sm:$0xff]
        %v436 = vld [vmem:[%s265 + $0x880] sm:$0xff]
        %v437 = vld [vmem:[%s265 + $0x888] sm:$0xff]
        %v438 = vld [vmem:[%s265 + $0x8c0] sm:$0xff]
        %v439 = vld [vmem:[%s265 + $0x8c8] sm:$0xff]
        %v440 = vld [vmem:[%s265 + $0x900] sm:$0xff]
        %v441 = vld [vmem:[%s265 + $0x908] sm:$0xff]
        %v442 = vld [vmem:[%s265 + $0x940] sm:$0xff]
        %v443 = vld [vmem:[%s265 + $0x948] sm:$0xff]
        %v444 = vld [vmem:[%s265 + $0x980] sm:$0xff]
        %v445 = vld [vmem:[%s265 + $0x988] sm:$0xff]
        %v446 = vld [vmem:[%s265 + $0x9c0] sm:$0xff]
        %v447 = vld [vmem:[%s265 + $0x9c8] sm:$0xff]
        %v448 = vld [vmem:[%s265 + $0xa00] sm:$0xff]
        %v449 = vld [vmem:[%s265 + $0xa08] sm:$0xff]
        %v450 = vld [vmem:[%s265 + $0xa40] sm:$0xff]
        %v451 = vld [vmem:[%s265 + $0xa48] sm:$0xff]
        %v452 = vld [vmem:[%s265 + $0xa80] sm:$0xff]
        %v453 = vld [vmem:[%s265 + $0xa88] sm:$0xff]
        %v454 = vld [vmem:[%s265 + $0xac0] sm:$0xff]
        %v455 = vld [vmem:[%s265 + $0xac8] sm:$0xff]
        %v456 = vld [vmem:[%s265 + $0xb00] sm:$0xff]
        %v457 = vld [vmem:[%s265 + $0xb08] sm:$0xff]
        %v458 = vld [vmem:[%s265 + $0xb40] sm:$0xff]
        %v459 = vld [vmem:[%s265 + $0xb48] sm:$0xff]
        %v460 = vld [vmem:[%s265 + $0xb80] sm:$0xff]
        %v461 = vld [vmem:[%s265 + $0xb88] sm:$0xff]
        %v462 = vld [vmem:[%s265 + $0xbc0] sm:$0xff]
        %v463 = vld [vmem:[%s265 + $0xbc8] sm:$0xff]
        %v464 = vld [vmem:[%s265 + $0xc00] sm:$0xff]
        %v465 = vld [vmem:[%s265 + $0xc08] sm:$0xff]
        %v466 = vld [vmem:[%s265 + $0xc40] sm:$0xff]
        %v467 = vld [vmem:[%s265 + $0xc48] sm:$0xff]
        %v468 = vld [vmem:[%s265 + $0xc80] sm:$0xff]
        %v469 = vld [vmem:[%s265 + $0xc88] sm:$0xff]
        %v470 = vld [vmem:[%s265 + $0xcc0] sm:$0xff]
        %v471 = vld [vmem:[%s265 + $0xcc8] sm:$0xff]
        %v472 = vld [vmem:[%s265 + $0xd00] sm:$0xff]
        %v473 = vld [vmem:[%s265 + $0xd08] sm:$0xff]
        %v474 = vld [vmem:[%s265 + $0xd40] sm:$0xff]
        %v475 = vld [vmem:[%s265 + $0xd48] sm:$0xff]
        %v476 = vld [vmem:[%s265 + $0xd80] sm:$0xff]
        %v477 = vld [vmem:[%s265 + $0xd88] sm:$0xff]
        %v478 = vld [vmem:[%s265 + $0xdc0] sm:$0xff]
        %v479 = vld [vmem:[%s265 + $0xdc8] sm:$0xff]
        %v480 = vld [vmem:[%s265 + $0xe00] sm:$0xff]
        %v481 = vld [vmem:[%s265 + $0xe08] sm:$0xff]
        %v482 = vld [vmem:[%s265 + $0xe40] sm:$0xff]
        %v483 = vld [vmem:[%s265 + $0xe48] sm:$0xff]
        %v484 = vld [vmem:[%s265 + $0xe80] sm:$0xff]
        %v485 = vld [vmem:[%s265 + $0xe88] sm:$0xff]
        %v486 = vld [vmem:[%s265 + $0xec0] sm:$0xff]
        %v487 = vld [vmem:[%s265 + $0xec8] sm:$0xff]
        %v488 = vld [vmem:[%s265 + $0xf00] sm:$0xff]
        %v489 = vld [vmem:[%s265 + $0xf08] sm:$0xff]
        %v490 = vld [vmem:[%s265 + $0xf40] sm:$0xff]
        %v491 = vld [vmem:[%s265 + $0xf48] sm:$0xff]
        %v492 = vld [vmem:[%s265 + $0xf80] sm:$0xff]
        %v493 = vld [vmem:[%s265 + $0xf88] sm:$0xff]
        %v494 = vld [vmem:[%s265 + $0xfc0] sm:$0xff]
        %v495 = vld [vmem:[%s265 + $0xfc8] sm:$0xff]
        %v496 = vld [vmem:[%s265 + $0x10] sm:$0xff]
        %v497 = vld [vmem:[%s265 + $0x18] sm:$0xff]
        %v498 = vld [vmem:[%s265 + $0x50] sm:$0xff]
        %v499 = vld [vmem:[%s265 + $0x58] sm:$0xff]
        %v500 = vld [vmem:[%s265 + $0x90] sm:$0xff]
        %v501 = vld [vmem:[%s265 + $0x98] sm:$0xff]
        %v502 = vld [vmem:[%s265 + $0xd0] sm:$0xff]
        %v503 = vld [vmem:[%s265 + $0xd8] sm:$0xff]
        %v504 = vld [vmem:[%s265 + $0x110] sm:$0xff]
        %v505 = vld [vmem:[%s265 + $0x118] sm:$0xff]
        %v506 = vld [vmem:[%s265 + $0x150] sm:$0xff]
        %v507 = vld [vmem:[%s265 + $0x158] sm:$0xff]
        %v508 = vld [vmem:[%s265 + $0x190] sm:$0xff]
        %v509 = vld [vmem:[%s265 + $0x198] sm:$0xff]
        %v510 = vld [vmem:[%s265 + $0x1d0] sm:$0xff]
        %v511 = vld [vmem:[%s265 + $0x1d8] sm:$0xff]
        %v512 = vld [vmem:[%s265 + $0x210] sm:$0xff]
        %v513 = vld [vmem:[%s265 + $0x218] sm:$0xff]
        %v514 = vld [vmem:[%s265 + $0x250] sm:$0xff]
        %v515 = vld [vmem:[%s265 + $0x258] sm:$0xff]
        %v516 = vld [vmem:[%s265 + $0x290] sm:$0xff]
        %v517 = vld [vmem:[%s265 + $0x298] sm:$0xff]
        %v518 = vld [vmem:[%s265 + $0x2d0] sm:$0xff]
        %v519 = vld [vmem:[%s265 + $0x2d8] sm:$0xff]
        %v520 = vld [vmem:[%s265 + $0x310] sm:$0xff]
        %v521 = vld [vmem:[%s265 + $0x318] sm:$0xff]
        %v522 = vld [vmem:[%s265 + $0x350] sm:$0xff]
        %v523 = vld [vmem:[%s265 + $0x358] sm:$0xff]
        %v524 = vld [vmem:[%s265 + $0x390] sm:$0xff]
        %v525 = vld [vmem:[%s265 + $0x398] sm:$0xff]
        %v526 = vld [vmem:[%s265 + $0x3d0] sm:$0xff]
        %v527 = vld [vmem:[%s265 + $0x3d8] sm:$0xff]
        %v528 = vld [vmem:[%s265 + $0x410] sm:$0xff]
        %v529 = vld [vmem:[%s265 + $0x418] sm:$0xff]
        %v530 = vld [vmem:[%s265 + $0x450] sm:$0xff]
        %v531 = vld [vmem:[%s265 + $0x458] sm:$0xff]
        %v532 = vld [vmem:[%s265 + $0x490] sm:$0xff]
        %v533 = vld [vmem:[%s265 + $0x498] sm:$0xff]
        %v534 = vld [vmem:[%s265 + $0x4d0] sm:$0xff]
        %v535 = vld [vmem:[%s265 + $0x4d8] sm:$0xff]
        %v536 = vld [vmem:[%s265 + $0x510] sm:$0xff]
        %v537 = vld [vmem:[%s265 + $0x518] sm:$0xff]
        %v538 = vld [vmem:[%s265 + $0x550] sm:$0xff]
        %v539 = vld [vmem:[%s265 + $0x558] sm:$0xff]
        %v540 = vld [vmem:[%s265 + $0x590] sm:$0xff]
        %v541 = vld [vmem:[%s265 + $0x598] sm:$0xff]
        %v542 = vld [vmem:[%s265 + $0x5d0] sm:$0xff]
        %v543 = vld [vmem:[%s265 + $0x5d8] sm:$0xff]
        %v544 = vld [vmem:[%s265 + $0x610] sm:$0xff]
        %v545 = vld [vmem:[%s265 + $0x618] sm:$0xff]
        %v546 = vld [vmem:[%s265 + $0x650] sm:$0xff]
        %v547 = vld [vmem:[%s265 + $0x658] sm:$0xff]
        %v548 = vld [vmem:[%s265 + $0x690] sm:$0xff]
        %v549 = vld [vmem:[%s265 + $0x698] sm:$0xff]
        %v550 = vld [vmem:[%s265 + $0x6d0] sm:$0xff]
        %v551 = vld [vmem:[%s265 + $0x6d8] sm:$0xff]
        %v552 = vld [vmem:[%s265 + $0x710] sm:$0xff]
        %v553 = vld [vmem:[%s265 + $0x718] sm:$0xff]
        %v554 = vld [vmem:[%s265 + $0x750] sm:$0xff]
        %v555 = vld [vmem:[%s265 + $0x758] sm:$0xff]
        %v556 = vld [vmem:[%s265 + $0x790] sm:$0xff]
        %v557 = vld [vmem:[%s265 + $0x798] sm:$0xff]
        %v558 = vld [vmem:[%s265 + $0x7d0] sm:$0xff]
        %v559 = vld [vmem:[%s265 + $0x7d8] sm:$0xff]
        %v560 = vld [vmem:[%s265 + $0x810] sm:$0xff]
        %v561 = vld [vmem:[%s265 + $0x818] sm:$0xff]
        %v562 = vld [vmem:[%s265 + $0x850] sm:$0xff]
        %v563 = vld [vmem:[%s265 + $0x858] sm:$0xff]
        %v564 = vld [vmem:[%s265 + $0x890] sm:$0xff]
        %v565 = vld [vmem:[%s265 + $0x898] sm:$0xff]
        %v566 = vld [vmem:[%s265 + $0x8d0] sm:$0xff]
        %v567 = vld [vmem:[%s265 + $0x8d8] sm:$0xff]
        %v568 = vld [vmem:[%s265 + $0x910] sm:$0xff]
        %v569 = vld [vmem:[%s265 + $0x918] sm:$0xff]
        %v570 = vld [vmem:[%s265 + $0x950] sm:$0xff]
        %v571 = vld [vmem:[%s265 + $0x958] sm:$0xff]
        %v572 = vld [vmem:[%s265 + $0x990] sm:$0xff]
        %v573 = vld [vmem:[%s265 + $0x998] sm:$0xff]
        %v574 = vld [vmem:[%s265 + $0x9d0] sm:$0xff]
        %v575 = vld [vmem:[%s265 + $0x9d8] sm:$0xff]
        %v576 = vld [vmem:[%s265 + $0xa10] sm:$0xff]
        %v577 = vld [vmem:[%s265 + $0xa18] sm:$0xff]
        %v578 = vld [vmem:[%s265 + $0xa50] sm:$0xff]
        %v579 = vld [vmem:[%s265 + $0xa58] sm:$0xff]
        %v580 = vld [vmem:[%s265 + $0xa90] sm:$0xff]
        %v581 = vld [vmem:[%s265 + $0xa98] sm:$0xff]
        %v582 = vld [vmem:[%s265 + $0xad0] sm:$0xff]
        %v583 = vld [vmem:[%s265 + $0xad8] sm:$0xff]
        %v584 = vld [vmem:[%s265 + $0xb10] sm:$0xff]
        %v585 = vld [vmem:[%s265 + $0xb18] sm:$0xff]
        %v586 = vld [vmem:[%s265 + $0xb50] sm:$0xff]
        %v587 = vld [vmem:[%s265 + $0xb58] sm:$0xff]
        %v588 = vld [vmem:[%s265 + $0xb90] sm:$0xff]
        %v589 = vld [vmem:[%s265 + $0xb98] sm:$0xff]
        %v590 = vld [vmem:[%s265 + $0xbd0] sm:$0xff]
        %v591 = vld [vmem:[%s265 + $0xbd8] sm:$0xff]
        %v592 = vld [vmem:[%s265 + $0xc10] sm:$0xff]
        %v593 = vld [vmem:[%s265 + $0xc18] sm:$0xff]
        %v594 = vld [vmem:[%s265 + $0xc50] sm:$0xff]
        %v595 = vld [vmem:[%s265 + $0xc58] sm:$0xff]
        %v596 = vld [vmem:[%s265 + $0xc90] sm:$0xff]
        %v597 = vld [vmem:[%s265 + $0xc98] sm:$0xff]
        %v598 = vld [vmem:[%s265 + $0xcd0] sm:$0xff]
        %v599 = vld [vmem:[%s265 + $0xcd8] sm:$0xff]
        %v600 = vld [vmem:[%s265 + $0xd10] sm:$0xff]
        %v601 = vld [vmem:[%s265 + $0xd18] sm:$0xff]
        %v602 = vld [vmem:[%s265 + $0xd50] sm:$0xff]
        %v603 = vld [vmem:[%s265 + $0xd58] sm:$0xff]
        %v604 = vld [vmem:[%s265 + $0xd90] sm:$0xff]
        %v605 = vld [vmem:[%s265 + $0xd98] sm:$0xff]
        %v606 = vld [vmem:[%s265 + $0xdd0] sm:$0xff]
        %v607 = vld [vmem:[%s265 + $0xdd8] sm:$0xff]
        %v608 = vld [vmem:[%s265 + $0xe10] sm:$0xff]
        %v609 = vld [vmem:[%s265 + $0xe18] sm:$0xff]
        %v610 = vld [vmem:[%s265 + $0xe50] sm:$0xff]
        %v611 = vld [vmem:[%s265 + $0xe58] sm:$0xff]
        %v612 = vld [vmem:[%s265 + $0xe90] sm:$0xff]
        %v613 = vld [vmem:[%s265 + $0xe98] sm:$0xff]
        %v614 = vld [vmem:[%s265 + $0xed0] sm:$0xff]
        %v615 = vld [vmem:[%s265 + $0xed8] sm:$0xff]
        %v616 = vld [vmem:[%s265 + $0xf10] sm:$0xff]
        %v617 = vld [vmem:[%s265 + $0xf18] sm:$0xff]
        %v618 = vld [vmem:[%s265 + $0xf50] sm:$0xff]
        %v619 = vld [vmem:[%s265 + $0xf58] sm:$0xff]
        %v620 = vld [vmem:[%s265 + $0xf90] sm:$0xff]
        %v621 = vld [vmem:[%s265 + $0xf98] sm:$0xff]
        %v622 = vld [vmem:[%s265 + $0xfd0] sm:$0xff]
        %v623 = vld [vmem:[%s265 + $0xfd8] sm:$0xff]
        %v624 = vld [vmem:[%s265 + $0x20] sm:$0xff]
        %v625 = vld [vmem:[%s265 + $0x28] sm:$0xff]
        %v626 = vld [vmem:[%s265 + $0x60] sm:$0xff]
        %v627 = vld [vmem:[%s265 + $0x68] sm:$0xff]
        %v628 = vld [vmem:[%s265 + $0xa0] sm:$0xff]
        %v629 = vld [vmem:[%s265 + $0xa8] sm:$0xff]
        %v630 = vld [vmem:[%s265 + $0xe0] sm:$0xff]
        %v631 = vld [vmem:[%s265 + $0xe8] sm:$0xff]
        %v632 = vld [vmem:[%s265 + $0x120] sm:$0xff]
        %v633 = vld [vmem:[%s265 + $0x128] sm:$0xff]
        %v634 = vld [vmem:[%s265 + $0x160] sm:$0xff]
        %v635 = vld [vmem:[%s265 + $0x168] sm:$0xff]
        %v636 = vld [vmem:[%s265 + $0x1a0] sm:$0xff]
        %v637 = vld [vmem:[%s265 + $0x1a8] sm:$0xff]
        %v638 = vld [vmem:[%s265 + $0x1e0] sm:$0xff]
        %v639 = vld [vmem:[%s265 + $0x1e8] sm:$0xff]
        %v640 = vld [vmem:[%s265 + $0x220] sm:$0xff]
        %v641 = vld [vmem:[%s265 + $0x228] sm:$0xff]
        %v642 = vld [vmem:[%s265 + $0x260] sm:$0xff]
        %v643 = vld [vmem:[%s265 + $0x268] sm:$0xff]
        %v644 = vld [vmem:[%s265 + $0x2a0] sm:$0xff]
        %v645 = vld [vmem:[%s265 + $0x2a8] sm:$0xff]
        %v646 = vld [vmem:[%s265 + $0x2e0] sm:$0xff]
        %v647 = vld [vmem:[%s265 + $0x2e8] sm:$0xff]
        %v648 = vld [vmem:[%s265 + $0x320] sm:$0xff]
        %v649 = vld [vmem:[%s265 + $0x328] sm:$0xff]
        %v650 = vld [vmem:[%s265 + $0x360] sm:$0xff]
        %v651 = vld [vmem:[%s265 + $0x368] sm:$0xff]
        %v652 = vld [vmem:[%s265 + $0x3a0] sm:$0xff]
        %v653 = vld [vmem:[%s265 + $0x3a8] sm:$0xff]
        %v654 = vld [vmem:[%s265 + $0x3e0] sm:$0xff]
        %v655 = vld [vmem:[%s265 + $0x3e8] sm:$0xff]
        %v656 = vld [vmem:[%s265 + $0x420] sm:$0xff]
        %v657 = vld [vmem:[%s265 + $0x428] sm:$0xff]
        %v658 = vld [vmem:[%s265 + $0x460] sm:$0xff]
        %v659 = vld [vmem:[%s265 + $0x468] sm:$0xff]
        %v660 = vld [vmem:[%s265 + $0x4a0] sm:$0xff]
        %v661 = vld [vmem:[%s265 + $0x4a8] sm:$0xff]
        %v662 = vld [vmem:[%s265 + $0x4e0] sm:$0xff]
        %v663 = vld [vmem:[%s265 + $0x4e8] sm:$0xff]
        %v664 = vld [vmem:[%s265 + $0x520] sm:$0xff]
        %v665 = vld [vmem:[%s265 + $0x528] sm:$0xff]
        %v666 = vld [vmem:[%s265 + $0x560] sm:$0xff]
        %v667 = vld [vmem:[%s265 + $0x568] sm:$0xff]
        %v668 = vld [vmem:[%s265 + $0x5a0] sm:$0xff]
        %v669 = vld [vmem:[%s265 + $0x5a8] sm:$0xff]
        %v670 = vld [vmem:[%s265 + $0x5e0] sm:$0xff]
        %v671 = vld [vmem:[%s265 + $0x5e8] sm:$0xff]
        %v672 = vld [vmem:[%s265 + $0x620] sm:$0xff]
        %v673 = vld [vmem:[%s265 + $0x628] sm:$0xff]
        %v674 = vld [vmem:[%s265 + $0x660] sm:$0xff]
        %v675 = vld [vmem:[%s265 + $0x668] sm:$0xff]
        %v676 = vld [vmem:[%s265 + $0x6a0] sm:$0xff]
        %v677 = vld [vmem:[%s265 + $0x6a8] sm:$0xff]
        %v678 = vld [vmem:[%s265 + $0x6e0] sm:$0xff]
        %v679 = vld [vmem:[%s265 + $0x6e8] sm:$0xff]
        %v680 = vld [vmem:[%s265 + $0x720] sm:$0xff]
        %v681 = vld [vmem:[%s265 + $0x728] sm:$0xff]
        %v682 = vld [vmem:[%s265 + $0x760] sm:$0xff]
        %v683 = vld [vmem:[%s265 + $0x768] sm:$0xff]
        %v684 = vld [vmem:[%s265 + $0x7a0] sm:$0xff]
        %v685 = vld [vmem:[%s265 + $0x7a8] sm:$0xff]
        %v686 = vld [vmem:[%s265 + $0x7e0] sm:$0xff]
        %v687 = vld [vmem:[%s265 + $0x7e8] sm:$0xff]
        %v688 = vld [vmem:[%s265 + $0x820] sm:$0xff]
        %v689 = vld [vmem:[%s265 + $0x828] sm:$0xff]
        %v690 = vld [vmem:[%s265 + $0x860] sm:$0xff]
        %v691 = vld [vmem:[%s265 + $0x868] sm:$0xff]
        %v692 = vld [vmem:[%s265 + $0x8a0] sm:$0xff]
        %v693 = vld [vmem:[%s265 + $0x8a8] sm:$0xff]
        %v694 = vld [vmem:[%s265 + $0x8e0] sm:$0xff]
        %v695 = vld [vmem:[%s265 + $0x8e8] sm:$0xff]
        %v696 = vld [vmem:[%s265 + $0x920] sm:$0xff]
        %v697 = vld [vmem:[%s265 + $0x928] sm:$0xff]
        %v698 = vld [vmem:[%s265 + $0x960] sm:$0xff]
        %v699 = vld [vmem:[%s265 + $0x968] sm:$0xff]
        %v700 = vld [vmem:[%s265 + $0x9a0] sm:$0xff]
        %v701 = vld [vmem:[%s265 + $0x9a8] sm:$0xff]
        %v702 = vld [vmem:[%s265 + $0x9e0] sm:$0xff]
        %v703 = vld [vmem:[%s265 + $0x9e8] sm:$0xff]
        %v704 = vld [vmem:[%s265 + $0xa20] sm:$0xff]
        %v705 = vld [vmem:[%s265 + $0xa28] sm:$0xff]
        %v706 = vld [vmem:[%s265 + $0xa60] sm:$0xff]
        %v707 = vld [vmem:[%s265 + $0xa68] sm:$0xff]
        %v708 = vld [vmem:[%s265 + $0xaa0] sm:$0xff]
        %v709 = vld [vmem:[%s265 + $0xaa8] sm:$0xff]
        %v710 = vld [vmem:[%s265 + $0xae0] sm:$0xff]
        %v711 = vld [vmem:[%s265 + $0xae8] sm:$0xff]
        %v712 = vld [vmem:[%s265 + $0xb20] sm:$0xff]
        %v713 = vld [vmem:[%s265 + $0xb28] sm:$0xff]
        %v714 = vld [vmem:[%s265 + $0xb60] sm:$0xff]
        %v715 = vld [vmem:[%s265 + $0xb68] sm:$0xff]
        %v716 = vld [vmem:[%s265 + $0xba0] sm:$0xff]
        %v717 = vld [vmem:[%s265 + $0xba8] sm:$0xff]
        %v718 = vld [vmem:[%s265 + $0xbe0] sm:$0xff]
        %v719 = vld [vmem:[%s265 + $0xbe8] sm:$0xff]
        %v720 = vld [vmem:[%s265 + $0xc20] sm:$0xff]
        %v721 = vld [vmem:[%s265 + $0xc28] sm:$0xff]
        %v722 = vld [vmem:[%s265 + $0xc60] sm:$0xff]
        %v723 = vld [vmem:[%s265 + $0xc68] sm:$0xff]
        %v724 = vld [vmem:[%s265 + $0xca0] sm:$0xff]
        %v725 = vld [vmem:[%s265 + $0xca8] sm:$0xff]
        %v726 = vld [vmem:[%s265 + $0xce0] sm:$0xff]
        %v727 = vld [vmem:[%s265 + $0xce8] sm:$0xff]
        %v728 = vld [vmem:[%s265 + $0xd20] sm:$0xff]
        %v729 = vld [vmem:[%s265 + $0xd28] sm:$0xff]
        %v730 = vld [vmem:[%s265 + $0xd60] sm:$0xff]
        %v731 = vld [vmem:[%s265 + $0xd68] sm:$0xff]
        %v732 = vld [vmem:[%s265 + $0xda0] sm:$0xff]
        %v733 = vld [vmem:[%s265 + $0xda8] sm:$0xff]
        %v734 = vld [vmem:[%s265 + $0xde0] sm:$0xff]
        %v735 = vld [vmem:[%s265 + $0xde8] sm:$0xff]
        %v736 = vld [vmem:[%s265 + $0xe20] sm:$0xff]
        %v737 = vld [vmem:[%s265 + $0xe28] sm:$0xff]
        %v738 = vld [vmem:[%s265 + $0xe60] sm:$0xff]
        %v739 = vld [vmem:[%s265 + $0xe68] sm:$0xff]
        %v740 = vld [vmem:[%s265 + $0xea0] sm:$0xff]
        %v741 = vld [vmem:[%s265 + $0xea8] sm:$0xff]
        %v742 = vld [vmem:[%s265 + $0xee0] sm:$0xff]
        %v743 = vld [vmem:[%s265 + $0xee8] sm:$0xff]
        %v744 = vld [vmem:[%s265 + $0xf20] sm:$0xff]
        %v745 = vld [vmem:[%s265 + $0xf28] sm:$0xff]
        %v746 = vld [vmem:[%s265 + $0xf60] sm:$0xff]
        %v747 = vld [vmem:[%s265 + $0xf68] sm:$0xff]
        %v748 = vld [vmem:[%s265 + $0xfa0] sm:$0xff]
        %v749 = vld [vmem:[%s265 + $0xfa8] sm:$0xff]
        %v750 = vld [vmem:[%s265 + $0xfe0] sm:$0xff]
        %v751 = vld [vmem:[%s265 + $0xfe8] sm:$0xff]
        %v752 = vld [vmem:[%s265 + $0x30] sm:$0xff]
        %v753 = vld [vmem:[%s265 + $0x38] sm:$0xff]
        %v754 = vld [vmem:[%s265 + $0x70] sm:$0xff]
        %v755 = vld [vmem:[%s265 + $0x78] sm:$0xff]
        %v756 = vld [vmem:[%s265 + $0xb0] sm:$0xff]
        %v757 = vld [vmem:[%s265 + $0xb8] sm:$0xff]
        %v758 = vld [vmem:[%s265 + $0xf0] sm:$0xff]
        %v759 = vld [vmem:[%s265 + $0xf8] sm:$0xff]
        %v760 = vld [vmem:[%s265 + $0x130] sm:$0xff]
        %v761 = vld [vmem:[%s265 + $0x138] sm:$0xff]
        %v762 = vld [vmem:[%s265 + $0x170] sm:$0xff]
        %v763 = vld [vmem:[%s265 + $0x178] sm:$0xff]
        %v764 = vld [vmem:[%s265 + $0x1b0] sm:$0xff]
        %v765 = vld [vmem:[%s265 + $0x1b8] sm:$0xff]
        %v766 = vld [vmem:[%s265 + $0x1f0] sm:$0xff]
        %v767 = vld [vmem:[%s265 + $0x1f8] sm:$0xff]
        %v768 = vld [vmem:[%s265 + $0x230] sm:$0xff]
        %v769 = vld [vmem:[%s265 + $0x238] sm:$0xff]
        %v770 = vld [vmem:[%s265 + $0x270] sm:$0xff]
        %v771 = vld [vmem:[%s265 + $0x278] sm:$0xff]
        %v772 = vld [vmem:[%s265 + $0x2b0] sm:$0xff]
        %v773 = vld [vmem:[%s265 + $0x2b8] sm:$0xff]
        %v774 = vld [vmem:[%s265 + $0x2f0] sm:$0xff]
        %v775 = vld [vmem:[%s265 + $0x2f8] sm:$0xff]
        %v776 = vld [vmem:[%s265 + $0x330] sm:$0xff]
        %v777 = vld [vmem:[%s265 + $0x338] sm:$0xff]
        %v778 = vld [vmem:[%s265 + $0x370] sm:$0xff]
        %v779 = vld [vmem:[%s265 + $0x378] sm:$0xff]
        %v780 = vld [vmem:[%s265 + $0x3b0] sm:$0xff]
        %v781 = vld [vmem:[%s265 + $0x3b8] sm:$0xff]
        %v782 = vld [vmem:[%s265 + $0x3f0] sm:$0xff]
        %v783 = vld [vmem:[%s265 + $0x3f8] sm:$0xff]
        %v784 = vld [vmem:[%s265 + $0x430] sm:$0xff]
        %v785 = vld [vmem:[%s265 + $0x438] sm:$0xff]
        %v786 = vld [vmem:[%s265 + $0x470] sm:$0xff]
        %v787 = vld [vmem:[%s265 + $0x478] sm:$0xff]
        %v788 = vld [vmem:[%s265 + $0x4b0] sm:$0xff]
        %v789 = vld [vmem:[%s265 + $0x4b8] sm:$0xff]
        %v790 = vld [vmem:[%s265 + $0x4f0] sm:$0xff]
        %v791 = vld [vmem:[%s265 + $0x4f8] sm:$0xff]
        %v792 = vld [vmem:[%s265 + $0x530] sm:$0xff]
        %v793 = vld [vmem:[%s265 + $0x538] sm:$0xff]
        %v794 = vld [vmem:[%s265 + $0x570] sm:$0xff]
        %v795 = vld [vmem:[%s265 + $0x578] sm:$0xff]
        %v796 = vld [vmem:[%s265 + $0x5b0] sm:$0xff]
        %v797 = vld [vmem:[%s265 + $0x5b8] sm:$0xff]
        %v798 = vld [vmem:[%s265 + $0x5f0] sm:$0xff]
        %v799 = vld [vmem:[%s265 + $0x5f8] sm:$0xff]
        %v800 = vld [vmem:[%s265 + $0x630] sm:$0xff]
        %v801 = vld [vmem:[%s265 + $0x638] sm:$0xff]
        %v802 = vld [vmem:[%s265 + $0x670] sm:$0xff]
        %v803 = vld [vmem:[%s265 + $0x678] sm:$0xff]
        %v804 = vld [vmem:[%s265 + $0x6b0] sm:$0xff]
        %v805 = vld [vmem:[%s265 + $0x6b8] sm:$0xff]
        %v806 = vld [vmem:[%s265 + $0x6f0] sm:$0xff]
        %v807 = vld [vmem:[%s265 + $0x6f8] sm:$0xff]
        %v808 = vld [vmem:[%s265 + $0x730] sm:$0xff]
        %v809 = vld [vmem:[%s265 + $0x738] sm:$0xff]
        %v810 = vld [vmem:[%s265 + $0x770] sm:$0xff]
        %v811 = vld [vmem:[%s265 + $0x778] sm:$0xff]
        %v812 = vld [vmem:[%s265 + $0x7b0] sm:$0xff]
        %v813 = vld [vmem:[%s265 + $0x7b8] sm:$0xff]
        %v814 = vld [vmem:[%s265 + $0x7f0] sm:$0xff]
        %v815 = vld [vmem:[%s265 + $0x7f8] sm:$0xff]
        %v816 = vld [vmem:[%s265 + $0x830] sm:$0xff]
        %v817 = vld [vmem:[%s265 + $0x838] sm:$0xff]
        %v818 = vld [vmem:[%s265 + $0x870] sm:$0xff]
        %v819 = vld [vmem:[%s265 + $0x878] sm:$0xff]
        %v820 = vld [vmem:[%s265 + $0x8b0] sm:$0xff]
        %v821 = vld [vmem:[%s265 + $0x8b8] sm:$0xff]
        %v822 = vld [vmem:[%s265 + $0x8f0] sm:$0xff]
        %v823 = vld [vmem:[%s265 + $0x8f8] sm:$0xff]
        %v824 = vld [vmem:[%s265 + $0x930] sm:$0xff]
        %v825 = vld [vmem:[%s265 + $0x938] sm:$0xff]
        %v826 = vld [vmem:[%s265 + $0x970] sm:$0xff]
        %v827 = vld [vmem:[%s265 + $0x978] sm:$0xff]
        %v828 = vld [vmem:[%s265 + $0x9b0] sm:$0xff]
        %v829 = vld [vmem:[%s265 + $0x9b8] sm:$0xff]
        %v830 = vld [vmem:[%s265 + $0x9f0] sm:$0xff]
        %v831 = vld [vmem:[%s265 + $0x9f8] sm:$0xff]
        %v832 = vld [vmem:[%s265 + $0xa30] sm:$0xff]
        %v833 = vld [vmem:[%s265 + $0xa38] sm:$0xff]
        %v834 = vld [vmem:[%s265 + $0xa70] sm:$0xff]
        %v835 = vld [vmem:[%s265 + $0xa78] sm:$0xff]
        %v836 = vld [vmem:[%s265 + $0xab0] sm:$0xff]
        %v837 = vld [vmem:[%s265 + $0xab8] sm:$0xff]
        %v838 = vld [vmem:[%s265 + $0xaf0] sm:$0xff]
        %v839 = vld [vmem:[%s265 + $0xaf8] sm:$0xff]
        %v840 = vld [vmem:[%s265 + $0xb30] sm:$0xff]
        %v841 = vld [vmem:[%s265 + $0xb38] sm:$0xff]
        %v842 = vld [vmem:[%s265 + $0xb70] sm:$0xff]
        %v843 = vld [vmem:[%s265 + $0xb78] sm:$0xff]
        %v844 = vld [vmem:[%s265 + $0xbb0] sm:$0xff]
        %v845 = vld [vmem:[%s265 + $0xbb8] sm:$0xff]
        %v846 = vld [vmem:[%s265 + $0xbf0] sm:$0xff]
        %v847 = vld [vmem:[%s265 + $0xbf8] sm:$0xff]
        %v848 = vld [vmem:[%s265 + $0xc30] sm:$0xff]
        %v849 = vld [vmem:[%s265 + $0xc38] sm:$0xff]
        %v850 = vld [vmem:[%s265 + $0xc70] sm:$0xff]
        %v851 = vld [vmem:[%s265 + $0xc78] sm:$0xff]
        %v852 = vld [vmem:[%s265 + $0xcb0] sm:$0xff]
        %v853 = vld [vmem:[%s265 + $0xcb8] sm:$0xff]
        %v854 = vld [vmem:[%s265 + $0xcf0] sm:$0xff]
        %v855 = vld [vmem:[%s265 + $0xcf8] sm:$0xff]
        %v856 = vld [vmem:[%s265 + $0xd30] sm:$0xff]
        %v857 = vld [vmem:[%s265 + $0xd38] sm:$0xff]
        %v858 = vld [vmem:[%s265 + $0xd70] sm:$0xff]
        %v859 = vld [vmem:[%s265 + $0xd78] sm:$0xff]
        %v860 = vld [vmem:[%s265 + $0xdb0] sm:$0xff]
        %v861 = vld [vmem:[%s265 + $0xdb8] sm:$0xff]
        %v862 = vld [vmem:[%s265 + $0xdf0] sm:$0xff]
        %v863 = vld [vmem:[%s265 + $0xdf8] sm:$0xff]
        %v864 = vld [vmem:[%s265 + $0xe30] sm:$0xff]
        %v865 = vld [vmem:[%s265 + $0xe38] sm:$0xff]
        %v866 = vld [vmem:[%s265 + $0xe70] sm:$0xff]
        %v867 = vld [vmem:[%s265 + $0xe78] sm:$0xff]
        %v868 = vld [vmem:[%s265 + $0xeb0] sm:$0xff]
        %v869 = vld [vmem:[%s265 + $0xeb8] sm:$0xff]
        %v870 = vld [vmem:[%s265 + $0xef0] sm:$0xff]
        %v871 = vld [vmem:[%s265 + $0xef8] sm:$0xff]
        %v872 = vld [vmem:[%s265 + $0xf30] sm:$0xff]
        %v873 = vld [vmem:[%s265 + $0xf38] sm:$0xff]
        %v874 = vld [vmem:[%s265 + $0xf70] sm:$0xff]
        %v875 = vld [vmem:[%s265 + $0xf78] sm:$0xff]
        %v876 = vld [vmem:[%s265 + $0xfb0] sm:$0xff]
        %v877 = vld [vmem:[%s265 + $0xfb8] sm:$0xff]
        %v878 = vld [vmem:[%s265 + $0xff0] sm:$0xff]
        %v879 = vld [vmem:[%s265 + $0xff8] sm:$0xff]
        %v880 = vld [vmem:[%s274] sm:$0xff]
        %v881 = vld [vmem:[%s274 + $0x8] sm:$0xff]
        %v882 = vld [vmem:[%s274 + $0x10] sm:$0xff]
        %v883 = vld [vmem:[%s274 + $0x18] sm:$0xff]
        %v884 = vpack.c.bf16 %v348, %v344
        %v885 = vpack.c.bf16 %v349, %v345
        %v886 = vpack.c.bf16 %v350, %v346
        %v887 = vpack.c.bf16 %v351, %v347
        %v888 = vpack.c.bf16 %v356, %v352
        %v889 = vpack.c.bf16 %v357, %v353
        %v890 = vpack.c.bf16 %v358, %v354
        %v891 = vpack.c.bf16 %v359, %v355
        %v892 = vld [vmem:[%s2] sm:$0xff]
        %v893 = vld [vmem:[%s2 + $0x8] sm:$0xff]
        %v894 = vld [vmem:[%s2 + $0x10] sm:$0xff]
        %v895 = vld [vmem:[%s2 + $0x18] sm:$0xff]
        %896 = vmatprep.subr.bf16.mxu0 0
        %897 = vmatpush1.bf16.xpose.msra.mxu0 0
        %898 = vmatprep.subr.bf16.mxu0 0
        %899 = vmatpush1.bf16.xpose.msra.mxu0 0
        %900 = vmatprep.subr.bf16.mxu0 0
        %901 = vmatpush1.bf16.xpose.msra.mxu0 0
        %902 = vmatprep.subr.bf16.mxu0 0
        %903 = vmatpush1.bf16.xpose.msra.mxu0 0
        %904 = vmatprep.subr.bf16.mxu0 0
        %905 = vmatpush1.bf16.xpose.msra.mxu0 0
        %906 = vmatprep.subr.bf16.mxu0 0
        %907 = vmatpush1.bf16.xpose.msra.mxu0 0
        %908 = vmatprep.subr.bf16.mxu0 %v889
        %909 = vmatpush1.bf16.xpose.msra.mxu0 %v888
        %910 = vmatprep.subr.bf16.mxu0 %v885
        %911 = vmatpush1.bf16.xpose.msra.mxu0 %v884
        %912 = vmatprep.subr.bf16.mxu0 0
        %913 = vmatpush2.bf16.xpose.msra.mxu0 0
        %914 = vmatprep.subr.bf16.mxu0 0
        %915 = vmatpush2.bf16.xpose.msra.mxu0 0
        %916 = vmatprep.subr.bf16.mxu0 0
        %917 = vmatpush2.bf16.xpose.msra.mxu0 0
        %918 = vmatprep.subr.bf16.mxu0 0
        %919 = vmatpush2.bf16.xpose.msra.mxu0 0
        %920 = vmatprep.subr.bf16.mxu0 0
        %921 = vmatpush2.bf16.xpose.msra.mxu0 0
        %922 = vmatprep.subr.bf16.mxu0 0
        %923 = vmatpush2.bf16.xpose.msra.mxu0 0
        %924 = vmatprep.subr.bf16.mxu0 0
        %925 = vmatpush2.bf16.xpose.msra.mxu0 0
        %926 = vmatprep.subr.bf16.mxu0 0
        %927 = vmatpush2.bf16.xpose.msra.mxu0 0
        %928 = vmatprep.mubr.bf16.mxu0 %v885
        %929 = vmatmul.mubr.bf16.gmra.mxu0 %v884
        %v930 = vpop.f32.mrf.mxu0
        %v931 = vadd.f32 0.0, %v930
        %v932 = vpop.f32.mrf.mxu0
        %v933 = vpop.f32.mrf.mxu0
        %v934 = vadd.f32 0.0, %v933
        %v935 = vpop.f32.mrf.mxu0
        %936 = vmatprep.mubr.bf16.mxu0 %v889
        %937 = vmatmul.mubr.bf16.gmra.mxu0 %v888
        %v938 = vpop.f32.mrf.mxu0
        %v939 = vadd.f32 0.0, %v938
        %v940 = vpop.f32.mrf.mxu0
        %v941 = vpop.f32.mrf.mxu0
        %v942 = vadd.f32 0.0, %v941
        %v943 = vpop.f32.mrf.mxu0
        %944 = vdwg.mxu0
        %945 = vmatprep.subr.bf16.mxu0 0
        %946 = vmatpush1.bf16.xpose.msra.mxu0 0
        %947 = vmatprep.subr.bf16.mxu0 0
        %948 = vmatpush1.bf16.xpose.msra.mxu0 0
        %949 = vmatprep.subr.bf16.mxu0 0
        %950 = vmatpush1.bf16.xpose.msra.mxu0 0
        %951 = vmatprep.subr.bf16.mxu0 0
        %952 = vmatpush1.bf16.xpose.msra.mxu0 0
        %953 = vmatprep.subr.bf16.mxu0 0
        %954 = vmatpush1.bf16.xpose.msra.mxu0 0
        %955 = vmatprep.subr.bf16.mxu0 0
        %956 = vmatpush1.bf16.xpose.msra.mxu0 0
        %957 = vmatprep.subr.bf16.mxu0 %v891
        %958 = vmatpush1.bf16.xpose.msra.mxu0 %v890
        %959 = vmatprep.subr.bf16.mxu0 %v887
        %960 = vmatpush1.bf16.xpose.msra.mxu0 %v886
        %961 = vmatprep.subr.bf16.mxu0 0
        %962 = vmatpush2.bf16.xpose.msra.mxu0 0
        %963 = vmatprep.subr.bf16.mxu0 0
        %964 = vmatpush2.bf16.xpose.msra.mxu0 0
        %965 = vmatprep.subr.bf16.mxu0 0
        %966 = vmatpush2.bf16.xpose.msra.mxu0 0
        %967 = vmatprep.subr.bf16.mxu0 0
        %968 = vmatpush2.bf16.xpose.msra.mxu0 0
        %969 = vmatprep.subr.bf16.mxu0 0
        %970 = vmatpush2.bf16.xpose.msra.mxu0 0
        %971 = vmatprep.subr.bf16.mxu0 0
        %972 = vmatpush2.bf16.xpose.msra.mxu0 0
        %973 = vmatprep.subr.bf16.mxu0 0
        %974 = vmatpush2.bf16.xpose.msra.mxu0 0
        %975 = vmatprep.subr.bf16.mxu0 0
        %976 = vmatpush2.bf16.xpose.msra.mxu0 0
        %977 = vmatprep.mubr.bf16.mxu0 %v887
        %978 = vmatmul.mubr.bf16.gmra.mxu0 %v886
        %v979 = vpop.f32.mrf.mxu0
        %v980 = vadd.f32 %v931, %v979
        %v981 = vpop.f32.mrf.mxu0
        %v982 = vpop.f32.mrf.mxu0
        %v983 = vadd.f32 %v934, %v982
        %v984 = vpop.f32.mrf.mxu0
        %985 = vmatprep.mubr.bf16.mxu0 %v891
        %986 = vmatmul.mubr.bf16.gmra.mxu0 %v890
        %v987 = vpop.f32.mrf.mxu0
        %v988 = vadd.f32 %v939, %v987
        %v989 = vpop.f32.mrf.mxu0
        %v990 = vpop.f32.mrf.mxu0
        %v991 = vadd.f32 %v942, %v990
        %v992 = vpop.f32.mrf.mxu0
        %993 = vdwg.mxu0
        %v994 = vmul.f32 %v980, 0.125
        %v995 = vmul.f32 %v983, 0.125
        %v996 = vmul.f32 %v988, 0.125
        %v997 = vmul.f32 %v991, 0.125
        %v998 = vadd.f32 %v994, %v892
        %v999 = vadd.f32 %v995, %v893
        %v1000 = vadd.f32 %v996, %v894
        %v1001 = vadd.f32 %v997, %v895
        %vm1002 = vcmask 261120
        %v1003 = vsel %vm1002, %v998, -inf
        %1004 = vmax.xlane.f32.xlu0 %v1003
        %v1005 = vpop.xlane.xlu0 %1004
        %v1006 = vsel %vm1002, %v999, -inf
        %1007 = vmax.xlane.f32.xlu0 %v1006
        %v1008 = vpop.xlane.xlu0 %1007
        %v1009 = vsel %vm1002, %v1000, -inf
        %1010 = vmax.xlane.f32.xlu0 %v1009
        %v1011 = vpop.xlane.xlu0 %1010
        %v1012 = vsel %vm1002, %v1001, -inf
        %1013 = vmax.xlane.f32.xlu0 %v1012
        %v1014 = vpop.xlane.xlu0 %1013
        %v1015 = vsub.f32 %v998, %v1005
        %v1016 = vsub.f32 %v999, %v1008
        %v1017 = vsub.f32 %v1000, %v1011
        %v1018 = vsub.f32 %v1001, %v1014
        %v1019 = vmul.f32 %v1015, 1.442695
        %v1020 = vpow.pop %v1019
        %v1021 = vmul.f32 %v1016, 1.442695
        %v1022 = vpow.pop %v1021
        %v1023 = vmul.f32 %v1017, 1.442695
        %v1024 = vpow.pop %v1023
        %v1025 = vmul.f32 %v1018, 1.442695
        %v1026 = vpow.pop %v1025
        %v1027 = vsel %vm1002, %v1020, 0.0
        %1028 = vadd.xlane.f32.xlu0 %v1027
        %v1029 = vpop.xlane.xlu0 %1028
        %v1030 = vsel %vm1002, %v1022, 0.0
        %1031 = vadd.xlane.f32.xlu0 %v1030
        %v1032 = vpop.xlane.xlu0 %1031
        %v1033 = vsel %vm1002, %v1024, 0.0
        %1034 = vadd.xlane.f32.xlu0 %v1033
        %v1035 = vpop.xlane.xlu0 %1034
        %v1036 = vsel %vm1002, %v1026, 0.0
        %1037 = vadd.xlane.f32.xlu0 %v1036
        %v1038 = vpop.xlane.xlu0 %1037
        %v1039 = vrcp.pop %v1029
        %v1040 = vrcp.pop %v1032
        %v1041 = vrcp.pop %v1035
        %v1042 = vrcp.pop %v1038
        %v1043 = vmul.f32 %v1020, %v1039
        %v1044 = vmul.f32 %v1022, %v1040
        %v1045 = vmul.f32 %v1024, %v1041
        %v1046 = vmul.f32 %v1026, %v1042
        %v1047 = vpack.c.bf16 %v1044, %v1043
        %v1048 = vpack.c.bf16 %v1046, %v1045
        %v1050 = vsel %vm1002, %v1047, 0
        %v1053 = vsel %vm1002, %v1048, 0
        %1055 = vmatprep.subr.bf16.mxu0 0
        %1056 = vmatpush1.bf16.msra.mxu0 0
        %1057 = vmatprep.subr.bf16.mxu0 0
        %1058 = vmatpush1.bf16.msra.mxu0 0
        %1059 = vmatprep.subr.bf16.mxu0 0
        %1060 = vmatpush1.bf16.msra.mxu0 0
        %1061 = vmatprep.subr.bf16.mxu0 0
        %1062 = vmatpush1.bf16.msra.mxu0 0
        %1063 = vmatprep.subr.bf16.mxu0 0
        %1064 = vmatpush1.bf16.msra.mxu0 0
        %1065 = vmatprep.subr.bf16.mxu0 0
        %1066 = vmatpush1.bf16.msra.mxu0 0
        %1067 = vmatprep.subr.bf16.mxu0 %v889
        %1068 = vmatpush1.bf16.msra.mxu0 %v888
        %1069 = vmatprep.subr.bf16.mxu0 %v885
        %1070 = vmatpush1.bf16.msra.mxu0 %v884
        %1071 = vmatprep.subr.bf16.mxu0 0
        %1072 = vmatpush2.bf16.msra.mxu0 0
        %1073 = vmatprep.subr.bf16.mxu0 0
        %1074 = vmatpush2.bf16.msra.mxu0 0
        %1075 = vmatprep.subr.bf16.mxu0 0
        %1076 = vmatpush2.bf16.msra.mxu0 0
        %1077 = vmatprep.subr.bf16.mxu0 0
        %1078 = vmatpush2.bf16.msra.mxu0 0
        %1079 = vmatprep.subr.bf16.mxu0 0
        %1080 = vmatpush2.bf16.msra.mxu0 0
        %1081 = vmatprep.subr.bf16.mxu0 0
        %1082 = vmatpush2.bf16.msra.mxu0 0
        %1083 = vmatprep.subr.bf16.mxu0 0
        %1084 = vmatpush2.bf16.msra.mxu0 0
        %1085 = vmatprep.subr.bf16.mxu0 0
        %1086 = vmatpush2.bf16.msra.mxu0 0
        %1087 = vmatprep.mubr.bf16.mxu0 0
        %1088 = vmatmul.mubr.bf16.gmra.mxu0 %v1050
        %v1089 = vpop.f32.mrf.mxu0
        %v1090 = vadd.f32 0.0, %v1089
        %v1091 = vpop.f32.mrf.mxu0
        %v1092 = vadd.f32 0.0, %v1091
        %v1093 = vpop.f32.mrf.mxu0
        %v1094 = vadd.f32 0.0, %v1093
        %v1095 = vpop.f32.mrf.mxu0
        %v1096 = vadd.f32 0.0, %v1095
        %1097 = vmatprep.mubr.bf16.mxu0 0
        %1098 = vmatmul.mubr.bf16.gmra.mxu0 %v1053
        %v1099 = vpop.f32.mrf.mxu0
        %v1100 = vadd.f32 0.0, %v1099
        %v1101 = vpop.f32.mrf.mxu0
        %v1102 = vadd.f32 0.0, %v1101
        %v1103 = vpop.f32.mrf.mxu0
        %v1104 = vadd.f32 0.0, %v1103
        %v1105 = vpop.f32.mrf.mxu0
        %v1106 = vadd.f32 0.0, %v1105
        %1107 = vdwg.mxu0
        %1108 = vmatprep.subr.bf16.mxu0 0
        %1109 = vmatpush1.bf16.msra.mxu0 0
        %1110 = vmatprep.subr.bf16.mxu0 0
        %1111 = vmatpush1.bf16.msra.mxu0 0
        %1112 = vmatprep.subr.bf16.mxu0 0
        %1113 = vmatpush1.bf16.msra.mxu0 0
        %1114 = vmatprep.subr.bf16.mxu0 0
        %1115 = vmatpush1.bf16.msra.mxu0 0
        %1116 = vmatprep.subr.bf16.mxu0 0
        %1117 = vmatpush1.bf16.msra.mxu0 0
        %1118 = vmatprep.subr.bf16.mxu0 0
        %1119 = vmatpush1.bf16.msra.mxu0 0
        %1120 = vmatprep.subr.bf16.mxu0 %v891
        %1121 = vmatpush1.bf16.msra.mxu0 %v890
        %1122 = vmatprep.subr.bf16.mxu0 %v887
        %1123 = vmatpush1.bf16.msra.mxu0 %v886
        %1124 = vmatprep.subr.bf16.mxu0 0
        %1125 = vmatpush2.bf16.msra.mxu0 0
        %1126 = vmatprep.subr.bf16.mxu0 0
        %1127 = vmatpush2.bf16.msra.mxu0 0
        %1128 = vmatprep.subr.bf16.mxu0 0
        %1129 = vmatpush2.bf16.msra.mxu0 0
        %1130 = vmatprep.subr.bf16.mxu0 0
        %1131 = vmatpush2.bf16.msra.mxu0 0
        %1132 = vmatprep.subr.bf16.mxu0 0
        %1133 = vmatpush2.bf16.msra.mxu0 0
        %1134 = vmatprep.subr.bf16.mxu0 0
        %1135 = vmatpush2.bf16.msra.mxu0 0
        %1136 = vmatprep.subr.bf16.mxu0 0
        %1137 = vmatpush2.bf16.msra.mxu0 0
        %1138 = vmatprep.subr.bf16.mxu0 0
        %1139 = vmatpush2.bf16.msra.mxu0 0
        %1140 = vmatprep.mubr.bf16.mxu0 0
        %1141 = vmatmul.mubr.bf16.gmra.mxu0 %v1050
        %v1142 = vpop.f32.mrf.mxu0
        %v1143 = vadd.f32 0.0, %v1142
        %v1144 = vpop.f32.mrf.mxu0
        %v1145 = vadd.f32 0.0, %v1144
        %v1146 = vpop.f32.mrf.mxu0
        %v1147 = vadd.f32 0.0, %v1146
        %v1148 = vpop.f32.mrf.mxu0
        %v1149 = vadd.f32 0.0, %v1148
        %1150 = vmatprep.mubr.bf16.mxu0 0
        %1151 = vmatmul.mubr.bf16.gmra.mxu0 %v1053
        %v1152 = vpop.f32.mrf.mxu0
        %v1153 = vadd.f32 0.0, %v1152
        %v1154 = vpop.f32.mrf.mxu0
        %v1155 = vadd.f32 0.0, %v1154
        %v1156 = vpop.f32.mrf.mxu0
        %v1157 = vadd.f32 0.0, %v1156
        %v1158 = vpop.f32.mrf.mxu0
        %v1159 = vadd.f32 0.0, %v1158
        %1160 = vdwg.mxu0
        %v1161 = vpack.c.bf16 %v1094, %v1090
        %v1162 = vpack.c.bf16 %v1096, %v1092
        %v1163 = vpack.c.bf16 %v1147, %v1143
        %v1164 = vpack.c.bf16 %v1149, %v1145
        %v1165 = vpack.c.bf16 %v1104, %v1100
        %v1166 = vpack.c.bf16 %v1106, %v1102
        %v1167 = vpack.c.bf16 %v1157, %v1153
        %v1168 = vpack.c.bf16 %v1159, %v1155
        %v1297 = vunpack.c.l.b16 %v368
        %v1298 = vunpack.c.h.b16 %v368
        %v1299 = vunpack.c.l.b16 %v369
        %v1300 = vunpack.c.h.b16 %v369
        %v1301 = vunpack.c.l.b16 %v370
        %v1302 = vunpack.c.h.b16 %v370
        %v1303 = vunpack.c.l.b16 %v371
        %v1304 = vunpack.c.h.b16 %v371
        %v1305 = vunpack.c.l.b16 %v372
        %v1306 = vunpack.c.h.b16 %v372
        %v1307 = vunpack.c.l.b16 %v373
        %v1308 = vunpack.c.h.b16 %v373
        %v1309 = vunpack.c.l.b16 %v374
        %v1310 = vunpack.c.h.b16 %v374
        %v1311 = vunpack.c.l.b16 %v375
        %v1312 = vunpack.c.h.b16 %v375
        %v1313 = vunpack.c.l.b16 %v376
        %v1314 = vunpack.c.h.b16 %v376
        %v1315 = vunpack.c.l.b16 %v377
        %v1316 = vunpack.c.h.b16 %v377
        %v1317 = vunpack.c.l.b16 %v378
        %v1318 = vunpack.c.h.b16 %v378
        %v1319 = vunpack.c.l.b16 %v379
        %v1320 = vunpack.c.h.b16 %v379
        %v1321 = vunpack.c.l.b16 %v380
        %v1322 = vunpack.c.h.b16 %v380
        %v1323 = vunpack.c.l.b16 %v381
        %v1324 = vunpack.c.h.b16 %v381
        %v1325 = vunpack.c.l.b16 %v382
        %v1326 = vunpack.c.h.b16 %v382
        %v1327 = vunpack.c.l.b16 %v383
        %v1328 = vunpack.c.h.b16 %v383
        %v1329 = vunpack.c.l.b16 %v384
        %v1330 = vunpack.c.h.b16 %v384
        %v1331 = vunpack.c.l.b16 %v385
        %v1332 = vunpack.c.h.b16 %v385
        %v1333 = vunpack.c.l.b16 %v386
        %v1334 = vunpack.c.h.b16 %v386
        %v1335 = vunpack.c.l.b16 %v387
        %v1336 = vunpack.c.h.b16 %v387
        %v1337 = vunpack.c.l.b16 %v388
        %v1338 = vunpack.c.h.b16 %v388
        %v1339 = vunpack.c.l.b16 %v389
        %v1340 = vunpack.c.h.b16 %v389
        %v1341 = vunpack.c.l.b16 %v390
        %v1342 = vunpack.c.h.b16 %v390
        %v1343 = vunpack.c.l.b16 %v391
        %v1344 = vunpack.c.h.b16 %v391
        %v1345 = vunpack.c.l.b16 %v392
        %v1346 = vunpack.c.h.b16 %v392
        %v1347 = vunpack.c.l.b16 %v393
        %v1348 = vunpack.c.h.b16 %v393
        %v1349 = vunpack.c.l.b16 %v394
        %v1350 = vunpack.c.h.b16 %v394
        %v1351 = vunpack.c.l.b16 %v395
        %v1352 = vunpack.c.h.b16 %v395
        %v1353 = vunpack.c.l.b16 %v396
        %v1354 = vunpack.c.h.b16 %v396
        %v1355 = vunpack.c.l.b16 %v397
        %v1356 = vunpack.c.h.b16 %v397
        %v1357 = vunpack.c.l.b16 %v398
        %v1358 = vunpack.c.h.b16 %v398
        %v1359 = vunpack.c.l.b16 %v399
        %v1360 = vunpack.c.h.b16 %v399
        %v1361 = vunpack.c.l.b16 %v400
        %v1362 = vunpack.c.h.b16 %v400
        %v1363 = vunpack.c.l.b16 %v401
        %v1364 = vunpack.c.h.b16 %v401
        %v1365 = vunpack.c.l.b16 %v402
        %v1366 = vunpack.c.h.b16 %v402
        %v1367 = vunpack.c.l.b16 %v403
        %v1368 = vunpack.c.h.b16 %v403
        %v1369 = vunpack.c.l.b16 %v404
        %v1370 = vunpack.c.h.b16 %v404
        %v1371 = vunpack.c.l.b16 %v405
        %v1372 = vunpack.c.h.b16 %v405
        %v1373 = vunpack.c.l.b16 %v406
        %v1374 = vunpack.c.h.b16 %v406
        %v1375 = vunpack.c.l.b16 %v407
        %v1376 = vunpack.c.h.b16 %v407
        %v1377 = vunpack.c.l.b16 %v408
        %v1378 = vunpack.c.h.b16 %v408
        %v1379 = vunpack.c.l.b16 %v409
        %v1380 = vunpack.c.h.b16 %v409
        %v1381 = vunpack.c.l.b16 %v410
        %v1382 = vunpack.c.h.b16 %v410
        %v1383 = vunpack.c.l.b16 %v411
        %v1384 = vunpack.c.h.b16 %v411
        %v1385 = vunpack.c.l.b16 %v412
        %v1386 = vunpack.c.h.b16 %v412
        %v1387 = vunpack.c.l.b16 %v413
        %v1388 = vunpack.c.h.b16 %v413
        %v1389 = vunpack.c.l.b16 %v414
        %v1390 = vunpack.c.h.b16 %v414
        %v1391 = vunpack.c.l.b16 %v415
        %v1392 = vunpack.c.h.b16 %v415
        %v1393 = vunpack.c.l.b16 %v416
        %v1394 = vunpack.c.h.b16 %v416
        %v1395 = vunpack.c.l.b16 %v417
        %v1396 = vunpack.c.h.b16 %v417
        %v1397 = vunpack.c.l.b16 %v418
        %v1398 = vunpack.c.h.b16 %v418
        %v1399 = vunpack.c.l.b16 %v419
        %v1400 = vunpack.c.h.b16 %v419
        %v1401 = vunpack.c.l.b16 %v420
        %v1402 = vunpack.c.h.b16 %v420
        %v1403 = vunpack.c.l.b16 %v421
        %v1404 = vunpack.c.h.b16 %v421
        %v1405 = vunpack.c.l.b16 %v422
        %v1406 = vunpack.c.h.b16 %v422
        %v1407 = vunpack.c.l.b16 %v423
        %v1408 = vunpack.c.h.b16 %v423
        %v1409 = vunpack.c.l.b16 %v424
        %v1410 = vunpack.c.h.b16 %v424
        %v1411 = vunpack.c.l.b16 %v425
        %v1412 = vunpack.c.h.b16 %v425
        %v1413 = vunpack.c.l.b16 %v426
        %v1414 = vunpack.c.h.b16 %v426
        %v1415 = vunpack.c.l.b16 %v427
        %v1416 = vunpack.c.h.b16 %v427
        %v1417 = vunpack.c.l.b16 %v428
        %v1418 = vunpack.c.h.b16 %v428
        %v1419 = vunpack.c.l.b16 %v429
        %v1420 = vunpack.c.h.b16 %v429
        %v1421 = vunpack.c.l.b16 %v430
        %v1422 = vunpack.c.h.b16 %v430
        %v1423 = vunpack.c.l.b16 %v431
        %v1424 = vunpack.c.h.b16 %v431
        %v1425 = vunpack.c.l.b16 %v432
        %v1426 = vunpack.c.h.b16 %v432
        %v1427 = vunpack.c.l.b16 %v433
        %v1428 = vunpack.c.h.b16 %v433
        %v1429 = vunpack.c.l.b16 %v434
        %v1430 = vunpack.c.h.b16 %v434
        %v1431 = vunpack.c.l.b16 %v435
        %v1432 = vunpack.c.h.b16 %v435
        %v1433 = vunpack.c.l.b16 %v436
        %v1434 = vunpack.c.h.b16 %v436
        %v1435 = vunpack.c.l.b16 %v437
        %v1436 = vunpack.c.h.b16 %v437
        %v1437 = vunpack.c.l.b16 %v438
        %v1438 = vunpack.c.h.b16 %v438
        %v1439 = vunpack.c.l.b16 %v439
        %v1440 = vunpack.c.h.b16 %v439
        %v1441 = vunpack.c.l.b16 %v440
        %v1442 = vunpack.c.h.b16 %v440
        %v1443 = vunpack.c.l.b16 %v441
        %v1444 = vunpack.c.h.b16 %v441
        %v1445 = vunpack.c.l.b16 %v442
        %v1446 = vunpack.c.h.b16 %v442
        %v1447 = vunpack.c.l.b16 %v443
        %v1448 = vunpack.c.h.b16 %v443
        %v1449 = vunpack.c.l.b16 %v444
        %v1450 = vunpack.c.h.b16 %v444
        %v1451 = vunpack.c.l.b16 %v445
        %v1452 = vunpack.c.h.b16 %v445
        %v1453 = vunpack.c.l.b16 %v446
        %v1454 = vunpack.c.h.b16 %v446
        %v1455 = vunpack.c.l.b16 %v447
        %v1456 = vunpack.c.h.b16 %v447
        %v1457 = vunpack.c.l.b16 %v448
        %v1458 = vunpack.c.h.b16 %v448
        %v1459 = vunpack.c.l.b16 %v449
        %v1460 = vunpack.c.h.b16 %v449
        %v1461 = vunpack.c.l.b16 %v450
        %v1462 = vunpack.c.h.b16 %v450
        %v1463 = vunpack.c.l.b16 %v451
        %v1464 = vunpack.c.h.b16 %v451
        %v1465 = vunpack.c.l.b16 %v452
        %v1466 = vunpack.c.h.b16 %v452
        %v1467 = vunpack.c.l.b16 %v453
        %v1468 = vunpack.c.h.b16 %v453
        %v1469 = vunpack.c.l.b16 %v454
        %v1470 = vunpack.c.h.b16 %v454
        %v1471 = vunpack.c.l.b16 %v455
        %v1472 = vunpack.c.h.b16 %v455
        %v1473 = vunpack.c.l.b16 %v456
        %v1474 = vunpack.c.h.b16 %v456
        %v1475 = vunpack.c.l.b16 %v457
        %v1476 = vunpack.c.h.b16 %v457
        %v1477 = vunpack.c.l.b16 %v458
        %v1478 = vunpack.c.h.b16 %v458
        %v1479 = vunpack.c.l.b16 %v459
        %v1480 = vunpack.c.h.b16 %v459
        %v1481 = vunpack.c.l.b16 %v460
        %v1482 = vunpack.c.h.b16 %v460
        %v1483 = vunpack.c.l.b16 %v461
        %v1484 = vunpack.c.h.b16 %v461
        %v1485 = vunpack.c.l.b16 %v462
        %v1486 = vunpack.c.h.b16 %v462
        %v1487 = vunpack.c.l.b16 %v463
        %v1488 = vunpack.c.h.b16 %v463
        %v1489 = vunpack.c.l.b16 %v464
        %v1490 = vunpack.c.h.b16 %v464
        %v1491 = vunpack.c.l.b16 %v465
        %v1492 = vunpack.c.h.b16 %v465
        %v1493 = vunpack.c.l.b16 %v466
        %v1494 = vunpack.c.h.b16 %v466
        %v1495 = vunpack.c.l.b16 %v467
        %v1496 = vunpack.c.h.b16 %v467
        %v1497 = vunpack.c.l.b16 %v468
        %v1498 = vunpack.c.h.b16 %v468
        %v1499 = vunpack.c.l.b16 %v469
        %v1500 = vunpack.c.h.b16 %v469
        %v1501 = vunpack.c.l.b16 %v470
        %v1502 = vunpack.c.h.b16 %v470
        %v1503 = vunpack.c.l.b16 %v471
        %v1504 = vunpack.c.h.b16 %v471
        %v1505 = vunpack.c.l.b16 %v472
        %v1506 = vunpack.c.h.b16 %v472
        %v1507 = vunpack.c.l.b16 %v473
        %v1508 = vunpack.c.h.b16 %v473
        %v1509 = vunpack.c.l.b16 %v474
        %v1510 = vunpack.c.h.b16 %v474
        %v1511 = vunpack.c.l.b16 %v475
        %v1512 = vunpack.c.h.b16 %v475
        %v1513 = vunpack.c.l.b16 %v476
        %v1514 = vunpack.c.h.b16 %v476
        %v1515 = vunpack.c.l.b16 %v477
        %v1516 = vunpack.c.h.b16 %v477
        %v1517 = vunpack.c.l.b16 %v478
        %v1518 = vunpack.c.h.b16 %v478
        %v1519 = vunpack.c.l.b16 %v479
        %v1520 = vunpack.c.h.b16 %v479
        %v1521 = vunpack.c.l.b16 %v480
        %v1522 = vunpack.c.h.b16 %v480
        %v1523 = vunpack.c.l.b16 %v481
        %v1524 = vunpack.c.h.b16 %v481
        %v1525 = vunpack.c.l.b16 %v482
        %v1526 = vunpack.c.h.b16 %v482
        %v1527 = vunpack.c.l.b16 %v483
        %v1528 = vunpack.c.h.b16 %v483
        %v1529 = vunpack.c.l.b16 %v484
        %v1530 = vunpack.c.h.b16 %v484
        %v1531 = vunpack.c.l.b16 %v485
        %v1532 = vunpack.c.h.b16 %v485
        %v1533 = vunpack.c.l.b16 %v486
        %v1534 = vunpack.c.h.b16 %v486
        %v1535 = vunpack.c.l.b16 %v487
        %v1536 = vunpack.c.h.b16 %v487
        %v1537 = vunpack.c.l.b16 %v488
        %v1538 = vunpack.c.h.b16 %v488
        %v1539 = vunpack.c.l.b16 %v489
        %v1540 = vunpack.c.h.b16 %v489
        %v1541 = vunpack.c.l.b16 %v490
        %v1542 = vunpack.c.h.b16 %v490
        %v1543 = vunpack.c.l.b16 %v491
        %v1544 = vunpack.c.h.b16 %v491
        %v1545 = vunpack.c.l.b16 %v492
        %v1546 = vunpack.c.h.b16 %v492
        %v1547 = vunpack.c.l.b16 %v493
        %v1548 = vunpack.c.h.b16 %v493
        %v1549 = vunpack.c.l.b16 %v494
        %v1550 = vunpack.c.h.b16 %v494
        %v1551 = vunpack.c.l.b16 %v495
        %v1552 = vunpack.c.h.b16 %v495
        %v1553 = vpack.c.b16 %v1301, %v1297
        %v1554 = vpack.c.b16 %v1302, %v1298
        %v1555 = vpack.c.b16 %v1303, %v1299
        %v1556 = vpack.c.b16 %v1304, %v1300
        %v1557 = vpack.c.b16 %v1309, %v1305
        %v1558 = vpack.c.b16 %v1310, %v1306
        %v1559 = vpack.c.b16 %v1311, %v1307
        %v1560 = vpack.c.b16 %v1312, %v1308
        %v1561 = vpack.c.b16 %v1317, %v1313
        %v1562 = vpack.c.b16 %v1318, %v1314
        %v1563 = vpack.c.b16 %v1319, %v1315
        %v1564 = vpack.c.b16 %v1320, %v1316
        %v1565 = vpack.c.b16 %v1325, %v1321
        %v1566 = vpack.c.b16 %v1326, %v1322
        %v1567 = vpack.c.b16 %v1327, %v1323
        %v1568 = vpack.c.b16 %v1328, %v1324
        %v1569 = vpack.c.b16 %v1333, %v1329
        %v1570 = vpack.c.b16 %v1334, %v1330
        %v1571 = vpack.c.b16 %v1335, %v1331
        %v1572 = vpack.c.b16 %v1336, %v1332
        %v1573 = vpack.c.b16 %v1341, %v1337
        %v1574 = vpack.c.b16 %v1342, %v1338
        %v1575 = vpack.c.b16 %v1343, %v1339
        %v1576 = vpack.c.b16 %v1344, %v1340
        %v1577 = vpack.c.b16 %v1349, %v1345
        %v1578 = vpack.c.b16 %v1350, %v1346
        %v1579 = vpack.c.b16 %v1351, %v1347
        %v1580 = vpack.c.b16 %v1352, %v1348
        %v1581 = vpack.c.b16 %v1357, %v1353
        %v1582 = vpack.c.b16 %v1358, %v1354
        %v1583 = vpack.c.b16 %v1359, %v1355
        %v1584 = vpack.c.b16 %v1360, %v1356
        %v1585 = vpack.c.b16 %v1365, %v1361
        %v1586 = vpack.c.b16 %v1366, %v1362
        %v1587 = vpack.c.b16 %v1367, %v1363
        %v1588 = vpack.c.b16 %v1368, %v1364
        %v1589 = vpack.c.b16 %v1373, %v1369
        %v1590 = vpack.c.b16 %v1374, %v1370
        %v1591 = vpack.c.b16 %v1375, %v1371
        %v1592 = vpack.c.b16 %v1376, %v1372
        %v1593 = vpack.c.b16 %v1381, %v1377
        %v1594 = vpack.c.b16 %v1382, %v1378
        %v1595 = vpack.c.b16 %v1383, %v1379
        %v1596 = vpack.c.b16 %v1384, %v1380
        %v1597 = vpack.c.b16 %v1389, %v1385
        %v1598 = vpack.c.b16 %v1390, %v1386
        %v1599 = vpack.c.b16 %v1391, %v1387
        %v1600 = vpack.c.b16 %v1392, %v1388
        %v1601 = vpack.c.b16 %v1397, %v1393
        %v1602 = vpack.c.b16 %v1398, %v1394
        %v1603 = vpack.c.b16 %v1399, %v1395
        %v1604 = vpack.c.b16 %v1400, %v1396
        %v1605 = vpack.c.b16 %v1405, %v1401
        %v1606 = vpack.c.b16 %v1406, %v1402
        %v1607 = vpack.c.b16 %v1407, %v1403
        %v1608 = vpack.c.b16 %v1408, %v1404
        %v1609 = vpack.c.b16 %v1413, %v1409
        %v1610 = vpack.c.b16 %v1414, %v1410
        %v1611 = vpack.c.b16 %v1415, %v1411
        %v1612 = vpack.c.b16 %v1416, %v1412
        %v1613 = vpack.c.b16 %v1421, %v1417
        %v1614 = vpack.c.b16 %v1422, %v1418
        %v1615 = vpack.c.b16 %v1423, %v1419
        %v1616 = vpack.c.b16 %v1424, %v1420
        %v1617 = vpack.c.b16 %v1429, %v1425
        %v1618 = vpack.c.b16 %v1430, %v1426
        %v1619 = vpack.c.b16 %v1431, %v1427
        %v1620 = vpack.c.b16 %v1432, %v1428
        %v1621 = vpack.c.b16 %v1437, %v1433
        %v1622 = vpack.c.b16 %v1438, %v1434
        %v1623 = vpack.c.b16 %v1439, %v1435
        %v1624 = vpack.c.b16 %v1440, %v1436
        %v1625 = vpack.c.b16 %v1445, %v1441
        %v1626 = vpack.c.b16 %v1446, %v1442
        %v1627 = vpack.c.b16 %v1447, %v1443
        %v1628 = vpack.c.b16 %v1448, %v1444
        %v1629 = vpack.c.b16 %v1453, %v1449
        %v1630 = vpack.c.b16 %v1454, %v1450
        %v1631 = vpack.c.b16 %v1455, %v1451
        %v1632 = vpack.c.b16 %v1456, %v1452
        %v1633 = vpack.c.b16 %v1461, %v1457
        %v1634 = vpack.c.b16 %v1462, %v1458
        %v1635 = vpack.c.b16 %v1463, %v1459
        %v1636 = vpack.c.b16 %v1464, %v1460
        %v1637 = vpack.c.b16 %v1469, %v1465
        %v1638 = vpack.c.b16 %v1470, %v1466
        %v1639 = vpack.c.b16 %v1471, %v1467
        %v1640 = vpack.c.b16 %v1472, %v1468
        %v1641 = vpack.c.b16 %v1477, %v1473
        %v1642 = vpack.c.b16 %v1478, %v1474
        %v1643 = vpack.c.b16 %v1479, %v1475
        %v1644 = vpack.c.b16 %v1480, %v1476
        %v1645 = vpack.c.b16 %v1485, %v1481
        %v1646 = vpack.c.b16 %v1486, %v1482
        %v1647 = vpack.c.b16 %v1487, %v1483
        %v1648 = vpack.c.b16 %v1488, %v1484
        %v1649 = vpack.c.b16 %v1493, %v1489
        %v1650 = vpack.c.b16 %v1494, %v1490
        %v1651 = vpack.c.b16 %v1495, %v1491
        %v1652 = vpack.c.b16 %v1496, %v1492
        %v1653 = vpack.c.b16 %v1501, %v1497
        %v1654 = vpack.c.b16 %v1502, %v1498
        %v1655 = vpack.c.b16 %v1503, %v1499
        %v1656 = vpack.c.b16 %v1504, %v1500
        %v1657 = vpack.c.b16 %v1509, %v1505
        %v1658 = vpack.c.b16 %v1510, %v1506
        %v1659 = vpack.c.b16 %v1511, %v1507
        %v1660 = vpack.c.b16 %v1512, %v1508
        %v1661 = vpack.c.b16 %v1517, %v1513
        %v1662 = vpack.c.b16 %v1518, %v1514
        %v1663 = vpack.c.b16 %v1519, %v1515
        %v1664 = vpack.c.b16 %v1520, %v1516
        %v1665 = vpack.c.b16 %v1525, %v1521
        %v1666 = vpack.c.b16 %v1526, %v1522
        %v1667 = vpack.c.b16 %v1527, %v1523
        %v1668 = vpack.c.b16 %v1528, %v1524
        %v1669 = vpack.c.b16 %v1533, %v1529
        %v1670 = vpack.c.b16 %v1534, %v1530
        %v1671 = vpack.c.b16 %v1535, %v1531
        %v1672 = vpack.c.b16 %v1536, %v1532
        %v1673 = vpack.c.b16 %v1541, %v1537
        %v1674 = vpack.c.b16 %v1542, %v1538
        %v1675 = vpack.c.b16 %v1543, %v1539
        %v1676 = vpack.c.b16 %v1544, %v1540
        %v1677 = vpack.c.b16 %v1549, %v1545
        %v1678 = vpack.c.b16 %v1550, %v1546
        %v1679 = vpack.c.b16 %v1551, %v1547
        %v1680 = vpack.c.b16 %v1552, %v1548
        %1809 = vmatprep.subr.bf16.mxu0 %v1582
        %1810 = vmatpush1.bf16.msra.mxu0 %v1581
        %1811 = vmatprep.subr.bf16.mxu0 %v1578
        %1812 = vmatpush1.bf16.msra.mxu0 %v1577
        %1813 = vmatprep.subr.bf16.mxu0 %v1574
        %1814 = vmatpush1.bf16.msra.mxu0 %v1573
        %1815 = vmatprep.subr.bf16.mxu0 %v1570
        %1816 = vmatpush1.bf16.msra.mxu0 %v1569
        %1817 = vmatprep.subr.bf16.mxu0 %v1566
        %1818 = vmatpush1.bf16.msra.mxu0 %v1565
        %1819 = vmatprep.subr.bf16.mxu0 %v1562
        %1820 = vmatpush1.bf16.msra.mxu0 %v1561
        %1821 = vmatprep.subr.bf16.mxu0 %v1558
        %1822 = vmatpush1.bf16.msra.mxu0 %v1557
        %1823 = vmatprep.subr.bf16.mxu0 %v1554
        %1824 = vmatpush1.bf16.msra.mxu0 %v1553
        %1825 = vmatprep.subr.bf16.mxu0 %v1614
        %1826 = vmatpush2.bf16.msra.mxu0 %v1613
        %1827 = vmatprep.subr.bf16.mxu0 %v1610
        %1828 = vmatpush2.bf16.msra.mxu0 %v1609
        %1829 = vmatprep.subr.bf16.mxu0 %v1606
        %1830 = vmatpush2.bf16.msra.mxu0 %v1605
        %1831 = vmatprep.subr.bf16.mxu0 %v1602
        %1832 = vmatpush2.bf16.msra.mxu0 %v1601
        %1833 = vmatprep.subr.bf16.mxu0 %v1598
        %1834 = vmatpush2.bf16.msra.mxu0 %v1597
        %1835 = vmatprep.subr.bf16.mxu0 %v1594
        %1836 = vmatpush2.bf16.msra.mxu0 %v1593
        %1837 = vmatprep.subr.bf16.mxu0 %v1590
        %1838 = vmatpush2.bf16.msra.mxu0 %v1589
        %1839 = vmatprep.subr.bf16.mxu0 %v1586
        %1840 = vmatpush2.bf16.msra.mxu0 %v1585
        %1841 = vmatprep.mubr.bf16.mxu0 %v1162
        %1842 = vmatmul.mubr.bf16.gmra.mxu0 %v1161
        %v1843 = vpop.f32.mrf.mxu0
        %v1844 = vadd.f32 0.0, %v1843
        %v1845 = vpop.f32.mrf.mxu0
        %v1846 = vadd.f32 0.0, %v1845
        %v1847 = vpop.f32.mrf.mxu0
        %v1848 = vadd.f32 0.0, %v1847
        %v1849 = vpop.f32.mrf.mxu0
        %v1850 = vadd.f32 0.0, %v1849
        %1851 = vmatprep.mubr.bf16.mxu0 %v1166
        %1852 = vmatmul.mubr.bf16.gmra.mxu0 %v1165
        %v1853 = vpop.f32.mrf.mxu0
        %v1854 = vadd.f32 0.0, %v1853
        %v1855 = vpop.f32.mrf.mxu0
        %v1856 = vadd.f32 0.0, %v1855
        %v1857 = vpop.f32.mrf.mxu0
        %v1858 = vadd.f32 0.0, %v1857
        %v1859 = vpop.f32.mrf.mxu0
        %v1860 = vadd.f32 0.0, %v1859
        %1861 = vdwg.mxu0
        %1862 = vmatprep.subr.bf16.mxu0 %v1646
        %1863 = vmatpush1.bf16.msra.mxu0 %v1645
        %1864 = vmatprep.subr.bf16.mxu0 %v1642
        %1865 = vmatpush1.bf16.msra.mxu0 %v1641
        %1866 = vmatprep.subr.bf16.mxu0 %v1638
        %1867 = vmatpush1.bf16.msra.mxu0 %v1637
        %1868 = vmatprep.subr.bf16.mxu0 %v1634
        %1869 = vmatpush1.bf16.msra.mxu0 %v1633
        %1870 = vmatprep.subr.bf16.mxu0 %v1630
        %1871 = vmatpush1.bf16.msra.mxu0 %v1629
        %1872 = vmatprep.subr.bf16.mxu0 %v1626
        %1873 = vmatpush1.bf16.msra.mxu0 %v1625
        %1874 = vmatprep.subr.bf16.mxu0 %v1622
        %1875 = vmatpush1.bf16.msra.mxu0 %v1621
        %1876 = vmatprep.subr.bf16.mxu0 %v1618
        %1877 = vmatpush1.bf16.msra.mxu0 %v1617
        %1878 = vmatprep.subr.bf16.mxu0 %v1678
        %1879 = vmatpush2.bf16.msra.mxu0 %v1677
        %1880 = vmatprep.subr.bf16.mxu0 %v1674
        %1881 = vmatpush2.bf16.msra.mxu0 %v1673
        %1882 = vmatprep.subr.bf16.mxu0 %v1670
        %1883 = vmatpush2.bf16.msra.mxu0 %v1669
        %1884 = vmatprep.subr.bf16.mxu0 %v1666
        %1885 = vmatpush2.bf16.msra.mxu0 %v1665
        %1886 = vmatprep.subr.bf16.mxu0 %v1662
        %1887 = vmatpush2.bf16.msra.mxu0 %v1661
        %1888 = vmatprep.subr.bf16.mxu0 %v1658
        %1889 = vmatpush2.bf16.msra.mxu0 %v1657
        %1890 = vmatprep.subr.bf16.mxu0 %v1654
        %1891 = vmatpush2.bf16.msra.mxu0 %v1653
        %1892 = vmatprep.subr.bf16.mxu0 %v1650
        %1893 = vmatpush2.bf16.msra.mxu0 %v1649
        %1894 = vmatprep.mubr.bf16.mxu0 %v1164
        %1895 = vmatmul.mubr.bf16.gmra.mxu0 %v1163
        %v1896 = vpop.f32.mrf.mxu0
        %v1897 = vadd.f32 %v1844, %v1896
        %v1898 = vpop.f32.mrf.mxu0
        %v1899 = vadd.f32 %v1846, %v1898
        %v1900 = vpop.f32.mrf.mxu0
        %v1901 = vadd.f32 %v1848, %v1900
        %v1902 = vpop.f32.mrf.mxu0
        %v1903 = vadd.f32 %v1850, %v1902
        %1904 = vmatprep.mubr.bf16.mxu0 %v1168
        %1905 = vmatmul.mubr.bf16.gmra.mxu0 %v1167
        %v1906 = vpop.f32.mrf.mxu0
        %v1907 = vadd.f32 %v1854, %v1906
        %v1908 = vpop.f32.mrf.mxu0
        %v1909 = vadd.f32 %v1856, %v1908
        %v1910 = vpop.f32.mrf.mxu0
        %v1911 = vadd.f32 %v1858, %v1910
        %v1912 = vpop.f32.mrf.mxu0
        %v1913 = vadd.f32 %v1860, %v1912
        %1914 = vdwg.mxu0
        %1915 = vmatprep.subr.bf16.mxu0 %v1584
        %1916 = vmatpush1.bf16.msra.mxu0 %v1583
        %1917 = vmatprep.subr.bf16.mxu0 %v1580
        %1918 = vmatpush1.bf16.msra.mxu0 %v1579
        %1919 = vmatprep.subr.bf16.mxu0 %v1576
        %1920 = vmatpush1.bf16.msra.mxu0 %v1575
        %1921 = vmatprep.subr.bf16.mxu0 %v1572
        %1922 = vmatpush1.bf16.msra.mxu0 %v1571
        %1923 = vmatprep.subr.bf16.mxu0 %v1568
        %1924 = vmatpush1.bf16.msra.mxu0 %v1567
        %1925 = vmatprep.subr.bf16.mxu0 %v1564
        %1926 = vmatpush1.bf16.msra.mxu0 %v1563
        %1927 = vmatprep.subr.bf16.mxu0 %v1560
        %1928 = vmatpush1.bf16.msra.mxu0 %v1559
        %1929 = vmatprep.subr.bf16.mxu0 %v1556
        %1930 = vmatpush1.bf16.msra.mxu0 %v1555
        %1931 = vmatprep.subr.bf16.mxu0 %v1616
        %1932 = vmatpush2.bf16.msra.mxu0 %v1615
        %1933 = vmatprep.subr.bf16.mxu0 %v1612
        %1934 = vmatpush2.bf16.msra.mxu0 %v1611
        %1935 = vmatprep.subr.bf16.mxu0 %v1608
        %1936 = vmatpush2.bf16.msra.mxu0 %v1607
        %1937 = vmatprep.subr.bf16.mxu0 %v1604
        %1938 = vmatpush2.bf16.msra.mxu0 %v1603
        %1939 = vmatprep.subr.bf16.mxu0 %v1600
        %1940 = vmatpush2.bf16.msra.mxu0 %v1599
        %1941 = vmatprep.subr.bf16.mxu0 %v1596
        %1942 = vmatpush2.bf16.msra.mxu0 %v1595
        %1943 = vmatprep.subr.bf16.mxu0 %v1592
        %1944 = vmatpush2.bf16.msra.mxu0 %v1591
        %1945 = vmatprep.subr.bf16.mxu0 %v1588
        %1946 = vmatpush2.bf16.msra.mxu0 %v1587
        %1947 = vmatprep.mubr.bf16.mxu0 %v1162
        %1948 = vmatmul.mubr.bf16.gmra.mxu0 %v1161
        %v1949 = vpop.f32.mrf.mxu0
        %v1950 = vadd.f32 0.0, %v1949
        %v1951 = vpop.f32.mrf.mxu0
        %v1952 = vadd.f32 0.0, %v1951
        %v1953 = vpop.f32.mrf.mxu0
        %v1954 = vadd.f32 0.0, %v1953
        %v1955 = vpop.f32.mrf.mxu0
        %v1956 = vadd.f32 0.0, %v1955
        %1957 = vmatprep.mubr.bf16.mxu0 %v1166
        %1958 = vmatmul.mubr.bf16.gmra.mxu0 %v1165
        %v1959 = vpop.f32.mrf.mxu0
        %v1960 = vadd.f32 0.0, %v1959
        %v1961 = vpop.f32.mrf.mxu0
        %v1962 = vadd.f32 0.0, %v1961
        %v1963 = vpop.f32.mrf.mxu0
        %v1964 = vadd.f32 0.0, %v1963
        %v1965 = vpop.f32.mrf.mxu0
        %v1966 = vadd.f32 0.0, %v1965
        %1967 = vdwg.mxu0
        %1968 = vmatprep.subr.bf16.mxu0 %v1648
        %1969 = vmatpush1.bf16.msra.mxu0 %v1647
        %1970 = vmatprep.subr.bf16.mxu0 %v1644
        %1971 = vmatpush1.bf16.msra.mxu0 %v1643
        %1972 = vmatprep.subr.bf16.mxu0 %v1640
        %1973 = vmatpush1.bf16.msra.mxu0 %v1639
        %1974 = vmatprep.subr.bf16.mxu0 %v1636
        %1975 = vmatpush1.bf16.msra.mxu0 %v1635
        %1976 = vmatprep.subr.bf16.mxu0 %v1632
        %1977 = vmatpush1.bf16.msra.mxu0 %v1631
        %1978 = vmatprep.subr.bf16.mxu0 %v1628
        %1979 = vmatpush1.bf16.msra.mxu0 %v1627
        %1980 = vmatprep.subr.bf16.mxu0 %v1624
        %1981 = vmatpush1.bf16.msra.mxu0 %v1623
        %1982 = vmatprep.subr.bf16.mxu0 %v1620
        %1983 = vmatpush1.bf16.msra.mxu0 %v1619
        %1984 = vmatprep.subr.bf16.mxu0 %v1680
        %1985 = vmatpush2.bf16.msra.mxu0 %v1679
        %1986 = vmatprep.subr.bf16.mxu0 %v1676
        %1987 = vmatpush2.bf16.msra.mxu0 %v1675
        %1988 = vmatprep.subr.bf16.mxu0 %v1672
        %1989 = vmatpush2.bf16.msra.mxu0 %v1671
        %1990 = vmatprep.subr.bf16.mxu0 %v1668
        %1991 = vmatpush2.bf16.msra.mxu0 %v1667
        %1992 = vmatprep.subr.bf16.mxu0 %v1664
        %1993 = vmatpush2.bf16.msra.mxu0 %v1663
        %1994 = vmatprep.subr.bf16.mxu0 %v1660
        %1995 = vmatpush2.bf16.msra.mxu0 %v1659
        %1996 = vmatprep.subr.bf16.mxu0 %v1656
        %1997 = vmatpush2.bf16.msra.mxu0 %v1655
        %1998 = vmatprep.subr.bf16.mxu0 %v1652
        %1999 = vmatpush2.bf16.msra.mxu0 %v1651
        %2000 = vmatprep.mubr.bf16.mxu0 %v1164
        %2001 = vmatmul.mubr.bf16.gmra.mxu0 %v1163
        %v2002 = vpop.f32.mrf.mxu0
        %v2003 = vadd.f32 %v1950, %v2002
        %v2004 = vpop.f32.mrf.mxu0
        %v2005 = vadd.f32 %v1952, %v2004
        %v2006 = vpop.f32.mrf.mxu0
        %v2007 = vadd.f32 %v1954, %v2006
        %v2008 = vpop.f32.mrf.mxu0
        %v2009 = vadd.f32 %v1956, %v2008
        %2010 = vmatprep.mubr.bf16.mxu0 %v1168
        %2011 = vmatmul.mubr.bf16.gmra.mxu0 %v1167
        %v2012 = vpop.f32.mrf.mxu0
        %v2013 = vadd.f32 %v1960, %v2012
        %v2014 = vpop.f32.mrf.mxu0
        %v2015 = vadd.f32 %v1962, %v2014
        %v2016 = vpop.f32.mrf.mxu0
        %v2017 = vadd.f32 %v1964, %v2016
        %v2018 = vpop.f32.mrf.mxu0
        %v2019 = vadd.f32 %v1966, %v2018
        %2020 = vdwg.mxu0
        %v2021 = vadd.f32 %v344, %v1897
        %v2022 = vadd.f32 %v345, %v1899
        %v2023 = vadd.f32 %v346, %v2003
        %v2024 = vadd.f32 %v347, %v2005
        %v2025 = vadd.f32 %v348, %v1901
        %v2026 = vadd.f32 %v349, %v1903
        %v2027 = vadd.f32 %v350, %v2007
        %v2028 = vadd.f32 %v351, %v2009
        %v2029 = vadd.f32 %v352, %v1907
        %v2030 = vadd.f32 %v353, %v1909
        %v2031 = vadd.f32 %v354, %v2013
        %v2032 = vadd.f32 %v355, %v2015
        %v2033 = vadd.f32 %v356, %v1911
        %v2034 = vadd.f32 %v357, %v1913
        %v2035 = vadd.f32 %v358, %v2017
        %v2036 = vadd.f32 %v359, %v2019
        %v2037 = vadd.f32 %v2021, %v2022
        %v2038 = vadd.f32 %v2037, %v2023
        %v2039 = vadd.f32 %v2038, %v2024
        %2040 = vadd.xlane.f32.xlu0 %v2039
        %v2041 = vpop.xlane.xlu0 %2040
        %v2042 = vadd.f32 %v2025, %v2026
        %v2043 = vadd.f32 %v2042, %v2027
        %v2044 = vadd.f32 %v2043, %v2028
        %2045 = vadd.xlane.f32.xlu0 %v2044
        %v2046 = vpop.xlane.xlu0 %2045
        %v2047 = vadd.f32 %v2029, %v2030
        %v2048 = vadd.f32 %v2047, %v2031
        %v2049 = vadd.f32 %v2048, %v2032
        %2050 = vadd.xlane.f32.xlu0 %v2049
        %v2051 = vpop.xlane.xlu0 %2050
        %v2052 = vadd.f32 %v2033, %v2034
        %v2053 = vadd.f32 %v2052, %v2035
        %v2054 = vadd.f32 %v2053, %v2036
        %2055 = vadd.xlane.f32.xlu0 %v2054
        %v2056 = vpop.xlane.xlu0 %2055
        %v2057 = vrcp.pop 512.0
        %v2058 = vmul.f32 %v2041, %v2057
        %v2059 = vmul.f32 %v2046, %v2057
        %v2060 = vmul.f32 %v2051, %v2057
        %v2061 = vmul.f32 %v2056, %v2057
        %v2062 = vsub.f32 %v2021, %v2058
        %v2063 = vsub.f32 %v2022, %v2058
        %v2064 = vsub.f32 %v2023, %v2058
        %v2065 = vsub.f32 %v2024, %v2058
        %v2066 = vsub.f32 %v2025, %v2059
        %v2067 = vsub.f32 %v2026, %v2059
        %v2068 = vsub.f32 %v2027, %v2059
        %v2069 = vsub.f32 %v2028, %v2059
        %v2070 = vsub.f32 %v2029, %v2060
        %v2071 = vsub.f32 %v2030, %v2060
        %v2072 = vsub.f32 %v2031, %v2060
        %v2073 = vsub.f32 %v2032, %v2060
        %v2074 = vsub.f32 %v2033, %v2061
        %v2075 = vsub.f32 %v2034, %v2061
        %v2076 = vsub.f32 %v2035, %v2061
        %v2077 = vsub.f32 %v2036, %v2061
        %v2078 = vmul.f32 %v2062, %v2062
        %v2079 = vmul.f32 %v2063, %v2063
        %v2080 = vmul.f32 %v2064, %v2064
        %v2081 = vmul.f32 %v2065, %v2065
        %v2082 = vmul.f32 %v2066, %v2066
        %v2083 = vmul.f32 %v2067, %v2067
        %v2084 = vmul.f32 %v2068, %v2068
        %v2085 = vmul.f32 %v2069, %v2069
        %v2086 = vmul.f32 %v2070, %v2070
        %v2087 = vmul.f32 %v2071, %v2071
        %v2088 = vmul.f32 %v2072, %v2072
        %v2089 = vmul.f32 %v2073, %v2073
        %v2090 = vmul.f32 %v2074, %v2074
        %v2091 = vmul.f32 %v2075, %v2075
        %v2092 = vmul.f32 %v2076, %v2076
        %v2093 = vmul.f32 %v2077, %v2077
        %v2094 = vadd.f32 %v2078, %v2079
        %v2095 = vadd.f32 %v2094, %v2080
        %v2096 = vadd.f32 %v2095, %v2081
        %2097 = vadd.xlane.f32.xlu0 %v2096
        %v2098 = vpop.xlane.xlu0 %2097
        %v2099 = vadd.f32 %v2082, %v2083
        %v2100 = vadd.f32 %v2099, %v2084
        %v2101 = vadd.f32 %v2100, %v2085
        %2102 = vadd.xlane.f32.xlu0 %v2101
        %v2103 = vpop.xlane.xlu0 %2102
        %v2104 = vadd.f32 %v2086, %v2087
        %v2105 = vadd.f32 %v2104, %v2088
        %v2106 = vadd.f32 %v2105, %v2089
        %2107 = vadd.xlane.f32.xlu0 %v2106
        %v2108 = vpop.xlane.xlu0 %2107
        %v2109 = vadd.f32 %v2090, %v2091
        %v2110 = vadd.f32 %v2109, %v2092
        %v2111 = vadd.f32 %v2110, %v2093
        %2112 = vadd.xlane.f32.xlu0 %v2111
        %v2113 = vpop.xlane.xlu0 %2112
        %v2114 = vmul.f32 %v2098, %v2057
        %v2115 = vmul.f32 %v2103, %v2057
        %v2116 = vmul.f32 %v2108, %v2057
        %v2117 = vmul.f32 %v2113, %v2057
        %v2118 = vadd.f32 %v2114, 1e-05
        %v2119 = vadd.f32 %v2115, 1e-05
        %v2120 = vadd.f32 %v2116, 1e-05
        %v2121 = vadd.f32 %v2117, 1e-05
        %v2122 = vrsqrt.pop %v2118
        %v2123 = vrsqrt.pop %v2119
        %v2124 = vrsqrt.pop %v2120
        %v2125 = vrsqrt.pop %v2121
        %v2126 = vmul.f32 %v2062, %v2122
        %v2127 = vmul.f32 %v2063, %v2122
        %v2128 = vmul.f32 %v2064, %v2122
        %v2129 = vmul.f32 %v2065, %v2122
        %v2130 = vmul.f32 %v2066, %v2123
        %v2131 = vmul.f32 %v2067, %v2123
        %v2132 = vmul.f32 %v2068, %v2123
        %v2133 = vmul.f32 %v2069, %v2123
        %v2134 = vmul.f32 %v2070, %v2124
        %v2135 = vmul.f32 %v2071, %v2124
        %v2136 = vmul.f32 %v2072, %v2124
        %v2137 = vmul.f32 %v2073, %v2124
        %v2138 = vmul.f32 %v2074, %v2125
        %v2139 = vmul.f32 %v2075, %v2125
        %v2140 = vmul.f32 %v2076, %v2125
        %v2141 = vmul.f32 %v2077, %v2125
        %v2142 = vlaneseq
        %v2143 = vshrl.u32 %v2142, 7
        %v2144 = vsub.s32 2, %v2143
        %v2145 = vrot.slane %v880, %v2144
        %v2146 = vlaneseq
        %v2147 = vshrl.u32 %v2146, 7
        %v2148 = vsub.s32 2, %v2147
        %v2149 = vrot.slane %v881, %v2148
        %v2150 = vlaneseq
        %v2151 = vshrl.u32 %v2150, 7
        %v2152 = vsub.s32 2, %v2151
        %v2153 = vrot.slane %v882, %v2152
        %v2154 = vlaneseq
        %v2155 = vshrl.u32 %v2154, 7
        %v2156 = vsub.s32 2, %v2155
        %v2157 = vrot.slane %v883, %v2156
        %v2158 = vmul.f32 %v2126, %v2145
        %v2159 = vmul.f32 %v2127, %v2149
        %v2160 = vmul.f32 %v2128, %v2153
        %v2161 = vmul.f32 %v2129, %v2157
        %v2162 = vmul.f32 %v2130, %v2145
        %v2163 = vmul.f32 %v2131, %v2149
        %v2164 = vmul.f32 %v2132, %v2153
        %v2165 = vmul.f32 %v2133, %v2157
        %v2166 = vmul.f32 %v2134, %v2145
        %v2167 = vmul.f32 %v2135, %v2149
        %v2168 = vmul.f32 %v2136, %v2153
        %v2169 = vmul.f32 %v2137, %v2157
        %v2170 = vmul.f32 %v2138, %v2145
        %v2171 = vmul.f32 %v2139, %v2149
        %v2172 = vmul.f32 %v2140, %v2153
        %v2173 = vmul.f32 %v2141, %v2157
        %v2174 = vlaneseq
        %v2175 = vshrl.u32 %v2174, 7
        %v2176 = vsub.s32 3, %v2175
        %v2177 = vrot.slane %v880, %v2176
        %v2178 = vlaneseq
        %v2179 = vshrl.u32 %v2178, 7
        %v2180 = vsub.s32 3, %v2179
        %v2181 = vrot.slane %v881, %v2180
        %v2182 = vlaneseq
        %v2183 = vshrl.u32 %v2182, 7
        %v2184 = vsub.s32 3, %v2183
        %v2185 = vrot.slane %v882, %v2184
        %v2186 = vlaneseq
        %v2187 = vshrl.u32 %v2186, 7
        %v2188 = vsub.s32 3, %v2187
        %v2189 = vrot.slane %v883, %v2188
        %v2190 = vadd.f32 %v2158, %v2177
        %v2191 = vadd.f32 %v2159, %v2181
        %v2192 = vadd.f32 %v2160, %v2185
        %v2193 = vadd.f32 %v2161, %v2189
        %v2194 = vadd.f32 %v2162, %v2177
        %v2195 = vadd.f32 %v2163, %v2181
        %v2196 = vadd.f32 %v2164, %v2185
        %v2197 = vadd.f32 %v2165, %v2189
        %v2198 = vadd.f32 %v2166, %v2177
        %v2199 = vadd.f32 %v2167, %v2181
        %v2200 = vadd.f32 %v2168, %v2185
        %v2201 = vadd.f32 %v2169, %v2189
        %v2202 = vadd.f32 %v2170, %v2177
        %v2203 = vadd.f32 %v2171, %v2181
        %v2204 = vadd.f32 %v2172, %v2185
        %v2205 = vadd.f32 %v2173, %v2189
        %v2206 = vpack.c.bf16 %v2194, %v2190
        %v2207 = vpack.c.bf16 %v2195, %v2191
        %v2208 = vpack.c.bf16 %v2196, %v2192
        %v2209 = vpack.c.bf16 %v2197, %v2193
        %v2210 = vpack.c.bf16 %v2202, %v2198
        %v2211 = vpack.c.bf16 %v2203, %v2199
        %v2212 = vpack.c.bf16 %v2204, %v2200
        %v2213 = vpack.c.bf16 %v2205, %v2201
        %v2214 = vld [vmem:[%s2] sm:$0xff]
        %v2215 = vld [vmem:[%s2 + $0x8] sm:$0xff]
        %v2216 = vld [vmem:[%s2 + $0x10] sm:$0xff]
        %v2217 = vld [vmem:[%s2 + $0x18] sm:$0xff]
        %v2226 = vunpack.c.l.b16 %v360
        %v2227 = vunpack.c.h.b16 %v360
        %v2228 = vunpack.c.l.b16 %v361
        %v2229 = vunpack.c.h.b16 %v361
        %v2230 = vunpack.c.l.b16 %v362
        %v2231 = vunpack.c.h.b16 %v362
        %v2232 = vunpack.c.l.b16 %v363
        %v2233 = vunpack.c.h.b16 %v363
        %v2234 = vunpack.c.l.b16 %v364
        %v2235 = vunpack.c.h.b16 %v364
        %v2236 = vunpack.c.l.b16 %v365
        %v2237 = vunpack.c.h.b16 %v365
        %v2238 = vunpack.c.l.b16 %v366
        %v2239 = vunpack.c.h.b16 %v366
        %v2240 = vunpack.c.l.b16 %v367
        %v2241 = vunpack.c.h.b16 %v367
        %v2242 = vpack.c.b16 %v2230, %v2226
        %v2243 = vpack.c.b16 %v2231, %v2227
        %v2244 = vpack.c.b16 %v2232, %v2228
        %v2245 = vpack.c.b16 %v2233, %v2229
        %v2246 = vpack.c.b16 %v2238, %v2234
        %v2247 = vpack.c.b16 %v2239, %v2235
        %v2248 = vpack.c.b16 %v2240, %v2236
        %v2249 = vpack.c.b16 %v2241, %v2237
        %2258 = vmatprep.subr.bf16.mxu0 0
        %2259 = vmatpush1.bf16.xpose.msra.mxu0 0
        %2260 = vmatprep.subr.bf16.mxu0 0
        %2261 = vmatpush1.bf16.xpose.msra.mxu0 0
        %2262 = vmatprep.subr.bf16.mxu0 0
        %2263 = vmatpush1.bf16.xpose.msra.mxu0 0
        %2264 = vmatprep.subr.bf16.mxu0 0
        %2265 = vmatpush1.bf16.xpose.msra.mxu0 0
        %2266 = vmatprep.subr.bf16.mxu0 0
        %2267 = vmatpush1.bf16.xpose.msra.mxu0 0
        %2268 = vmatprep.subr.bf16.mxu0 0
        %2269 = vmatpush1.bf16.xpose.msra.mxu0 0
        %2270 = vmatprep.subr.bf16.mxu0 %v2247
        %2271 = vmatpush1.bf16.xpose.msra.mxu0 %v2246
        %2272 = vmatprep.subr.bf16.mxu0 %v2243
        %2273 = vmatpush1.bf16.xpose.msra.mxu0 %v2242
        %2274 = vmatprep.subr.bf16.mxu0 0
        %2275 = vmatpush2.bf16.xpose.msra.mxu0 0
        %2276 = vmatprep.subr.bf16.mxu0 0
        %2277 = vmatpush2.bf16.xpose.msra.mxu0 0
        %2278 = vmatprep.subr.bf16.mxu0 0
        %2279 = vmatpush2.bf16.xpose.msra.mxu0 0
        %2280 = vmatprep.subr.bf16.mxu0 0
        %2281 = vmatpush2.bf16.xpose.msra.mxu0 0
        %2282 = vmatprep.subr.bf16.mxu0 0
        %2283 = vmatpush2.bf16.xpose.msra.mxu0 0
        %2284 = vmatprep.subr.bf16.mxu0 0
        %2285 = vmatpush2.bf16.xpose.msra.mxu0 0
        %2286 = vmatprep.subr.bf16.mxu0 0
        %2287 = vmatpush2.bf16.xpose.msra.mxu0 0
        %2288 = vmatprep.subr.bf16.mxu0 0
        %2289 = vmatpush2.bf16.xpose.msra.mxu0 0
        %2290 = vmatprep.mubr.bf16.mxu0 %v2207
        %2291 = vmatmul.mubr.bf16.gmra.mxu0 %v2206
        %v2292 = vpop.f32.mrf.mxu0
        %v2293 = vadd.f32 0.0, %v2292
        %v2294 = vpop.f32.mrf.mxu0
        %v2295 = vpop.f32.mrf.mxu0
        %v2296 = vadd.f32 0.0, %v2295
        %v2297 = vpop.f32.mrf.mxu0
        %2298 = vmatprep.mubr.bf16.mxu0 %v2211
        %2299 = vmatmul.mubr.bf16.gmra.mxu0 %v2210
        %v2300 = vpop.f32.mrf.mxu0
        %v2301 = vadd.f32 0.0, %v2300
        %v2302 = vpop.f32.mrf.mxu0
        %v2303 = vpop.f32.mrf.mxu0
        %v2304 = vadd.f32 0.0, %v2303
        %v2305 = vpop.f32.mrf.mxu0
        %2306 = vdwg.mxu0
        %2307 = vmatprep.subr.bf16.mxu0 0
        %2308 = vmatpush1.bf16.xpose.msra.mxu0 0
        %2309 = vmatprep.subr.bf16.mxu0 0
        %2310 = vmatpush1.bf16.xpose.msra.mxu0 0
        %2311 = vmatprep.subr.bf16.mxu0 0
        %2312 = vmatpush1.bf16.xpose.msra.mxu0 0
        %2313 = vmatprep.subr.bf16.mxu0 0
        %2314 = vmatpush1.bf16.xpose.msra.mxu0 0
        %2315 = vmatprep.subr.bf16.mxu0 0
        %2316 = vmatpush1.bf16.xpose.msra.mxu0 0
        %2317 = vmatprep.subr.bf16.mxu0 0
        %2318 = vmatpush1.bf16.xpose.msra.mxu0 0
        %2319 = vmatprep.subr.bf16.mxu0 %v2249
        %2320 = vmatpush1.bf16.xpose.msra.mxu0 %v2248
        %2321 = vmatprep.subr.bf16.mxu0 %v2245
        %2322 = vmatpush1.bf16.xpose.msra.mxu0 %v2244
        %2323 = vmatprep.subr.bf16.mxu0 0
        %2324 = vmatpush2.bf16.xpose.msra.mxu0 0
        %2325 = vmatprep.subr.bf16.mxu0 0
        %2326 = vmatpush2.bf16.xpose.msra.mxu0 0
        %2327 = vmatprep.subr.bf16.mxu0 0
        %2328 = vmatpush2.bf16.xpose.msra.mxu0 0
        %2329 = vmatprep.subr.bf16.mxu0 0
        %2330 = vmatpush2.bf16.xpose.msra.mxu0 0
        %2331 = vmatprep.subr.bf16.mxu0 0
        %2332 = vmatpush2.bf16.xpose.msra.mxu0 0
        %2333 = vmatprep.subr.bf16.mxu0 0
        %2334 = vmatpush2.bf16.xpose.msra.mxu0 0
        %2335 = vmatprep.subr.bf16.mxu0 0
        %2336 = vmatpush2.bf16.xpose.msra.mxu0 0
        %2337 = vmatprep.subr.bf16.mxu0 0
        %2338 = vmatpush2.bf16.xpose.msra.mxu0 0
        %2339 = vmatprep.mubr.bf16.mxu0 %v2209
        %2340 = vmatmul.mubr.bf16.gmra.mxu0 %v2208
        %v2341 = vpop.f32.mrf.mxu0
        %v2342 = vadd.f32 %v2293, %v2341
        %v2343 = vpop.f32.mrf.mxu0
        %v2344 = vpop.f32.mrf.mxu0
        %v2345 = vadd.f32 %v2296, %v2344
        %v2346 = vpop.f32.mrf.mxu0
        %2347 = vmatprep.mubr.bf16.mxu0 %v2213
        %2348 = vmatmul.mubr.bf16.gmra.mxu0 %v2212
        %v2349 = vpop.f32.mrf.mxu0
        %v2350 = vadd.f32 %v2301, %v2349
        %v2351 = vpop.f32.mrf.mxu0
        %v2352 = vpop.f32.mrf.mxu0
        %v2353 = vadd.f32 %v2304, %v2352
        %v2354 = vpop.f32.mrf.mxu0
        %2355 = vdwg.mxu0
        %v2356 = vmul.f32 %v2342, 0.125
        %v2357 = vmul.f32 %v2345, 0.125
        %v2358 = vmul.f32 %v2350, 0.125
        %v2359 = vmul.f32 %v2353, 0.125
        %v2360 = vadd.f32 %v2356, %v2214
        %v2361 = vadd.f32 %v2357, %v2215
        %v2362 = vadd.f32 %v2358, %v2216
        %v2363 = vadd.f32 %v2359, %v2217
        %v2364 = vsel %vm1002, %v2360, -inf
        %2365 = vmax.xlane.f32.xlu0 %v2364
        %v2366 = vpop.xlane.xlu0 %2365
        %v2367 = vsel %vm1002, %v2361, -inf
        %2368 = vmax.xlane.f32.xlu0 %v2367
        %v2369 = vpop.xlane.xlu0 %2368
        %v2370 = vsel %vm1002, %v2362, -inf
        %2371 = vmax.xlane.f32.xlu0 %v2370
        %v2372 = vpop.xlane.xlu0 %2371
        %v2373 = vsel %vm1002, %v2363, -inf
        %2374 = vmax.xlane.f32.xlu0 %v2373
        %v2375 = vpop.xlane.xlu0 %2374
        %v2376 = vsub.f32 %v2360, %v2366
        %v2377 = vsub.f32 %v2361, %v2369
        %v2378 = vsub.f32 %v2362, %v2372
        %v2379 = vsub.f32 %v2363, %v2375
        %v2380 = vmul.f32 %v2376, 1.442695
        %v2381 = vpow.pop %v2380
        %v2382 = vmul.f32 %v2377, 1.442695
        %v2383 = vpow.pop %v2382
        %v2384 = vmul.f32 %v2378, 1.442695
        %v2385 = vpow.pop %v2384
        %v2386 = vmul.f32 %v2379, 1.442695
        %v2387 = vpow.pop %v2386
        %v2388 = vsel %vm1002, %v2381, 0.0
        %2389 = vadd.xlane.f32.xlu0 %v2388
        %v2390 = vpop.xlane.xlu0 %2389
        %v2391 = vsel %vm1002, %v2383, 0.0
        %2392 = vadd.xlane.f32.xlu0 %v2391
        %v2393 = vpop.xlane.xlu0 %2392
        %v2394 = vsel %vm1002, %v2385, 0.0
        %2395 = vadd.xlane.f32.xlu0 %v2394
        %v2396 = vpop.xlane.xlu0 %2395
        %v2397 = vsel %vm1002, %v2387, 0.0
        %2398 = vadd.xlane.f32.xlu0 %v2397
        %v2399 = vpop.xlane.xlu0 %2398
        %v2400 = vrcp.pop %v2390
        %v2401 = vrcp.pop %v2393
        %v2402 = vrcp.pop %v2396
        %v2403 = vrcp.pop %v2399
        %v2404 = vmul.f32 %v2381, %v2400
        %v2405 = vmul.f32 %v2383, %v2401
        %v2406 = vmul.f32 %v2385, %v2402
        %v2407 = vmul.f32 %v2387, %v2403
        %v2408 = vpack.c.bf16 %v2405, %v2404
        %v2409 = vpack.c.bf16 %v2407, %v2406
        %v2411 = vsel %vm1002, %v2408, 0
        %v2414 = vsel %vm1002, %v2409, 0
        %2416 = vmatprep.subr.bf16.mxu0 0
        %2417 = vmatpush1.bf16.msra.mxu0 0
        %2418 = vmatprep.subr.bf16.mxu0 0
        %2419 = vmatpush1.bf16.msra.mxu0 0
        %2420 = vmatprep.subr.bf16.mxu0 0
        %2421 = vmatpush1.bf16.msra.mxu0 0
        %2422 = vmatprep.subr.bf16.mxu0 0
        %2423 = vmatpush1.bf16.msra.mxu0 0
        %2424 = vmatprep.subr.bf16.mxu0 0
        %2425 = vmatpush1.bf16.msra.mxu0 0
        %2426 = vmatprep.subr.bf16.mxu0 0
        %2427 = vmatpush1.bf16.msra.mxu0 0
        %2428 = vmatprep.subr.bf16.mxu0 %v2247
        %2429 = vmatpush1.bf16.msra.mxu0 %v2246
        %2430 = vmatprep.subr.bf16.mxu0 %v2243
        %2431 = vmatpush1.bf16.msra.mxu0 %v2242
        %2432 = vmatprep.subr.bf16.mxu0 0
        %2433 = vmatpush2.bf16.msra.mxu0 0
        %2434 = vmatprep.subr.bf16.mxu0 0
        %2435 = vmatpush2.bf16.msra.mxu0 0
        %2436 = vmatprep.subr.bf16.mxu0 0
        %2437 = vmatpush2.bf16.msra.mxu0 0
        %2438 = vmatprep.subr.bf16.mxu0 0
        %2439 = vmatpush2.bf16.msra.mxu0 0
        %2440 = vmatprep.subr.bf16.mxu0 0
        %2441 = vmatpush2.bf16.msra.mxu0 0
        %2442 = vmatprep.subr.bf16.mxu0 0
        %2443 = vmatpush2.bf16.msra.mxu0 0
        %2444 = vmatprep.subr.bf16.mxu0 0
        %2445 = vmatpush2.bf16.msra.mxu0 0
        %2446 = vmatprep.subr.bf16.mxu0 0
        %2447 = vmatpush2.bf16.msra.mxu0 0
        %2448 = vmatprep.mubr.bf16.mxu0 0
        %2449 = vmatmul.mubr.bf16.gmra.mxu0 %v2411
        %v2450 = vpop.f32.mrf.mxu0
        %v2451 = vadd.f32 0.0, %v2450
        %v2452 = vpop.f32.mrf.mxu0
        %v2453 = vadd.f32 0.0, %v2452
        %v2454 = vpop.f32.mrf.mxu0
        %v2455 = vadd.f32 0.0, %v2454
        %v2456 = vpop.f32.mrf.mxu0
        %v2457 = vadd.f32 0.0, %v2456
        %2458 = vmatprep.mubr.bf16.mxu0 0
        %2459 = vmatmul.mubr.bf16.gmra.mxu0 %v2414
        %v2460 = vpop.f32.mrf.mxu0
        %v2461 = vadd.f32 0.0, %v2460
        %v2462 = vpop.f32.mrf.mxu0
        %v2463 = vadd.f32 0.0, %v2462
        %v2464 = vpop.f32.mrf.mxu0
        %v2465 = vadd.f32 0.0, %v2464
        %v2466 = vpop.f32.mrf.mxu0
        %v2467 = vadd.f32 0.0, %v2466
        %2468 = vdwg.mxu0
        %2469 = vmatprep.subr.bf16.mxu0 0
        %2470 = vmatpush1.bf16.msra.mxu0 0
        %2471 = vmatprep.subr.bf16.mxu0 0
        %2472 = vmatpush1.bf16.msra.mxu0 0
        %2473 = vmatprep.subr.bf16.mxu0 0
        %2474 = vmatpush1.bf16.msra.mxu0 0
        %2475 = vmatprep.subr.bf16.mxu0 0
        %2476 = vmatpush1.bf16.msra.mxu0 0
        %2477 = vmatprep.subr.bf16.mxu0 0
        %2478 = vmatpush1.bf16.msra.mxu0 0
        %2479 = vmatprep.subr.bf16.mxu0 0
        %2480 = vmatpush1.bf16.msra.mxu0 0
        %2481 = vmatprep.subr.bf16.mxu0 %v2249
        %2482 = vmatpush1.bf16.msra.mxu0 %v2248
        %2483 = vmatprep.subr.bf16.mxu0 %v2245
        %2484 = vmatpush1.bf16.msra.mxu0 %v2244
        %2485 = vmatprep.subr.bf16.mxu0 0
        %2486 = vmatpush2.bf16.msra.mxu0 0
        %2487 = vmatprep.subr.bf16.mxu0 0
        %2488 = vmatpush2.bf16.msra.mxu0 0
        %2489 = vmatprep.subr.bf16.mxu0 0
        %2490 = vmatpush2.bf16.msra.mxu0 0
        %2491 = vmatprep.subr.bf16.mxu0 0
        %2492 = vmatpush2.bf16.msra.mxu0 0
        %2493 = vmatprep.subr.bf16.mxu0 0
        %2494 = vmatpush2.bf16.msra.mxu0 0
        %2495 = vmatprep.subr.bf16.mxu0 0
        %2496 = vmatpush2.bf16.msra.mxu0 0
        %2497 = vmatprep.subr.bf16.mxu0 0
        %2498 = vmatpush2.bf16.msra.mxu0 0
        %2499 = vmatprep.subr.bf16.mxu0 0
        %2500 = vmatpush2.bf16.msra.mxu0 0
        %2501 = vmatprep.mubr.bf16.mxu0 0
        %2502 = vmatmul.mubr.bf16.gmra.mxu0 %v2411
        %v2503 = vpop.f32.mrf.mxu0
        %v2504 = vadd.f32 0.0, %v2503
        %v2505 = vpop.f32.mrf.mxu0
        %v2506 = vadd.f32 0.0, %v2505
        %v2507 = vpop.f32.mrf.mxu0
        %v2508 = vadd.f32 0.0, %v2507
        %v2509 = vpop.f32.mrf.mxu0
        %v2510 = vadd.f32 0.0, %v2509
        %2511 = vmatprep.mubr.bf16.mxu0 0
        %2512 = vmatmul.mubr.bf16.gmra.mxu0 %v2414
        %v2513 = vpop.f32.mrf.mxu0
        %v2514 = vadd.f32 0.0, %v2513
        %v2515 = vpop.f32.mrf.mxu0
        %v2516 = vadd.f32 0.0, %v2515
        %v2517 = vpop.f32.mrf.mxu0
        %v2518 = vadd.f32 0.0, %v2517
        %v2519 = vpop.f32.mrf.mxu0
        %v2520 = vadd.f32 0.0, %v2519
        %2521 = vdwg.mxu0
        %v2522 = vpack.c.bf16 %v2455, %v2451
        %v2523 = vpack.c.bf16 %v2457, %v2453
        %v2524 = vpack.c.bf16 %v2508, %v2504
        %v2525 = vpack.c.bf16 %v2510, %v2506
        %v2526 = vpack.c.bf16 %v2465, %v2461
        %v2527 = vpack.c.bf16 %v2467, %v2463
        %v2528 = vpack.c.bf16 %v2518, %v2514
        %v2529 = vpack.c.bf16 %v2520, %v2516
        %v2658 = vunpack.c.l.b16 %v496
        %v2659 = vunpack.c.h.b16 %v496
        %v2660 = vunpack.c.l.b16 %v497
        %v2661 = vunpack.c.h.b16 %v497
        %v2662 = vunpack.c.l.b16 %v498
        %v2663 = vunpack.c.h.b16 %v498
        %v2664 = vunpack.c.l.b16 %v499
        %v2665 = vunpack.c.h.b16 %v499
        %v2666 = vunpack.c.l.b16 %v500
        %v2667 = vunpack.c.h.b16 %v500
        %v2668 = vunpack.c.l.b16 %v501
        %v2669 = vunpack.c.h.b16 %v501
        %v2670 = vunpack.c.l.b16 %v502
        %v2671 = vunpack.c.h.b16 %v502
        %v2672 = vunpack.c.l.b16 %v503
        %v2673 = vunpack.c.h.b16 %v503
        %v2674 = vunpack.c.l.b16 %v504
        %v2675 = vunpack.c.h.b16 %v504
        %v2676 = vunpack.c.l.b16 %v505
        %v2677 = vunpack.c.h.b16 %v505
        %v2678 = vunpack.c.l.b16 %v506
        %v2679 = vunpack.c.h.b16 %v506
        %v2680 = vunpack.c.l.b16 %v507
        %v2681 = vunpack.c.h.b16 %v507
        %v2682 = vunpack.c.l.b16 %v508
        %v2683 = vunpack.c.h.b16 %v508
        %v2684 = vunpack.c.l.b16 %v509
        %v2685 = vunpack.c.h.b16 %v509
        %v2686 = vunpack.c.l.b16 %v510
        %v2687 = vunpack.c.h.b16 %v510
        %v2688 = vunpack.c.l.b16 %v511
        %v2689 = vunpack.c.h.b16 %v511
        %v2690 = vunpack.c.l.b16 %v512
        %v2691 = vunpack.c.h.b16 %v512
        %v2692 = vunpack.c.l.b16 %v513
        %v2693 = vunpack.c.h.b16 %v513
        %v2694 = vunpack.c.l.b16 %v514
        %v2695 = vunpack.c.h.b16 %v514
        %v2696 = vunpack.c.l.b16 %v515
        %v2697 = vunpack.c.h.b16 %v515
        %v2698 = vunpack.c.l.b16 %v516
        %v2699 = vunpack.c.h.b16 %v516
        %v2700 = vunpack.c.l.b16 %v517
        %v2701 = vunpack.c.h.b16 %v517
        %v2702 = vunpack.c.l.b16 %v518
        %v2703 = vunpack.c.h.b16 %v518
        %v2704 = vunpack.c.l.b16 %v519
        %v2705 = vunpack.c.h.b16 %v519
        %v2706 = vunpack.c.l.b16 %v520
        %v2707 = vunpack.c.h.b16 %v520
        %v2708 = vunpack.c.l.b16 %v521
        %v2709 = vunpack.c.h.b16 %v521
        %v2710 = vunpack.c.l.b16 %v522
        %v2711 = vunpack.c.h.b16 %v522
        %v2712 = vunpack.c.l.b16 %v523
        %v2713 = vunpack.c.h.b16 %v523
        %v2714 = vunpack.c.l.b16 %v524
        %v2715 = vunpack.c.h.b16 %v524
        %v2716 = vunpack.c.l.b16 %v525
        %v2717 = vunpack.c.h.b16 %v525
        %v2718 = vunpack.c.l.b16 %v526
        %v2719 = vunpack.c.h.b16 %v526
        %v2720 = vunpack.c.l.b16 %v527
        %v2721 = vunpack.c.h.b16 %v527
        %v2722 = vunpack.c.l.b16 %v528
        %v2723 = vunpack.c.h.b16 %v528
        %v2724 = vunpack.c.l.b16 %v529
        %v2725 = vunpack.c.h.b16 %v529
        %v2726 = vunpack.c.l.b16 %v530
        %v2727 = vunpack.c.h.b16 %v530
        %v2728 = vunpack.c.l.b16 %v531
        %v2729 = vunpack.c.h.b16 %v531
        %v2730 = vunpack.c.l.b16 %v532
        %v2731 = vunpack.c.h.b16 %v532
        %v2732 = vunpack.c.l.b16 %v533
        %v2733 = vunpack.c.h.b16 %v533
        %v2734 = vunpack.c.l.b16 %v534
        %v2735 = vunpack.c.h.b16 %v534
        %v2736 = vunpack.c.l.b16 %v535
        %v2737 = vunpack.c.h.b16 %v535
        %v2738 = vunpack.c.l.b16 %v536
        %v2739 = vunpack.c.h.b16 %v536
        %v2740 = vunpack.c.l.b16 %v537
        %v2741 = vunpack.c.h.b16 %v537
        %v2742 = vunpack.c.l.b16 %v538
        %v2743 = vunpack.c.h.b16 %v538
        %v2744 = vunpack.c.l.b16 %v539
        %v2745 = vunpack.c.h.b16 %v539
        %v2746 = vunpack.c.l.b16 %v540
        %v2747 = vunpack.c.h.b16 %v540
        %v2748 = vunpack.c.l.b16 %v541
        %v2749 = vunpack.c.h.b16 %v541
        %v2750 = vunpack.c.l.b16 %v542
        %v2751 = vunpack.c.h.b16 %v542
        %v2752 = vunpack.c.l.b16 %v543
        %v2753 = vunpack.c.h.b16 %v543
        %v2754 = vunpack.c.l.b16 %v544
        %v2755 = vunpack.c.h.b16 %v544
        %v2756 = vunpack.c.l.b16 %v545
        %v2757 = vunpack.c.h.b16 %v545
        %v2758 = vunpack.c.l.b16 %v546
        %v2759 = vunpack.c.h.b16 %v546
        %v2760 = vunpack.c.l.b16 %v547
        %v2761 = vunpack.c.h.b16 %v547
        %v2762 = vunpack.c.l.b16 %v548
        %v2763 = vunpack.c.h.b16 %v548
        %v2764 = vunpack.c.l.b16 %v549
        %v2765 = vunpack.c.h.b16 %v549
        %v2766 = vunpack.c.l.b16 %v550
        %v2767 = vunpack.c.h.b16 %v550
        %v2768 = vunpack.c.l.b16 %v551
        %v2769 = vunpack.c.h.b16 %v551
        %v2770 = vunpack.c.l.b16 %v552
        %v2771 = vunpack.c.h.b16 %v552
        %v2772 = vunpack.c.l.b16 %v553
        %v2773 = vunpack.c.h.b16 %v553
        %v2774 = vunpack.c.l.b16 %v554
        %v2775 = vunpack.c.h.b16 %v554
        %v2776 = vunpack.c.l.b16 %v555
        %v2777 = vunpack.c.h.b16 %v555
        %v2778 = vunpack.c.l.b16 %v556
        %v2779 = vunpack.c.h.b16 %v556
        %v2780 = vunpack.c.l.b16 %v557
        %v2781 = vunpack.c.h.b16 %v557
        %v2782 = vunpack.c.l.b16 %v558
        %v2783 = vunpack.c.h.b16 %v558
        %v2784 = vunpack.c.l.b16 %v559
        %v2785 = vunpack.c.h.b16 %v559
        %v2786 = vunpack.c.l.b16 %v560
        %v2787 = vunpack.c.h.b16 %v560
        %v2788 = vunpack.c.l.b16 %v561
        %v2789 = vunpack.c.h.b16 %v561
        %v2790 = vunpack.c.l.b16 %v562
        %v2791 = vunpack.c.h.b16 %v562
        %v2792 = vunpack.c.l.b16 %v563
        %v2793 = vunpack.c.h.b16 %v563
        %v2794 = vunpack.c.l.b16 %v564
        %v2795 = vunpack.c.h.b16 %v564
        %v2796 = vunpack.c.l.b16 %v565
        %v2797 = vunpack.c.h.b16 %v565
        %v2798 = vunpack.c.l.b16 %v566
        %v2799 = vunpack.c.h.b16 %v566
        %v2800 = vunpack.c.l.b16 %v567
        %v2801 = vunpack.c.h.b16 %v567
        %v2802 = vunpack.c.l.b16 %v568
        %v2803 = vunpack.c.h.b16 %v568
        %v2804 = vunpack.c.l.b16 %v569
        %v2805 = vunpack.c.h.b16 %v569
        %v2806 = vunpack.c.l.b16 %v570
        %v2807 = vunpack.c.h.b16 %v570
        %v2808 = vunpack.c.l.b16 %v571
        %v2809 = vunpack.c.h.b16 %v571
        %v2810 = vunpack.c.l.b16 %v572
        %v2811 = vunpack.c.h.b16 %v572
        %v2812 = vunpack.c.l.b16 %v573
        %v2813 = vunpack.c.h.b16 %v573
        %v2814 = vunpack.c.l.b16 %v574
        %v2815 = vunpack.c.h.b16 %v574
        %v2816 = vunpack.c.l.b16 %v575
        %v2817 = vunpack.c.h.b16 %v575
        %v2818 = vunpack.c.l.b16 %v576
        %v2819 = vunpack.c.h.b16 %v576
        %v2820 = vunpack.c.l.b16 %v577
        %v2821 = vunpack.c.h.b16 %v577
        %v2822 = vunpack.c.l.b16 %v578
        %v2823 = vunpack.c.h.b16 %v578
        %v2824 = vunpack.c.l.b16 %v579
        %v2825 = vunpack.c.h.b16 %v579
        %v2826 = vunpack.c.l.b16 %v580
        %v2827 = vunpack.c.h.b16 %v580
        %v2828 = vunpack.c.l.b16 %v581
        %v2829 = vunpack.c.h.b16 %v581
        %v2830 = vunpack.c.l.b16 %v582
        %v2831 = vunpack.c.h.b16 %v582
        %v2832 = vunpack.c.l.b16 %v583
        %v2833 = vunpack.c.h.b16 %v583
        %v2834 = vunpack.c.l.b16 %v584
        %v2835 = vunpack.c.h.b16 %v584
        %v2836 = vunpack.c.l.b16 %v585
        %v2837 = vunpack.c.h.b16 %v585
        %v2838 = vunpack.c.l.b16 %v586
        %v2839 = vunpack.c.h.b16 %v586
        %v2840 = vunpack.c.l.b16 %v587
        %v2841 = vunpack.c.h.b16 %v587
        %v2842 = vunpack.c.l.b16 %v588
        %v2843 = vunpack.c.h.b16 %v588
        %v2844 = vunpack.c.l.b16 %v589
        %v2845 = vunpack.c.h.b16 %v589
        %v2846 = vunpack.c.l.b16 %v590
        %v2847 = vunpack.c.h.b16 %v590
        %v2848 = vunpack.c.l.b16 %v591
        %v2849 = vunpack.c.h.b16 %v591
        %v2850 = vunpack.c.l.b16 %v592
        %v2851 = vunpack.c.h.b16 %v592
        %v2852 = vunpack.c.l.b16 %v593
        %v2853 = vunpack.c.h.b16 %v593
        %v2854 = vunpack.c.l.b16 %v594
        %v2855 = vunpack.c.h.b16 %v594
        %v2856 = vunpack.c.l.b16 %v595
        %v2857 = vunpack.c.h.b16 %v595
        %v2858 = vunpack.c.l.b16 %v596
        %v2859 = vunpack.c.h.b16 %v596
        %v2860 = vunpack.c.l.b16 %v597
        %v2861 = vunpack.c.h.b16 %v597
        %v2862 = vunpack.c.l.b16 %v598
        %v2863 = vunpack.c.h.b16 %v598
        %v2864 = vunpack.c.l.b16 %v599
        %v2865 = vunpack.c.h.b16 %v599
        %v2866 = vunpack.c.l.b16 %v600
        %v2867 = vunpack.c.h.b16 %v600
        %v2868 = vunpack.c.l.b16 %v601
        %v2869 = vunpack.c.h.b16 %v601
        %v2870 = vunpack.c.l.b16 %v602
        %v2871 = vunpack.c.h.b16 %v602
        %v2872 = vunpack.c.l.b16 %v603
        %v2873 = vunpack.c.h.b16 %v603
        %v2874 = vunpack.c.l.b16 %v604
        %v2875 = vunpack.c.h.b16 %v604
        %v2876 = vunpack.c.l.b16 %v605
        %v2877 = vunpack.c.h.b16 %v605
        %v2878 = vunpack.c.l.b16 %v606
        %v2879 = vunpack.c.h.b16 %v606
        %v2880 = vunpack.c.l.b16 %v607
        %v2881 = vunpack.c.h.b16 %v607
        %v2882 = vunpack.c.l.b16 %v608
        %v2883 = vunpack.c.h.b16 %v608
        %v2884 = vunpack.c.l.b16 %v609
        %v2885 = vunpack.c.h.b16 %v609
        %v2886 = vunpack.c.l.b16 %v610
        %v2887 = vunpack.c.h.b16 %v610
        %v2888 = vunpack.c.l.b16 %v611
        %v2889 = vunpack.c.h.b16 %v611
        %v2890 = vunpack.c.l.b16 %v612
        %v2891 = vunpack.c.h.b16 %v612
        %v2892 = vunpack.c.l.b16 %v613
        %v2893 = vunpack.c.h.b16 %v613
        %v2894 = vunpack.c.l.b16 %v614
        %v2895 = vunpack.c.h.b16 %v614
        %v2896 = vunpack.c.l.b16 %v615
        %v2897 = vunpack.c.h.b16 %v615
        %v2898 = vunpack.c.l.b16 %v616
        %v2899 = vunpack.c.h.b16 %v616
        %v2900 = vunpack.c.l.b16 %v617
        %v2901 = vunpack.c.h.b16 %v617
        %v2902 = vunpack.c.l.b16 %v618
        %v2903 = vunpack.c.h.b16 %v618
        %v2904 = vunpack.c.l.b16 %v619
        %v2905 = vunpack.c.h.b16 %v619
        %v2906 = vunpack.c.l.b16 %v620
        %v2907 = vunpack.c.h.b16 %v620
        %v2908 = vunpack.c.l.b16 %v621
        %v2909 = vunpack.c.h.b16 %v621
        %v2910 = vunpack.c.l.b16 %v622
        %v2911 = vunpack.c.h.b16 %v622
        %v2912 = vunpack.c.l.b16 %v623
        %v2913 = vunpack.c.h.b16 %v623
        %v2914 = vpack.c.b16 %v2662, %v2658
        %v2915 = vpack.c.b16 %v2663, %v2659
        %v2916 = vpack.c.b16 %v2664, %v2660
        %v2917 = vpack.c.b16 %v2665, %v2661
        %v2918 = vpack.c.b16 %v2670, %v2666
        %v2919 = vpack.c.b16 %v2671, %v2667
        %v2920 = vpack.c.b16 %v2672, %v2668
        %v2921 = vpack.c.b16 %v2673, %v2669
        %v2922 = vpack.c.b16 %v2678, %v2674
        %v2923 = vpack.c.b16 %v2679, %v2675
        %v2924 = vpack.c.b16 %v2680, %v2676
        %v2925 = vpack.c.b16 %v2681, %v2677
        %v2926 = vpack.c.b16 %v2686, %v2682
        %v2927 = vpack.c.b16 %v2687, %v2683
        %v2928 = vpack.c.b16 %v2688, %v2684
        %v2929 = vpack.c.b16 %v2689, %v2685
        %v2930 = vpack.c.b16 %v2694, %v2690
        %v2931 = vpack.c.b16 %v2695, %v2691
        %v2932 = vpack.c.b16 %v2696, %v2692
        %v2933 = vpack.c.b16 %v2697, %v2693
        %v2934 = vpack.c.b16 %v2702, %v2698
        %v2935 = vpack.c.b16 %v2703, %v2699
        %v2936 = vpack.c.b16 %v2704, %v2700
        %v2937 = vpack.c.b16 %v2705, %v2701
        %v2938 = vpack.c.b16 %v2710, %v2706
        %v2939 = vpack.c.b16 %v2711, %v2707
        %v2940 = vpack.c.b16 %v2712, %v2708
        %v2941 = vpack.c.b16 %v2713, %v2709
        %v2942 = vpack.c.b16 %v2718, %v2714
        %v2943 = vpack.c.b16 %v2719, %v2715
        %v2944 = vpack.c.b16 %v2720, %v2716
        %v2945 = vpack.c.b16 %v2721, %v2717
        %v2946 = vpack.c.b16 %v2726, %v2722
        %v2947 = vpack.c.b16 %v2727, %v2723
        %v2948 = vpack.c.b16 %v2728, %v2724
        %v2949 = vpack.c.b16 %v2729, %v2725
        %v2950 = vpack.c.b16 %v2734, %v2730
        %v2951 = vpack.c.b16 %v2735, %v2731
        %v2952 = vpack.c.b16 %v2736, %v2732
        %v2953 = vpack.c.b16 %v2737, %v2733
        %v2954 = vpack.c.b16 %v2742, %v2738
        %v2955 = vpack.c.b16 %v2743, %v2739
        %v2956 = vpack.c.b16 %v2744, %v2740
        %v2957 = vpack.c.b16 %v2745, %v2741
        %v2958 = vpack.c.b16 %v2750, %v2746
        %v2959 = vpack.c.b16 %v2751, %v2747
        %v2960 = vpack.c.b16 %v2752, %v2748
        %v2961 = vpack.c.b16 %v2753, %v2749
        %v2962 = vpack.c.b16 %v2758, %v2754
        %v2963 = vpack.c.b16 %v2759, %v2755
        %v2964 = vpack.c.b16 %v2760, %v2756
        %v2965 = vpack.c.b16 %v2761, %v2757
        %v2966 = vpack.c.b16 %v2766, %v2762
        %v2967 = vpack.c.b16 %v2767, %v2763
        %v2968 = vpack.c.b16 %v2768, %v2764
        %v2969 = vpack.c.b16 %v2769, %v2765
        %v2970 = vpack.c.b16 %v2774, %v2770
        %v2971 = vpack.c.b16 %v2775, %v2771
        %v2972 = vpack.c.b16 %v2776, %v2772
        %v2973 = vpack.c.b16 %v2777, %v2773
        %v2974 = vpack.c.b16 %v2782, %v2778
        %v2975 = vpack.c.b16 %v2783, %v2779
        %v2976 = vpack.c.b16 %v2784, %v2780
        %v2977 = vpack.c.b16 %v2785, %v2781
        %v2978 = vpack.c.b16 %v2790, %v2786
        %v2979 = vpack.c.b16 %v2791, %v2787
        %v2980 = vpack.c.b16 %v2792, %v2788
        %v2981 = vpack.c.b16 %v2793, %v2789
        %v2982 = vpack.c.b16 %v2798, %v2794
        %v2983 = vpack.c.b16 %v2799, %v2795
        %v2984 = vpack.c.b16 %v2800, %v2796
        %v2985 = vpack.c.b16 %v2801, %v2797
        %v2986 = vpack.c.b16 %v2806, %v2802
        %v2987 = vpack.c.b16 %v2807, %v2803
        %v2988 = vpack.c.b16 %v2808, %v2804
        %v2989 = vpack.c.b16 %v2809, %v2805
        %v2990 = vpack.c.b16 %v2814, %v2810
        %v2991 = vpack.c.b16 %v2815, %v2811
        %v2992 = vpack.c.b16 %v2816, %v2812
        %v2993 = vpack.c.b16 %v2817, %v2813
        %v2994 = vpack.c.b16 %v2822, %v2818
        %v2995 = vpack.c.b16 %v2823, %v2819
        %v2996 = vpack.c.b16 %v2824, %v2820
        %v2997 = vpack.c.b16 %v2825, %v2821
        %v2998 = vpack.c.b16 %v2830, %v2826
        %v2999 = vpack.c.b16 %v2831, %v2827
        %v3000 = vpack.c.b16 %v2832, %v2828
        %v3001 = vpack.c.b16 %v2833, %v2829
        %v3002 = vpack.c.b16 %v2838, %v2834
        %v3003 = vpack.c.b16 %v2839, %v2835
        %v3004 = vpack.c.b16 %v2840, %v2836
        %v3005 = vpack.c.b16 %v2841, %v2837
        %v3006 = vpack.c.b16 %v2846, %v2842
        %v3007 = vpack.c.b16 %v2847, %v2843
        %v3008 = vpack.c.b16 %v2848, %v2844
        %v3009 = vpack.c.b16 %v2849, %v2845
        %v3010 = vpack.c.b16 %v2854, %v2850
        %v3011 = vpack.c.b16 %v2855, %v2851
        %v3012 = vpack.c.b16 %v2856, %v2852
        %v3013 = vpack.c.b16 %v2857, %v2853
        %v3014 = vpack.c.b16 %v2862, %v2858
        %v3015 = vpack.c.b16 %v2863, %v2859
        %v3016 = vpack.c.b16 %v2864, %v2860
        %v3017 = vpack.c.b16 %v2865, %v2861
        %v3018 = vpack.c.b16 %v2870, %v2866
        %v3019 = vpack.c.b16 %v2871, %v2867
        %v3020 = vpack.c.b16 %v2872, %v2868
        %v3021 = vpack.c.b16 %v2873, %v2869
        %v3022 = vpack.c.b16 %v2878, %v2874
        %v3023 = vpack.c.b16 %v2879, %v2875
        %v3024 = vpack.c.b16 %v2880, %v2876
        %v3025 = vpack.c.b16 %v2881, %v2877
        %v3026 = vpack.c.b16 %v2886, %v2882
        %v3027 = vpack.c.b16 %v2887, %v2883
        %v3028 = vpack.c.b16 %v2888, %v2884
        %v3029 = vpack.c.b16 %v2889, %v2885
        %v3030 = vpack.c.b16 %v2894, %v2890
        %v3031 = vpack.c.b16 %v2895, %v2891
        %v3032 = vpack.c.b16 %v2896, %v2892
        %v3033 = vpack.c.b16 %v2897, %v2893
        %v3034 = vpack.c.b16 %v2902, %v2898
        %v3035 = vpack.c.b16 %v2903, %v2899
        %v3036 = vpack.c.b16 %v2904, %v2900
        %v3037 = vpack.c.b16 %v2905, %v2901
        %v3038 = vpack.c.b16 %v2910, %v2906
        %v3039 = vpack.c.b16 %v2911, %v2907
        %v3040 = vpack.c.b16 %v2912, %v2908
        %v3041 = vpack.c.b16 %v2913, %v2909
        %3170 = vmatprep.subr.bf16.mxu0 %v2943
        %3171 = vmatpush1.bf16.msra.mxu0 %v2942
        %3172 = vmatprep.subr.bf16.mxu0 %v2939
        %3173 = vmatpush1.bf16.msra.mxu0 %v2938
        %3174 = vmatprep.subr.bf16.mxu0 %v2935
        %3175 = vmatpush1.bf16.msra.mxu0 %v2934
        %3176 = vmatprep.subr.bf16.mxu0 %v2931
        %3177 = vmatpush1.bf16.msra.mxu0 %v2930
        %3178 = vmatprep.subr.bf16.mxu0 %v2927
        %3179 = vmatpush1.bf16.msra.mxu0 %v2926
        %3180 = vmatprep.subr.bf16.mxu0 %v2923
        %3181 = vmatpush1.bf16.msra.mxu0 %v2922
        %3182 = vmatprep.subr.bf16.mxu0 %v2919
        %3183 = vmatpush1.bf16.msra.mxu0 %v2918
        %3184 = vmatprep.subr.bf16.mxu0 %v2915
        %3185 = vmatpush1.bf16.msra.mxu0 %v2914
        %3186 = vmatprep.subr.bf16.mxu0 %v2975
        %3187 = vmatpush2.bf16.msra.mxu0 %v2974
        %3188 = vmatprep.subr.bf16.mxu0 %v2971
        %3189 = vmatpush2.bf16.msra.mxu0 %v2970
        %3190 = vmatprep.subr.bf16.mxu0 %v2967
        %3191 = vmatpush2.bf16.msra.mxu0 %v2966
        %3192 = vmatprep.subr.bf16.mxu0 %v2963
        %3193 = vmatpush2.bf16.msra.mxu0 %v2962
        %3194 = vmatprep.subr.bf16.mxu0 %v2959
        %3195 = vmatpush2.bf16.msra.mxu0 %v2958
        %3196 = vmatprep.subr.bf16.mxu0 %v2955
        %3197 = vmatpush2.bf16.msra.mxu0 %v2954
        %3198 = vmatprep.subr.bf16.mxu0 %v2951
        %3199 = vmatpush2.bf16.msra.mxu0 %v2950
        %3200 = vmatprep.subr.bf16.mxu0 %v2947
        %3201 = vmatpush2.bf16.msra.mxu0 %v2946
        %3202 = vmatprep.mubr.bf16.mxu0 %v2523
        %3203 = vmatmul.mubr.bf16.gmra.mxu0 %v2522
        %v3204 = vpop.f32.mrf.mxu0
        %v3205 = vadd.f32 0.0, %v3204
        %v3206 = vpop.f32.mrf.mxu0
        %v3207 = vadd.f32 0.0, %v3206
        %v3208 = vpop.f32.mrf.mxu0
        %v3209 = vadd.f32 0.0, %v3208
        %v3210 = vpop.f32.mrf.mxu0
        %v3211 = vadd.f32 0.0, %v3210
        %3212 = vmatprep.mubr.bf16.mxu0 %v2527
        %3213 = vmatmul.mubr.bf16.gmra.mxu0 %v2526
        %v3214 = vpop.f32.mrf.mxu0
        %v3215 = vadd.f32 0.0, %v3214
        %v3216 = vpop.f32.mrf.mxu0
        %v3217 = vadd.f32 0.0, %v3216
        %v3218 = vpop.f32.mrf.mxu0
        %v3219 = vadd.f32 0.0, %v3218
        %v3220 = vpop.f32.mrf.mxu0
        %v3221 = vadd.f32 0.0, %v3220
        %3222 = vdwg.mxu0
        %3223 = vmatprep.subr.bf16.mxu0 %v3007
        %3224 = vmatpush1.bf16.msra.mxu0 %v3006
        %3225 = vmatprep.subr.bf16.mxu0 %v3003
        %3226 = vmatpush1.bf16.msra.mxu0 %v3002
        %3227 = vmatprep.subr.bf16.mxu0 %v2999
        %3228 = vmatpush1.bf16.msra.mxu0 %v2998
        %3229 = vmatprep.subr.bf16.mxu0 %v2995
        %3230 = vmatpush1.bf16.msra.mxu0 %v2994
        %3231 = vmatprep.subr.bf16.mxu0 %v2991
        %3232 = vmatpush1.bf16.msra.mxu0 %v2990
        %3233 = vmatprep.subr.bf16.mxu0 %v2987
        %3234 = vmatpush1.bf16.msra.mxu0 %v2986
        %3235 = vmatprep.subr.bf16.mxu0 %v2983
        %3236 = vmatpush1.bf16.msra.mxu0 %v2982
        %3237 = vmatprep.subr.bf16.mxu0 %v2979
        %3238 = vmatpush1.bf16.msra.mxu0 %v2978
        %3239 = vmatprep.subr.bf16.mxu0 %v3039
        %3240 = vmatpush2.bf16.msra.mxu0 %v3038
        %3241 = vmatprep.subr.bf16.mxu0 %v3035
        %3242 = vmatpush2.bf16.msra.mxu0 %v3034
        %3243 = vmatprep.subr.bf16.mxu0 %v3031
        %3244 = vmatpush2.bf16.msra.mxu0 %v3030
        %3245 = vmatprep.subr.bf16.mxu0 %v3027
        %3246 = vmatpush2.bf16.msra.mxu0 %v3026
        %3247 = vmatprep.subr.bf16.mxu0 %v3023
        %3248 = vmatpush2.bf16.msra.mxu0 %v3022
        %3249 = vmatprep.subr.bf16.mxu0 %v3019
        %3250 = vmatpush2.bf16.msra.mxu0 %v3018
        %3251 = vmatprep.subr.bf16.mxu0 %v3015
        %3252 = vmatpush2.bf16.msra.mxu0 %v3014
        %3253 = vmatprep.subr.bf16.mxu0 %v3011
        %3254 = vmatpush2.bf16.msra.mxu0 %v3010
        %3255 = vmatprep.mubr.bf16.mxu0 %v2525
        %3256 = vmatmul.mubr.bf16.gmra.mxu0 %v2524
        %v3257 = vpop.f32.mrf.mxu0
        %v3258 = vadd.f32 %v3205, %v3257
        %v3259 = vpop.f32.mrf.mxu0
        %v3260 = vadd.f32 %v3207, %v3259
        %v3261 = vpop.f32.mrf.mxu0
        %v3262 = vadd.f32 %v3209, %v3261
        %v3263 = vpop.f32.mrf.mxu0
        %v3264 = vadd.f32 %v3211, %v3263
        %3265 = vmatprep.mubr.bf16.mxu0 %v2529
        %3266 = vmatmul.mubr.bf16.gmra.mxu0 %v2528
        %v3267 = vpop.f32.mrf.mxu0
        %v3268 = vadd.f32 %v3215, %v3267
        %v3269 = vpop.f32.mrf.mxu0
        %v3270 = vadd.f32 %v3217, %v3269
        %v3271 = vpop.f32.mrf.mxu0
        %v3272 = vadd.f32 %v3219, %v3271
        %v3273 = vpop.f32.mrf.mxu0
        %v3274 = vadd.f32 %v3221, %v3273
        %3275 = vdwg.mxu0
        %3276 = vmatprep.subr.bf16.mxu0 %v2945
        %3277 = vmatpush1.bf16.msra.mxu0 %v2944
        %3278 = vmatprep.subr.bf16.mxu0 %v2941
        %3279 = vmatpush1.bf16.msra.mxu0 %v2940
        %3280 = vmatprep.subr.bf16.mxu0 %v2937
        %3281 = vmatpush1.bf16.msra.mxu0 %v2936
        %3282 = vmatprep.subr.bf16.mxu0 %v2933
        %3283 = vmatpush1.bf16.msra.mxu0 %v2932
        %3284 = vmatprep.subr.bf16.mxu0 %v2929
        %3285 = vmatpush1.bf16.msra.mxu0 %v2928
        %3286 = vmatprep.subr.bf16.mxu0 %v2925
        %3287 = vmatpush1.bf16.msra.mxu0 %v2924
        %3288 = vmatprep.subr.bf16.mxu0 %v2921
        %3289 = vmatpush1.bf16.msra.mxu0 %v2920
        %3290 = vmatprep.subr.bf16.mxu0 %v2917
        %3291 = vmatpush1.bf16.msra.mxu0 %v2916
        %3292 = vmatprep.subr.bf16.mxu0 %v2977
        %3293 = vmatpush2.bf16.msra.mxu0 %v2976
        %3294 = vmatprep.subr.bf16.mxu0 %v2973
        %3295 = vmatpush2.bf16.msra.mxu0 %v2972
        %3296 = vmatprep.subr.bf16.mxu0 %v2969
        %3297 = vmatpush2.bf16.msra.mxu0 %v2968
        %3298 = vmatprep.subr.bf16.mxu0 %v2965
        %3299 = vmatpush2.bf16.msra.mxu0 %v2964
        %3300 = vmatprep.subr.bf16.mxu0 %v2961
        %3301 = vmatpush2.bf16.msra.mxu0 %v2960
        %3302 = vmatprep.subr.bf16.mxu0 %v2957
        %3303 = vmatpush2.bf16.msra.mxu0 %v2956
        %3304 = vmatprep.subr.bf16.mxu0 %v2953
        %3305 = vmatpush2.bf16.msra.mxu0 %v2952
        %3306 = vmatprep.subr.bf16.mxu0 %v2949
        %3307 = vmatpush2.bf16.msra.mxu0 %v2948
        %3308 = vmatprep.mubr.bf16.mxu0 %v2523
        %3309 = vmatmul.mubr.bf16.gmra.mxu0 %v2522
        %v3310 = vpop.f32.mrf.mxu0
        %v3311 = vadd.f32 0.0, %v3310
        %v3312 = vpop.f32.mrf.mxu0
        %v3313 = vadd.f32 0.0, %v3312
        %v3314 = vpop.f32.mrf.mxu0
        %v3315 = vadd.f32 0.0, %v3314
        %v3316 = vpop.f32.mrf.mxu0
        %v3317 = vadd.f32 0.0, %v3316
        %3318 = vmatprep.mubr.bf16.mxu0 %v2527
        %3319 = vmatmul.mubr.bf16.gmra.mxu0 %v2526
        %v3320 = vpop.f32.mrf.mxu0
        %v3321 = vadd.f32 0.0, %v3320
        %v3322 = vpop.f32.mrf.mxu0
        %v3323 = vadd.f32 0.0, %v3322
        %v3324 = vpop.f32.mrf.mxu0
        %v3325 = vadd.f32 0.0, %v3324
        %v3326 = vpop.f32.mrf.mxu0
        %v3327 = vadd.f32 0.0, %v3326
        %3328 = vdwg.mxu0
        %3329 = vmatprep.subr.bf16.mxu0 %v3009
        %3330 = vmatpush1.bf16.msra.mxu0 %v3008
        %3331 = vmatprep.subr.bf16.mxu0 %v3005
        %3332 = vmatpush1.bf16.msra.mxu0 %v3004
        %3333 = vmatprep.subr.bf16.mxu0 %v3001
        %3334 = vmatpush1.bf16.msra.mxu0 %v3000
        %3335 = vmatprep.subr.bf16.mxu0 %v2997
        %3336 = vmatpush1.bf16.msra.mxu0 %v2996
        %3337 = vmatprep.subr.bf16.mxu0 %v2993
        %3338 = vmatpush1.bf16.msra.mxu0 %v2992
        %3339 = vmatprep.subr.bf16.mxu0 %v2989
        %3340 = vmatpush1.bf16.msra.mxu0 %v2988
        %3341 = vmatprep.subr.bf16.mxu0 %v2985
        %3342 = vmatpush1.bf16.msra.mxu0 %v2984
        %3343 = vmatprep.subr.bf16.mxu0 %v2981
        %3344 = vmatpush1.bf16.msra.mxu0 %v2980
        %3345 = vmatprep.subr.bf16.mxu0 %v3041
        %3346 = vmatpush2.bf16.msra.mxu0 %v3040
        %3347 = vmatprep.subr.bf16.mxu0 %v3037
        %3348 = vmatpush2.bf16.msra.mxu0 %v3036
        %3349 = vmatprep.subr.bf16.mxu0 %v3033
        %3350 = vmatpush2.bf16.msra.mxu0 %v3032
        %3351 = vmatprep.subr.bf16.mxu0 %v3029
        %3352 = vmatpush2.bf16.msra.mxu0 %v3028
        %3353 = vmatprep.subr.bf16.mxu0 %v3025
        %3354 = vmatpush2.bf16.msra.mxu0 %v3024
        %3355 = vmatprep.subr.bf16.mxu0 %v3021
        %3356 = vmatpush2.bf16.msra.mxu0 %v3020
        %3357 = vmatprep.subr.bf16.mxu0 %v3017
        %3358 = vmatpush2.bf16.msra.mxu0 %v3016
        %3359 = vmatprep.subr.bf16.mxu0 %v3013
        %3360 = vmatpush2.bf16.msra.mxu0 %v3012
        %3361 = vmatprep.mubr.bf16.mxu0 %v2525
        %3362 = vmatmul.mubr.bf16.gmra.mxu0 %v2524
        %v3363 = vpop.f32.mrf.mxu0
        %v3364 = vadd.f32 %v3311, %v3363
        %v3365 = vpop.f32.mrf.mxu0
        %v3366 = vadd.f32 %v3313, %v3365
        %v3367 = vpop.f32.mrf.mxu0
        %v3368 = vadd.f32 %v3315, %v3367
        %v3369 = vpop.f32.mrf.mxu0
        %v3370 = vadd.f32 %v3317, %v3369
        %3371 = vmatprep.mubr.bf16.mxu0 %v2529
        %3372 = vmatmul.mubr.bf16.gmra.mxu0 %v2528
        %v3373 = vpop.f32.mrf.mxu0
        %v3374 = vadd.f32 %v3321, %v3373
        %v3375 = vpop.f32.mrf.mxu0
        %v3376 = vadd.f32 %v3323, %v3375
        %v3377 = vpop.f32.mrf.mxu0
        %v3378 = vadd.f32 %v3325, %v3377
        %v3379 = vpop.f32.mrf.mxu0
        %v3380 = vadd.f32 %v3327, %v3379
        %3381 = vdwg.mxu0
        %v3382 = vadd.f32 %v2190, %v3258
        %v3383 = vadd.f32 %v2191, %v3260
        %v3384 = vadd.f32 %v2192, %v3364
        %v3385 = vadd.f32 %v2193, %v3366
        %v3386 = vadd.f32 %v2194, %v3262
        %v3387 = vadd.f32 %v2195, %v3264
        %v3388 = vadd.f32 %v2196, %v3368
        %v3389 = vadd.f32 %v2197, %v3370
        %v3390 = vadd.f32 %v2198, %v3268
        %v3391 = vadd.f32 %v2199, %v3270
        %v3392 = vadd.f32 %v2200, %v3374
        %v3393 = vadd.f32 %v2201, %v3376
        %v3394 = vadd.f32 %v2202, %v3272
        %v3395 = vadd.f32 %v2203, %v3274
        %v3396 = vadd.f32 %v2204, %v3378
        %v3397 = vadd.f32 %v2205, %v3380
        %v3398 = vadd.f32 %v3382, %v3383
        %v3399 = vadd.f32 %v3398, %v3384
        %v3400 = vadd.f32 %v3399, %v3385
        %3401 = vadd.xlane.f32.xlu0 %v3400
        %v3402 = vpop.xlane.xlu0 %3401
        %v3403 = vadd.f32 %v3386, %v3387
        %v3404 = vadd.f32 %v3403, %v3388
        %v3405 = vadd.f32 %v3404, %v3389
        %3406 = vadd.xlane.f32.xlu0 %v3405
        %v3407 = vpop.xlane.xlu0 %3406
        %v3408 = vadd.f32 %v3390, %v3391
        %v3409 = vadd.f32 %v3408, %v3392
        %v3410 = vadd.f32 %v3409, %v3393
        %3411 = vadd.xlane.f32.xlu0 %v3410
        %v3412 = vpop.xlane.xlu0 %3411
        %v3413 = vadd.f32 %v3394, %v3395
        %v3414 = vadd.f32 %v3413, %v3396
        %v3415 = vadd.f32 %v3414, %v3397
        %3416 = vadd.xlane.f32.xlu0 %v3415
        %v3417 = vpop.xlane.xlu0 %3416
        %v3418 = vmul.f32 %v3402, %v2057
        %v3419 = vmul.f32 %v3407, %v2057
        %v3420 = vmul.f32 %v3412, %v2057
        %v3421 = vmul.f32 %v3417, %v2057
        %v3422 = vsub.f32 %v3382, %v3418
        %v3423 = vsub.f32 %v3383, %v3418
        %v3424 = vsub.f32 %v3384, %v3418
        %v3425 = vsub.f32 %v3385, %v3418
        %v3426 = vsub.f32 %v3386, %v3419
        %v3427 = vsub.f32 %v3387, %v3419
        %v3428 = vsub.f32 %v3388, %v3419
        %v3429 = vsub.f32 %v3389, %v3419
        %v3430 = vsub.f32 %v3390, %v3420
        %v3431 = vsub.f32 %v3391, %v3420
        %v3432 = vsub.f32 %v3392, %v3420
        %v3433 = vsub.f32 %v3393, %v3420
        %v3434 = vsub.f32 %v3394, %v3421
        %v3435 = vsub.f32 %v3395, %v3421
        %v3436 = vsub.f32 %v3396, %v3421
        %v3437 = vsub.f32 %v3397, %v3421
        %v3438 = vmul.f32 %v3422, %v3422
        %v3439 = vmul.f32 %v3423, %v3423
        %v3440 = vmul.f32 %v3424, %v3424
        %v3441 = vmul.f32 %v3425, %v3425
        %v3442 = vmul.f32 %v3426, %v3426
        %v3443 = vmul.f32 %v3427, %v3427
        %v3444 = vmul.f32 %v3428, %v3428
        %v3445 = vmul.f32 %v3429, %v3429
        %v3446 = vmul.f32 %v3430, %v3430
        %v3447 = vmul.f32 %v3431, %v3431
        %v3448 = vmul.f32 %v3432, %v3432
        %v3449 = vmul.f32 %v3433, %v3433
        %v3450 = vmul.f32 %v3434, %v3434
        %v3451 = vmul.f32 %v3435, %v3435
        %v3452 = vmul.f32 %v3436, %v3436
        %v3453 = vmul.f32 %v3437, %v3437
        %v3454 = vadd.f32 %v3438, %v3439
        %v3455 = vadd.f32 %v3454, %v3440
        %v3456 = vadd.f32 %v3455, %v3441
        %3457 = vadd.xlane.f32.xlu0 %v3456
        %v3458 = vpop.xlane.xlu0 %3457
        %v3459 = vadd.f32 %v3442, %v3443
        %v3460 = vadd.f32 %v3459, %v3444
        %v3461 = vadd.f32 %v3460, %v3445
        %3462 = vadd.xlane.f32.xlu0 %v3461
        %v3463 = vpop.xlane.xlu0 %3462
        %v3464 = vadd.f32 %v3446, %v3447
        %v3465 = vadd.f32 %v3464, %v3448
        %v3466 = vadd.f32 %v3465, %v3449
        %3467 = vadd.xlane.f32.xlu0 %v3466
        %v3468 = vpop.xlane.xlu0 %3467
        %v3469 = vadd.f32 %v3450, %v3451
        %v3470 = vadd.f32 %v3469, %v3452
        %v3471 = vadd.f32 %v3470, %v3453
        %3472 = vadd.xlane.f32.xlu0 %v3471
        %v3473 = vpop.xlane.xlu0 %3472
        %v3474 = vmul.f32 %v3458, %v2057
        %v3475 = vmul.f32 %v3463, %v2057
        %v3476 = vmul.f32 %v3468, %v2057
        %v3477 = vmul.f32 %v3473, %v2057
        %v3478 = vadd.f32 %v3474, 1e-05
        %v3479 = vadd.f32 %v3475, 1e-05
        %v3480 = vadd.f32 %v3476, 1e-05
        %v3481 = vadd.f32 %v3477, 1e-05
        %v3482 = vrsqrt.pop %v3478
        %v3483 = vrsqrt.pop %v3479
        %v3484 = vrsqrt.pop %v3480
        %v3485 = vrsqrt.pop %v3481
        %v3486 = vmul.f32 %v3422, %v3482
        %v3487 = vmul.f32 %v3423, %v3482
        %v3488 = vmul.f32 %v3424, %v3482
        %v3489 = vmul.f32 %v3425, %v3482
        %v3490 = vmul.f32 %v3426, %v3483
        %v3491 = vmul.f32 %v3427, %v3483
        %v3492 = vmul.f32 %v3428, %v3483
        %v3493 = vmul.f32 %v3429, %v3483
        %v3494 = vmul.f32 %v3430, %v3484
        %v3495 = vmul.f32 %v3431, %v3484
        %v3496 = vmul.f32 %v3432, %v3484
        %v3497 = vmul.f32 %v3433, %v3484
        %v3498 = vmul.f32 %v3434, %v3485
        %v3499 = vmul.f32 %v3435, %v3485
        %v3500 = vmul.f32 %v3436, %v3485
        %v3501 = vmul.f32 %v3437, %v3485
        %v3502 = vlaneseq
        %v3503 = vshrl.u32 %v3502, 7
        %v3504 = vsub.s32 4, %v3503
        %v3505 = vrot.slane %v880, %v3504
        %v3506 = vlaneseq
        %v3507 = vshrl.u32 %v3506, 7
        %v3508 = vsub.s32 4, %v3507
        %v3509 = vrot.slane %v881, %v3508
        %v3510 = vlaneseq
        %v3511 = vshrl.u32 %v3510, 7
        %v3512 = vsub.s32 4, %v3511
        %v3513 = vrot.slane %v882, %v3512
        %v3514 = vlaneseq
        %v3515 = vshrl.u32 %v3514, 7
        %v3516 = vsub.s32 4, %v3515
        %v3517 = vrot.slane %v883, %v3516
        %v3518 = vmul.f32 %v3486, %v3505
        %v3519 = vmul.f32 %v3487, %v3509
        %v3520 = vmul.f32 %v3488, %v3513
        %v3521 = vmul.f32 %v3489, %v3517
        %v3522 = vmul.f32 %v3490, %v3505
        %v3523 = vmul.f32 %v3491, %v3509
        %v3524 = vmul.f32 %v3492, %v3513
        %v3525 = vmul.f32 %v3493, %v3517
        %v3526 = vmul.f32 %v3494, %v3505
        %v3527 = vmul.f32 %v3495, %v3509
        %v3528 = vmul.f32 %v3496, %v3513
        %v3529 = vmul.f32 %v3497, %v3517
        %v3530 = vmul.f32 %v3498, %v3505
        %v3531 = vmul.f32 %v3499, %v3509
        %v3532 = vmul.f32 %v3500, %v3513
        %v3533 = vmul.f32 %v3501, %v3517
        %v3534 = vlaneseq
        %v3535 = vshrl.u32 %v3534, 7
        %v3536 = vsub.s32 5, %v3535
        %v3537 = vrot.slane %v880, %v3536
        %v3538 = vlaneseq
        %v3539 = vshrl.u32 %v3538, 7
        %v3540 = vsub.s32 5, %v3539
        %v3541 = vrot.slane %v881, %v3540
        %v3542 = vlaneseq
        %v3543 = vshrl.u32 %v3542, 7
        %v3544 = vsub.s32 5, %v3543
        %v3545 = vrot.slane %v882, %v3544
        %v3546 = vlaneseq
        %v3547 = vshrl.u32 %v3546, 7
        %v3548 = vsub.s32 5, %v3547
        %v3549 = vrot.slane %v883, %v3548
        %v3550 = vadd.f32 %v3518, %v3537
        %v3551 = vadd.f32 %v3519, %v3541
        %v3552 = vadd.f32 %v3520, %v3545
        %v3553 = vadd.f32 %v3521, %v3549
        %v3554 = vadd.f32 %v3522, %v3537
        %v3555 = vadd.f32 %v3523, %v3541
        %v3556 = vadd.f32 %v3524, %v3545
        %v3557 = vadd.f32 %v3525, %v3549
        %v3558 = vadd.f32 %v3526, %v3537
        %v3559 = vadd.f32 %v3527, %v3541
        %v3560 = vadd.f32 %v3528, %v3545
        %v3561 = vadd.f32 %v3529, %v3549
        %v3562 = vadd.f32 %v3530, %v3537
        %v3563 = vadd.f32 %v3531, %v3541
        %v3564 = vadd.f32 %v3532, %v3545
        %v3565 = vadd.f32 %v3533, %v3549
        %v3566 = vpack.c.bf16 %v3554, %v3550
        %v3567 = vpack.c.bf16 %v3555, %v3551
        %v3568 = vpack.c.bf16 %v3556, %v3552
        %v3569 = vpack.c.bf16 %v3557, %v3553
        %v3570 = vpack.c.bf16 %v3562, %v3558
        %v3571 = vpack.c.bf16 %v3563, %v3559
        %v3572 = vpack.c.bf16 %v3564, %v3560
        %v3573 = vpack.c.bf16 %v3565, %v3561
        %v3574 = vlaneseq
        %v3575 = vshrl.u32 %v3574, 7
        %v3576 = vsub.s32 0, %v3575
        %v3577 = vrot.slane %v880, %v3576
        %v3578 = vlaneseq
        %v3579 = vshrl.u32 %v3578, 7
        %v3580 = vsub.s32 0, %v3579
        %v3581 = vrot.slane %v881, %v3580
        %v3582 = vlaneseq
        %v3583 = vshrl.u32 %v3582, 7
        %v3584 = vsub.s32 0, %v3583
        %v3585 = vrot.slane %v882, %v3584
        %v3586 = vlaneseq
        %v3587 = vshrl.u32 %v3586, 7
        %v3588 = vsub.s32 0, %v3587
        %v3589 = vrot.slane %v883, %v3588
        %v3718 = vunpack.c.l.b16 %v624
        %v3719 = vunpack.c.h.b16 %v624
        %v3720 = vunpack.c.l.b16 %v625
        %v3721 = vunpack.c.h.b16 %v625
        %v3722 = vunpack.c.l.b16 %v626
        %v3723 = vunpack.c.h.b16 %v626
        %v3724 = vunpack.c.l.b16 %v627
        %v3725 = vunpack.c.h.b16 %v627
        %v3726 = vunpack.c.l.b16 %v628
        %v3727 = vunpack.c.h.b16 %v628
        %v3728 = vunpack.c.l.b16 %v629
        %v3729 = vunpack.c.h.b16 %v629
        %v3730 = vunpack.c.l.b16 %v630
        %v3731 = vunpack.c.h.b16 %v630
        %v3732 = vunpack.c.l.b16 %v631
        %v3733 = vunpack.c.h.b16 %v631
        %v3734 = vunpack.c.l.b16 %v632
        %v3735 = vunpack.c.h.b16 %v632
        %v3736 = vunpack.c.l.b16 %v633
        %v3737 = vunpack.c.h.b16 %v633
        %v3738 = vunpack.c.l.b16 %v634
        %v3739 = vunpack.c.h.b16 %v634
        %v3740 = vunpack.c.l.b16 %v635
        %v3741 = vunpack.c.h.b16 %v635
        %v3742 = vunpack.c.l.b16 %v636
        %v3743 = vunpack.c.h.b16 %v636
        %v3744 = vunpack.c.l.b16 %v637
        %v3745 = vunpack.c.h.b16 %v637
        %v3746 = vunpack.c.l.b16 %v638
        %v3747 = vunpack.c.h.b16 %v638
        %v3748 = vunpack.c.l.b16 %v639
        %v3749 = vunpack.c.h.b16 %v639
        %v3750 = vunpack.c.l.b16 %v640
        %v3751 = vunpack.c.h.b16 %v640
        %v3752 = vunpack.c.l.b16 %v641
        %v3753 = vunpack.c.h.b16 %v641
        %v3754 = vunpack.c.l.b16 %v642
        %v3755 = vunpack.c.h.b16 %v642
        %v3756 = vunpack.c.l.b16 %v643
        %v3757 = vunpack.c.h.b16 %v643
        %v3758 = vunpack.c.l.b16 %v644
        %v3759 = vunpack.c.h.b16 %v644
        %v3760 = vunpack.c.l.b16 %v645
        %v3761 = vunpack.c.h.b16 %v645
        %v3762 = vunpack.c.l.b16 %v646
        %v3763 = vunpack.c.h.b16 %v646
        %v3764 = vunpack.c.l.b16 %v647
        %v3765 = vunpack.c.h.b16 %v647
        %v3766 = vunpack.c.l.b16 %v648
        %v3767 = vunpack.c.h.b16 %v648
        %v3768 = vunpack.c.l.b16 %v649
        %v3769 = vunpack.c.h.b16 %v649
        %v3770 = vunpack.c.l.b16 %v650
        %v3771 = vunpack.c.h.b16 %v650
        %v3772 = vunpack.c.l.b16 %v651
        %v3773 = vunpack.c.h.b16 %v651
        %v3774 = vunpack.c.l.b16 %v652
        %v3775 = vunpack.c.h.b16 %v652
        %v3776 = vunpack.c.l.b16 %v653
        %v3777 = vunpack.c.h.b16 %v653
        %v3778 = vunpack.c.l.b16 %v654
        %v3779 = vunpack.c.h.b16 %v654
        %v3780 = vunpack.c.l.b16 %v655
        %v3781 = vunpack.c.h.b16 %v655
        %v3782 = vunpack.c.l.b16 %v656
        %v3783 = vunpack.c.h.b16 %v656
        %v3784 = vunpack.c.l.b16 %v657
        %v3785 = vunpack.c.h.b16 %v657
        %v3786 = vunpack.c.l.b16 %v658
        %v3787 = vunpack.c.h.b16 %v658
        %v3788 = vunpack.c.l.b16 %v659
        %v3789 = vunpack.c.h.b16 %v659
        %v3790 = vunpack.c.l.b16 %v660
        %v3791 = vunpack.c.h.b16 %v660
        %v3792 = vunpack.c.l.b16 %v661
        %v3793 = vunpack.c.h.b16 %v661
        %v3794 = vunpack.c.l.b16 %v662
        %v3795 = vunpack.c.h.b16 %v662
        %v3796 = vunpack.c.l.b16 %v663
        %v3797 = vunpack.c.h.b16 %v663
        %v3798 = vunpack.c.l.b16 %v664
        %v3799 = vunpack.c.h.b16 %v664
        %v3800 = vunpack.c.l.b16 %v665
        %v3801 = vunpack.c.h.b16 %v665
        %v3802 = vunpack.c.l.b16 %v666
        %v3803 = vunpack.c.h.b16 %v666
        %v3804 = vunpack.c.l.b16 %v667
        %v3805 = vunpack.c.h.b16 %v667
        %v3806 = vunpack.c.l.b16 %v668
        %v3807 = vunpack.c.h.b16 %v668
        %v3808 = vunpack.c.l.b16 %v669
        %v3809 = vunpack.c.h.b16 %v669
        %v3810 = vunpack.c.l.b16 %v670
        %v3811 = vunpack.c.h.b16 %v670
        %v3812 = vunpack.c.l.b16 %v671
        %v3813 = vunpack.c.h.b16 %v671
        %v3814 = vunpack.c.l.b16 %v672
        %v3815 = vunpack.c.h.b16 %v672
        %v3816 = vunpack.c.l.b16 %v673
        %v3817 = vunpack.c.h.b16 %v673
        %v3818 = vunpack.c.l.b16 %v674
        %v3819 = vunpack.c.h.b16 %v674
        %v3820 = vunpack.c.l.b16 %v675
        %v3821 = vunpack.c.h.b16 %v675
        %v3822 = vunpack.c.l.b16 %v676
        %v3823 = vunpack.c.h.b16 %v676
        %v3824 = vunpack.c.l.b16 %v677
        %v3825 = vunpack.c.h.b16 %v677
        %v3826 = vunpack.c.l.b16 %v678
        %v3827 = vunpack.c.h.b16 %v678
        %v3828 = vunpack.c.l.b16 %v679
        %v3829 = vunpack.c.h.b16 %v679
        %v3830 = vunpack.c.l.b16 %v680
        %v3831 = vunpack.c.h.b16 %v680
        %v3832 = vunpack.c.l.b16 %v681
        %v3833 = vunpack.c.h.b16 %v681
        %v3834 = vunpack.c.l.b16 %v682
        %v3835 = vunpack.c.h.b16 %v682
        %v3836 = vunpack.c.l.b16 %v683
        %v3837 = vunpack.c.h.b16 %v683
        %v3838 = vunpack.c.l.b16 %v684
        %v3839 = vunpack.c.h.b16 %v684
        %v3840 = vunpack.c.l.b16 %v685
        %v3841 = vunpack.c.h.b16 %v685
        %v3842 = vunpack.c.l.b16 %v686
        %v3843 = vunpack.c.h.b16 %v686
        %v3844 = vunpack.c.l.b16 %v687
        %v3845 = vunpack.c.h.b16 %v687
        %v3846 = vunpack.c.l.b16 %v688
        %v3847 = vunpack.c.h.b16 %v688
        %v3848 = vunpack.c.l.b16 %v689
        %v3849 = vunpack.c.h.b16 %v689
        %v3850 = vunpack.c.l.b16 %v690
        %v3851 = vunpack.c.h.b16 %v690
        %v3852 = vunpack.c.l.b16 %v691
        %v3853 = vunpack.c.h.b16 %v691
        %v3854 = vunpack.c.l.b16 %v692
        %v3855 = vunpack.c.h.b16 %v692
        %v3856 = vunpack.c.l.b16 %v693
        %v3857 = vunpack.c.h.b16 %v693
        %v3858 = vunpack.c.l.b16 %v694
        %v3859 = vunpack.c.h.b16 %v694
        %v3860 = vunpack.c.l.b16 %v695
        %v3861 = vunpack.c.h.b16 %v695
        %v3862 = vunpack.c.l.b16 %v696
        %v3863 = vunpack.c.h.b16 %v696
        %v3864 = vunpack.c.l.b16 %v697
        %v3865 = vunpack.c.h.b16 %v697
        %v3866 = vunpack.c.l.b16 %v698
        %v3867 = vunpack.c.h.b16 %v698
        %v3868 = vunpack.c.l.b16 %v699
        %v3869 = vunpack.c.h.b16 %v699
        %v3870 = vunpack.c.l.b16 %v700
        %v3871 = vunpack.c.h.b16 %v700
        %v3872 = vunpack.c.l.b16 %v701
        %v3873 = vunpack.c.h.b16 %v701
        %v3874 = vunpack.c.l.b16 %v702
        %v3875 = vunpack.c.h.b16 %v702
        %v3876 = vunpack.c.l.b16 %v703
        %v3877 = vunpack.c.h.b16 %v703
        %v3878 = vunpack.c.l.b16 %v704
        %v3879 = vunpack.c.h.b16 %v704
        %v3880 = vunpack.c.l.b16 %v705
        %v3881 = vunpack.c.h.b16 %v705
        %v3882 = vunpack.c.l.b16 %v706
        %v3883 = vunpack.c.h.b16 %v706
        %v3884 = vunpack.c.l.b16 %v707
        %v3885 = vunpack.c.h.b16 %v707
        %v3886 = vunpack.c.l.b16 %v708
        %v3887 = vunpack.c.h.b16 %v708
        %v3888 = vunpack.c.l.b16 %v709
        %v3889 = vunpack.c.h.b16 %v709
        %v3890 = vunpack.c.l.b16 %v710
        %v3891 = vunpack.c.h.b16 %v710
        %v3892 = vunpack.c.l.b16 %v711
        %v3893 = vunpack.c.h.b16 %v711
        %v3894 = vunpack.c.l.b16 %v712
        %v3895 = vunpack.c.h.b16 %v712
        %v3896 = vunpack.c.l.b16 %v713
        %v3897 = vunpack.c.h.b16 %v713
        %v3898 = vunpack.c.l.b16 %v714
        %v3899 = vunpack.c.h.b16 %v714
        %v3900 = vunpack.c.l.b16 %v715
        %v3901 = vunpack.c.h.b16 %v715
        %v3902 = vunpack.c.l.b16 %v716
        %v3903 = vunpack.c.h.b16 %v716
        %v3904 = vunpack.c.l.b16 %v717
        %v3905 = vunpack.c.h.b16 %v717
        %v3906 = vunpack.c.l.b16 %v718
        %v3907 = vunpack.c.h.b16 %v718
        %v3908 = vunpack.c.l.b16 %v719
        %v3909 = vunpack.c.h.b16 %v719
        %v3910 = vunpack.c.l.b16 %v720
        %v3911 = vunpack.c.h.b16 %v720
        %v3912 = vunpack.c.l.b16 %v721
        %v3913 = vunpack.c.h.b16 %v721
        %v3914 = vunpack.c.l.b16 %v722
        %v3915 = vunpack.c.h.b16 %v722
        %v3916 = vunpack.c.l.b16 %v723
        %v3917 = vunpack.c.h.b16 %v723
        %v3918 = vunpack.c.l.b16 %v724
        %v3919 = vunpack.c.h.b16 %v724
        %v3920 = vunpack.c.l.b16 %v725
        %v3921 = vunpack.c.h.b16 %v725
        %v3922 = vunpack.c.l.b16 %v726
        %v3923 = vunpack.c.h.b16 %v726
        %v3924 = vunpack.c.l.b16 %v727
        %v3925 = vunpack.c.h.b16 %v727
        %v3926 = vunpack.c.l.b16 %v728
        %v3927 = vunpack.c.h.b16 %v728
        %v3928 = vunpack.c.l.b16 %v729
        %v3929 = vunpack.c.h.b16 %v729
        %v3930 = vunpack.c.l.b16 %v730
        %v3931 = vunpack.c.h.b16 %v730
        %v3932 = vunpack.c.l.b16 %v731
        %v3933 = vunpack.c.h.b16 %v731
        %v3934 = vunpack.c.l.b16 %v732
        %v3935 = vunpack.c.h.b16 %v732
        %v3936 = vunpack.c.l.b16 %v733
        %v3937 = vunpack.c.h.b16 %v733
        %v3938 = vunpack.c.l.b16 %v734
        %v3939 = vunpack.c.h.b16 %v734
        %v3940 = vunpack.c.l.b16 %v735
        %v3941 = vunpack.c.h.b16 %v735
        %v3942 = vunpack.c.l.b16 %v736
        %v3943 = vunpack.c.h.b16 %v736
        %v3944 = vunpack.c.l.b16 %v737
        %v3945 = vunpack.c.h.b16 %v737
        %v3946 = vunpack.c.l.b16 %v738
        %v3947 = vunpack.c.h.b16 %v738
        %v3948 = vunpack.c.l.b16 %v739
        %v3949 = vunpack.c.h.b16 %v739
        %v3950 = vunpack.c.l.b16 %v740
        %v3951 = vunpack.c.h.b16 %v740
        %v3952 = vunpack.c.l.b16 %v741
        %v3953 = vunpack.c.h.b16 %v741
        %v3954 = vunpack.c.l.b16 %v742
        %v3955 = vunpack.c.h.b16 %v742
        %v3956 = vunpack.c.l.b16 %v743
        %v3957 = vunpack.c.h.b16 %v743
        %v3958 = vunpack.c.l.b16 %v744
        %v3959 = vunpack.c.h.b16 %v744
        %v3960 = vunpack.c.l.b16 %v745
        %v3961 = vunpack.c.h.b16 %v745
        %v3962 = vunpack.c.l.b16 %v746
        %v3963 = vunpack.c.h.b16 %v746
        %v3964 = vunpack.c.l.b16 %v747
        %v3965 = vunpack.c.h.b16 %v747
        %v3966 = vunpack.c.l.b16 %v748
        %v3967 = vunpack.c.h.b16 %v748
        %v3968 = vunpack.c.l.b16 %v749
        %v3969 = vunpack.c.h.b16 %v749
        %v3970 = vunpack.c.l.b16 %v750
        %v3971 = vunpack.c.h.b16 %v750
        %v3972 = vunpack.c.l.b16 %v751
        %v3973 = vunpack.c.h.b16 %v751
        %v3974 = vpack.c.b16 %v3722, %v3718
        %v3975 = vpack.c.b16 %v3723, %v3719
        %v3976 = vpack.c.b16 %v3724, %v3720
        %v3977 = vpack.c.b16 %v3725, %v3721
        %v3978 = vpack.c.b16 %v3730, %v3726
        %v3979 = vpack.c.b16 %v3731, %v3727
        %v3980 = vpack.c.b16 %v3732, %v3728
        %v3981 = vpack.c.b16 %v3733, %v3729
        %v3982 = vpack.c.b16 %v3738, %v3734
        %v3983 = vpack.c.b16 %v3739, %v3735
        %v3984 = vpack.c.b16 %v3740, %v3736
        %v3985 = vpack.c.b16 %v3741, %v3737
        %v3986 = vpack.c.b16 %v3746, %v3742
        %v3987 = vpack.c.b16 %v3747, %v3743
        %v3988 = vpack.c.b16 %v3748, %v3744
        %v3989 = vpack.c.b16 %v3749, %v3745
        %v3990 = vpack.c.b16 %v3754, %v3750
        %v3991 = vpack.c.b16 %v3755, %v3751
        %v3992 = vpack.c.b16 %v3756, %v3752
        %v3993 = vpack.c.b16 %v3757, %v3753
        %v3994 = vpack.c.b16 %v3762, %v3758
        %v3995 = vpack.c.b16 %v3763, %v3759
        %v3996 = vpack.c.b16 %v3764, %v3760
        %v3997 = vpack.c.b16 %v3765, %v3761
        %v3998 = vpack.c.b16 %v3770, %v3766
        %v3999 = vpack.c.b16 %v3771, %v3767
        %v4000 = vpack.c.b16 %v3772, %v3768
        %v4001 = vpack.c.b16 %v3773, %v3769
        %v4002 = vpack.c.b16 %v3778, %v3774
        %v4003 = vpack.c.b16 %v3779, %v3775
        %v4004 = vpack.c.b16 %v3780, %v3776
        %v4005 = vpack.c.b16 %v3781, %v3777
        %v4006 = vpack.c.b16 %v3786, %v3782
        %v4007 = vpack.c.b16 %v3787, %v3783
        %v4008 = vpack.c.b16 %v3788, %v3784
        %v4009 = vpack.c.b16 %v3789, %v3785
        %v4010 = vpack.c.b16 %v3794, %v3790
        %v4011 = vpack.c.b16 %v3795, %v3791
        %v4012 = vpack.c.b16 %v3796, %v3792
        %v4013 = vpack.c.b16 %v3797, %v3793
        %v4014 = vpack.c.b16 %v3802, %v3798
        %v4015 = vpack.c.b16 %v3803, %v3799
        %v4016 = vpack.c.b16 %v3804, %v3800
        %v4017 = vpack.c.b16 %v3805, %v3801
        %v4018 = vpack.c.b16 %v3810, %v3806
        %v4019 = vpack.c.b16 %v3811, %v3807
        %v4020 = vpack.c.b16 %v3812, %v3808
        %v4021 = vpack.c.b16 %v3813, %v3809
        %v4022 = vpack.c.b16 %v3818, %v3814
        %v4023 = vpack.c.b16 %v3819, %v3815
        %v4024 = vpack.c.b16 %v3820, %v3816
        %v4025 = vpack.c.b16 %v3821, %v3817
        %v4026 = vpack.c.b16 %v3826, %v3822
        %v4027 = vpack.c.b16 %v3827, %v3823
        %v4028 = vpack.c.b16 %v3828, %v3824
        %v4029 = vpack.c.b16 %v3829, %v3825
        %v4030 = vpack.c.b16 %v3834, %v3830
        %v4031 = vpack.c.b16 %v3835, %v3831
        %v4032 = vpack.c.b16 %v3836, %v3832
        %v4033 = vpack.c.b16 %v3837, %v3833
        %v4034 = vpack.c.b16 %v3842, %v3838
        %v4035 = vpack.c.b16 %v3843, %v3839
        %v4036 = vpack.c.b16 %v3844, %v3840
        %v4037 = vpack.c.b16 %v3845, %v3841
        %v4038 = vpack.c.b16 %v3850, %v3846
        %v4039 = vpack.c.b16 %v3851, %v3847
        %v4040 = vpack.c.b16 %v3852, %v3848
        %v4041 = vpack.c.b16 %v3853, %v3849
        %v4042 = vpack.c.b16 %v3858, %v3854
        %v4043 = vpack.c.b16 %v3859, %v3855
        %v4044 = vpack.c.b16 %v3860, %v3856
        %v4045 = vpack.c.b16 %v3861, %v3857
        %v4046 = vpack.c.b16 %v3866, %v3862
        %v4047 = vpack.c.b16 %v3867, %v3863
        %v4048 = vpack.c.b16 %v3868, %v3864
        %v4049 = vpack.c.b16 %v3869, %v3865
        %v4050 = vpack.c.b16 %v3874, %v3870
        %v4051 = vpack.c.b16 %v3875, %v3871
        %v4052 = vpack.c.b16 %v3876, %v3872
        %v4053 = vpack.c.b16 %v3877, %v3873
        %v4054 = vpack.c.b16 %v3882, %v3878
        %v4055 = vpack.c.b16 %v3883, %v3879
        %v4056 = vpack.c.b16 %v3884, %v3880
        %v4057 = vpack.c.b16 %v3885, %v3881
        %v4058 = vpack.c.b16 %v3890, %v3886
        %v4059 = vpack.c.b16 %v3891, %v3887
        %v4060 = vpack.c.b16 %v3892, %v3888
        %v4061 = vpack.c.b16 %v3893, %v3889
        %v4062 = vpack.c.b16 %v3898, %v3894
        %v4063 = vpack.c.b16 %v3899, %v3895
        %v4064 = vpack.c.b16 %v3900, %v3896
        %v4065 = vpack.c.b16 %v3901, %v3897
        %v4066 = vpack.c.b16 %v3906, %v3902
        %v4067 = vpack.c.b16 %v3907, %v3903
        %v4068 = vpack.c.b16 %v3908, %v3904
        %v4069 = vpack.c.b16 %v3909, %v3905
        %v4070 = vpack.c.b16 %v3914, %v3910
        %v4071 = vpack.c.b16 %v3915, %v3911
        %v4072 = vpack.c.b16 %v3916, %v3912
        %v4073 = vpack.c.b16 %v3917, %v3913
        %v4074 = vpack.c.b16 %v3922, %v3918
        %v4075 = vpack.c.b16 %v3923, %v3919
        %v4076 = vpack.c.b16 %v3924, %v3920
        %v4077 = vpack.c.b16 %v3925, %v3921
        %v4078 = vpack.c.b16 %v3930, %v3926
        %v4079 = vpack.c.b16 %v3931, %v3927
        %v4080 = vpack.c.b16 %v3932, %v3928
        %v4081 = vpack.c.b16 %v3933, %v3929
        %v4082 = vpack.c.b16 %v3938, %v3934
        %v4083 = vpack.c.b16 %v3939, %v3935
        %v4084 = vpack.c.b16 %v3940, %v3936
        %v4085 = vpack.c.b16 %v3941, %v3937
        %v4086 = vpack.c.b16 %v3946, %v3942
        %v4087 = vpack.c.b16 %v3947, %v3943
        %v4088 = vpack.c.b16 %v3948, %v3944
        %v4089 = vpack.c.b16 %v3949, %v3945
        %v4090 = vpack.c.b16 %v3954, %v3950
        %v4091 = vpack.c.b16 %v3955, %v3951
        %v4092 = vpack.c.b16 %v3956, %v3952
        %v4093 = vpack.c.b16 %v3957, %v3953
        %v4094 = vpack.c.b16 %v3962, %v3958
        %v4095 = vpack.c.b16 %v3963, %v3959
        %v4096 = vpack.c.b16 %v3964, %v3960
        %v4097 = vpack.c.b16 %v3965, %v3961
        %v4098 = vpack.c.b16 %v3970, %v3966
        %v4099 = vpack.c.b16 %v3971, %v3967
        %v4100 = vpack.c.b16 %v3972, %v3968
        %v4101 = vpack.c.b16 %v3973, %v3969
        %4230 = vmatprep.subr.bf16.mxu0 %v4003
        %4231 = vmatpush1.bf16.msra.mxu0 %v4002
        %4232 = vmatprep.subr.bf16.mxu0 %v3999
        %4233 = vmatpush1.bf16.msra.mxu0 %v3998
        %4234 = vmatprep.subr.bf16.mxu0 %v3995
        %4235 = vmatpush1.bf16.msra.mxu0 %v3994
        %4236 = vmatprep.subr.bf16.mxu0 %v3991
        %4237 = vmatpush1.bf16.msra.mxu0 %v3990
        %4238 = vmatprep.subr.bf16.mxu0 %v3987
        %4239 = vmatpush1.bf16.msra.mxu0 %v3986
        %4240 = vmatprep.subr.bf16.mxu0 %v3983
        %4241 = vmatpush1.bf16.msra.mxu0 %v3982
        %4242 = vmatprep.subr.bf16.mxu0 %v3979
        %4243 = vmatpush1.bf16.msra.mxu0 %v3978
        %4244 = vmatprep.subr.bf16.mxu0 %v3975
        %4245 = vmatpush1.bf16.msra.mxu0 %v3974
        %4246 = vmatprep.subr.bf16.mxu0 %v4035
        %4247 = vmatpush2.bf16.msra.mxu0 %v4034
        %4248 = vmatprep.subr.bf16.mxu0 %v4031
        %4249 = vmatpush2.bf16.msra.mxu0 %v4030
        %4250 = vmatprep.subr.bf16.mxu0 %v4027
        %4251 = vmatpush2.bf16.msra.mxu0 %v4026
        %4252 = vmatprep.subr.bf16.mxu0 %v4023
        %4253 = vmatpush2.bf16.msra.mxu0 %v4022
        %4254 = vmatprep.subr.bf16.mxu0 %v4019
        %4255 = vmatpush2.bf16.msra.mxu0 %v4018
        %4256 = vmatprep.subr.bf16.mxu0 %v4015
        %4257 = vmatpush2.bf16.msra.mxu0 %v4014
        %4258 = vmatprep.subr.bf16.mxu0 %v4011
        %4259 = vmatpush2.bf16.msra.mxu0 %v4010
        %4260 = vmatprep.subr.bf16.mxu0 %v4007
        %4261 = vmatpush2.bf16.msra.mxu0 %v4006
        %4262 = vmatprep.mubr.bf16.mxu0 %v3567
        %4263 = vmatmul.mubr.bf16.gmra.mxu0 %v3566
        %v4264 = vpop.f32.mrf.mxu0
        %v4265 = vadd.f32 %v3577, %v4264
        %v4266 = vpop.f32.mrf.mxu0
        %v4267 = vadd.f32 %v3581, %v4266
        %v4268 = vpop.f32.mrf.mxu0
        %v4269 = vadd.f32 %v3577, %v4268
        %v4270 = vpop.f32.mrf.mxu0
        %v4271 = vadd.f32 %v3581, %v4270
        %4272 = vmatprep.mubr.bf16.mxu0 %v3571
        %4273 = vmatmul.mubr.bf16.gmra.mxu0 %v3570
        %v4274 = vpop.f32.mrf.mxu0
        %v4275 = vadd.f32 %v3577, %v4274
        %v4276 = vpop.f32.mrf.mxu0
        %v4277 = vadd.f32 %v3581, %v4276
        %v4278 = vpop.f32.mrf.mxu0
        %v4279 = vadd.f32 %v3577, %v4278
        %v4280 = vpop.f32.mrf.mxu0
        %v4281 = vadd.f32 %v3581, %v4280
        %4282 = vdwg.mxu0
        %4283 = vmatprep.subr.bf16.mxu0 %v4067
        %4284 = vmatpush1.bf16.msra.mxu0 %v4066
        %4285 = vmatprep.subr.bf16.mxu0 %v4063
        %4286 = vmatpush1.bf16.msra.mxu0 %v4062
        %4287 = vmatprep.subr.bf16.mxu0 %v4059
        %4288 = vmatpush1.bf16.msra.mxu0 %v4058
        %4289 = vmatprep.subr.bf16.mxu0 %v4055
        %4290 = vmatpush1.bf16.msra.mxu0 %v4054
        %4291 = vmatprep.subr.bf16.mxu0 %v4051
        %4292 = vmatpush1.bf16.msra.mxu0 %v4050
        %4293 = vmatprep.subr.bf16.mxu0 %v4047
        %4294 = vmatpush1.bf16.msra.mxu0 %v4046
        %4295 = vmatprep.subr.bf16.mxu0 %v4043
        %4296 = vmatpush1.bf16.msra.mxu0 %v4042
        %4297 = vmatprep.subr.bf16.mxu0 %v4039
        %4298 = vmatpush1.bf16.msra.mxu0 %v4038
        %4299 = vmatprep.subr.bf16.mxu0 %v4099
        %4300 = vmatpush2.bf16.msra.mxu0 %v4098
        %4301 = vmatprep.subr.bf16.mxu0 %v4095
        %4302 = vmatpush2.bf16.msra.mxu0 %v4094
        %4303 = vmatprep.subr.bf16.mxu0 %v4091
        %4304 = vmatpush2.bf16.msra.mxu0 %v4090
        %4305 = vmatprep.subr.bf16.mxu0 %v4087
        %4306 = vmatpush2.bf16.msra.mxu0 %v4086
        %4307 = vmatprep.subr.bf16.mxu0 %v4083
        %4308 = vmatpush2.bf16.msra.mxu0 %v4082
        %4309 = vmatprep.subr.bf16.mxu0 %v4079
        %4310 = vmatpush2.bf16.msra.mxu0 %v4078
        %4311 = vmatprep.subr.bf16.mxu0 %v4075
        %4312 = vmatpush2.bf16.msra.mxu0 %v4074
        %4313 = vmatprep.subr.bf16.mxu0 %v4071
        %4314 = vmatpush2.bf16.msra.mxu0 %v4070
        %4315 = vmatprep.mubr.bf16.mxu0 %v3569
        %4316 = vmatmul.mubr.bf16.gmra.mxu0 %v3568
        %v4317 = vpop.f32.mrf.mxu0
        %v4318 = vadd.f32 %v4265, %v4317
        %v4319 = vpop.f32.mrf.mxu0
        %v4320 = vadd.f32 %v4267, %v4319
        %v4321 = vpop.f32.mrf.mxu0
        %v4322 = vadd.f32 %v4269, %v4321
        %v4323 = vpop.f32.mrf.mxu0
        %v4324 = vadd.f32 %v4271, %v4323
        %4325 = vmatprep.mubr.bf16.mxu0 %v3573
        %4326 = vmatmul.mubr.bf16.gmra.mxu0 %v3572
        %v4327 = vpop.f32.mrf.mxu0
        %v4328 = vadd.f32 %v4275, %v4327
        %v4329 = vpop.f32.mrf.mxu0
        %v4330 = vadd.f32 %v4277, %v4329
        %v4331 = vpop.f32.mrf.mxu0
        %v4332 = vadd.f32 %v4279, %v4331
        %v4333 = vpop.f32.mrf.mxu0
        %v4334 = vadd.f32 %v4281, %v4333
        %4335 = vdwg.mxu0
        %4336 = vmatprep.subr.bf16.mxu0 %v4005
        %4337 = vmatpush1.bf16.msra.mxu0 %v4004
        %4338 = vmatprep.subr.bf16.mxu0 %v4001
        %4339 = vmatpush1.bf16.msra.mxu0 %v4000
        %4340 = vmatprep.subr.bf16.mxu0 %v3997
        %4341 = vmatpush1.bf16.msra.mxu0 %v3996
        %4342 = vmatprep.subr.bf16.mxu0 %v3993
        %4343 = vmatpush1.bf16.msra.mxu0 %v3992
        %4344 = vmatprep.subr.bf16.mxu0 %v3989
        %4345 = vmatpush1.bf16.msra.mxu0 %v3988
        %4346 = vmatprep.subr.bf16.mxu0 %v3985
        %4347 = vmatpush1.bf16.msra.mxu0 %v3984
        %4348 = vmatprep.subr.bf16.mxu0 %v3981
        %4349 = vmatpush1.bf16.msra.mxu0 %v3980
        %4350 = vmatprep.subr.bf16.mxu0 %v3977
        %4351 = vmatpush1.bf16.msra.mxu0 %v3976
        %4352 = vmatprep.subr.bf16.mxu0 %v4037
        %4353 = vmatpush2.bf16.msra.mxu0 %v4036
        %4354 = vmatprep.subr.bf16.mxu0 %v4033
        %4355 = vmatpush2.bf16.msra.mxu0 %v4032
        %4356 = vmatprep.subr.bf16.mxu0 %v4029
        %4357 = vmatpush2.bf16.msra.mxu0 %v4028
        %4358 = vmatprep.subr.bf16.mxu0 %v4025
        %4359 = vmatpush2.bf16.msra.mxu0 %v4024
        %4360 = vmatprep.subr.bf16.mxu0 %v4021
        %4361 = vmatpush2.bf16.msra.mxu0 %v4020
        %4362 = vmatprep.subr.bf16.mxu0 %v4017
        %4363 = vmatpush2.bf16.msra.mxu0 %v4016
        %4364 = vmatprep.subr.bf16.mxu0 %v4013
        %4365 = vmatpush2.bf16.msra.mxu0 %v4012
        %4366 = vmatprep.subr.bf16.mxu0 %v4009
        %4367 = vmatpush2.bf16.msra.mxu0 %v4008
        %4368 = vmatprep.mubr.bf16.mxu0 %v3567
        %4369 = vmatmul.mubr.bf16.gmra.mxu0 %v3566
        %v4370 = vpop.f32.mrf.mxu0
        %v4371 = vadd.f32 %v3585, %v4370
        %v4372 = vpop.f32.mrf.mxu0
        %v4373 = vadd.f32 %v3589, %v4372
        %v4374 = vpop.f32.mrf.mxu0
        %v4375 = vadd.f32 %v3585, %v4374
        %v4376 = vpop.f32.mrf.mxu0
        %v4377 = vadd.f32 %v3589, %v4376
        %4378 = vmatprep.mubr.bf16.mxu0 %v3571
        %4379 = vmatmul.mubr.bf16.gmra.mxu0 %v3570
        %v4380 = vpop.f32.mrf.mxu0
        %v4381 = vadd.f32 %v3585, %v4380
        %v4382 = vpop.f32.mrf.mxu0
        %v4383 = vadd.f32 %v3589, %v4382
        %v4384 = vpop.f32.mrf.mxu0
        %v4385 = vadd.f32 %v3585, %v4384
        %v4386 = vpop.f32.mrf.mxu0
        %v4387 = vadd.f32 %v3589, %v4386
        %4388 = vdwg.mxu0
        %4389 = vmatprep.subr.bf16.mxu0 %v4069
        %4390 = vmatpush1.bf16.msra.mxu0 %v4068
        %4391 = vmatprep.subr.bf16.mxu0 %v4065
        %4392 = vmatpush1.bf16.msra.mxu0 %v4064
        %4393 = vmatprep.subr.bf16.mxu0 %v4061
        %4394 = vmatpush1.bf16.msra.mxu0 %v4060
        %4395 = vmatprep.subr.bf16.mxu0 %v4057
        %4396 = vmatpush1.bf16.msra.mxu0 %v4056
        %4397 = vmatprep.subr.bf16.mxu0 %v4053
        %4398 = vmatpush1.bf16.msra.mxu0 %v4052
        %4399 = vmatprep.subr.bf16.mxu0 %v4049
        %4400 = vmatpush1.bf16.msra.mxu0 %v4048
        %4401 = vmatprep.subr.bf16.mxu0 %v4045
        %4402 = vmatpush1.bf16.msra.mxu0 %v4044
        %4403 = vmatprep.subr.bf16.mxu0 %v4041
        %4404 = vmatpush1.bf16.msra.mxu0 %v4040
        %4405 = vmatprep.subr.bf16.mxu0 %v4101
        %4406 = vmatpush2.bf16.msra.mxu0 %v4100
        %4407 = vmatprep.subr.bf16.mxu0 %v4097
        %4408 = vmatpush2.bf16.msra.mxu0 %v4096
        %4409 = vmatprep.subr.bf16.mxu0 %v4093
        %4410 = vmatpush2.bf16.msra.mxu0 %v4092
        %4411 = vmatprep.subr.bf16.mxu0 %v4089
        %4412 = vmatpush2.bf16.msra.mxu0 %v4088
        %4413 = vmatprep.subr.bf16.mxu0 %v4085
        %4414 = vmatpush2.bf16.msra.mxu0 %v4084
        %4415 = vmatprep.subr.bf16.mxu0 %v4081
        %4416 = vmatpush2.bf16.msra.mxu0 %v4080
        %4417 = vmatprep.subr.bf16.mxu0 %v4077
        %4418 = vmatpush2.bf16.msra.mxu0 %v4076
        %4419 = vmatprep.subr.bf16.mxu0 %v4073
        %4420 = vmatpush2.bf16.msra.mxu0 %v4072
        %4421 = vmatprep.mubr.bf16.mxu0 %v3569
        %4422 = vmatmul.mubr.bf16.gmra.mxu0 %v3568
        %v4423 = vpop.f32.mrf.mxu0
        %v4424 = vadd.f32 %v4371, %v4423
        %v4425 = vpop.f32.mrf.mxu0
        %v4426 = vadd.f32 %v4373, %v4425
        %v4427 = vpop.f32.mrf.mxu0
        %v4428 = vadd.f32 %v4375, %v4427
        %v4429 = vpop.f32.mrf.mxu0
        %v4430 = vadd.f32 %v4377, %v4429
        %4431 = vmatprep.mubr.bf16.mxu0 %v3573
        %4432 = vmatmul.mubr.bf16.gmra.mxu0 %v3572
        %v4433 = vpop.f32.mrf.mxu0
        %v4434 = vadd.f32 %v4381, %v4433
        %v4435 = vpop.f32.mrf.mxu0
        %v4436 = vadd.f32 %v4383, %v4435
        %v4437 = vpop.f32.mrf.mxu0
        %v4438 = vadd.f32 %v4385, %v4437
        %v4439 = vpop.f32.mrf.mxu0
        %v4440 = vadd.f32 %v4387, %v4439
        %4441 = vdwg.mxu0
        %v4442 = vmax.f32 %v4318, 0.0
        %v4443 = vmax.f32 %v4320, 0.0
        %v4444 = vmax.f32 %v4424, 0.0
        %v4445 = vmax.f32 %v4426, 0.0
        %v4446 = vmax.f32 %v4322, 0.0
        %v4447 = vmax.f32 %v4324, 0.0
        %v4448 = vmax.f32 %v4428, 0.0
        %v4449 = vmax.f32 %v4430, 0.0
        %v4450 = vmax.f32 %v4328, 0.0
        %v4451 = vmax.f32 %v4330, 0.0
        %v4452 = vmax.f32 %v4434, 0.0
        %v4453 = vmax.f32 %v4436, 0.0
        %v4454 = vmax.f32 %v4332, 0.0
        %v4455 = vmax.f32 %v4334, 0.0
        %v4456 = vmax.f32 %v4438, 0.0
        %v4457 = vmax.f32 %v4440, 0.0
        %v4458 = vpack.c.bf16 %v4446, %v4442
        %v4459 = vpack.c.bf16 %v4447, %v4443
        %v4460 = vpack.c.bf16 %v4448, %v4444
        %v4461 = vpack.c.bf16 %v4449, %v4445
        %v4462 = vpack.c.bf16 %v4454, %v4450
        %v4463 = vpack.c.bf16 %v4455, %v4451
        %v4464 = vpack.c.bf16 %v4456, %v4452
        %v4465 = vpack.c.bf16 %v4457, %v4453
        %v4466 = vlaneseq
        %v4467 = vshrl.u32 %v4466, 7
        %v4468 = vsub.s32 1, %v4467
        %v4469 = vrot.slane %v880, %v4468
        %v4470 = vlaneseq
        %v4471 = vshrl.u32 %v4470, 7
        %v4472 = vsub.s32 1, %v4471
        %v4473 = vrot.slane %v881, %v4472
        %v4474 = vlaneseq
        %v4475 = vshrl.u32 %v4474, 7
        %v4476 = vsub.s32 1, %v4475
        %v4477 = vrot.slane %v882, %v4476
        %v4478 = vlaneseq
        %v4479 = vshrl.u32 %v4478, 7
        %v4480 = vsub.s32 1, %v4479
        %v4481 = vrot.slane %v883, %v4480
        %v4610 = vunpack.c.l.b16 %v752
        %v4611 = vunpack.c.h.b16 %v752
        %v4612 = vunpack.c.l.b16 %v753
        %v4613 = vunpack.c.h.b16 %v753
        %v4614 = vunpack.c.l.b16 %v754
        %v4615 = vunpack.c.h.b16 %v754
        %v4616 = vunpack.c.l.b16 %v755
        %v4617 = vunpack.c.h.b16 %v755
        %v4618 = vunpack.c.l.b16 %v756
        %v4619 = vunpack.c.h.b16 %v756
        %v4620 = vunpack.c.l.b16 %v757
        %v4621 = vunpack.c.h.b16 %v757
        %v4622 = vunpack.c.l.b16 %v758
        %v4623 = vunpack.c.h.b16 %v758
        %v4624 = vunpack.c.l.b16 %v759
        %v4625 = vunpack.c.h.b16 %v759
        %v4626 = vunpack.c.l.b16 %v760
        %v4627 = vunpack.c.h.b16 %v760
        %v4628 = vunpack.c.l.b16 %v761
        %v4629 = vunpack.c.h.b16 %v761
        %v4630 = vunpack.c.l.b16 %v762
        %v4631 = vunpack.c.h.b16 %v762
        %v4632 = vunpack.c.l.b16 %v763
        %v4633 = vunpack.c.h.b16 %v763
        %v4634 = vunpack.c.l.b16 %v764
        %v4635 = vunpack.c.h.b16 %v764
        %v4636 = vunpack.c.l.b16 %v765
        %v4637 = vunpack.c.h.b16 %v765
        %v4638 = vunpack.c.l.b16 %v766
        %v4639 = vunpack.c.h.b16 %v766
        %v4640 = vunpack.c.l.b16 %v767
        %v4641 = vunpack.c.h.b16 %v767
        %v4642 = vunpack.c.l.b16 %v768
        %v4643 = vunpack.c.h.b16 %v768
        %v4644 = vunpack.c.l.b16 %v769
        %v4645 = vunpack.c.h.b16 %v769
        %v4646 = vunpack.c.l.b16 %v770
        %v4647 = vunpack.c.h.b16 %v770
        %v4648 = vunpack.c.l.b16 %v771
        %v4649 = vunpack.c.h.b16 %v771
        %v4650 = vunpack.c.l.b16 %v772
        %v4651 = vunpack.c.h.b16 %v772
        %v4652 = vunpack.c.l.b16 %v773
        %v4653 = vunpack.c.h.b16 %v773
        %v4654 = vunpack.c.l.b16 %v774
        %v4655 = vunpack.c.h.b16 %v774
        %v4656 = vunpack.c.l.b16 %v775
        %v4657 = vunpack.c.h.b16 %v775
        %v4658 = vunpack.c.l.b16 %v776
        %v4659 = vunpack.c.h.b16 %v776
        %v4660 = vunpack.c.l.b16 %v777
        %v4661 = vunpack.c.h.b16 %v777
        %v4662 = vunpack.c.l.b16 %v778
        %v4663 = vunpack.c.h.b16 %v778
        %v4664 = vunpack.c.l.b16 %v779
        %v4665 = vunpack.c.h.b16 %v779
        %v4666 = vunpack.c.l.b16 %v780
        %v4667 = vunpack.c.h.b16 %v780
        %v4668 = vunpack.c.l.b16 %v781
        %v4669 = vunpack.c.h.b16 %v781
        %v4670 = vunpack.c.l.b16 %v782
        %v4671 = vunpack.c.h.b16 %v782
        %v4672 = vunpack.c.l.b16 %v783
        %v4673 = vunpack.c.h.b16 %v783
        %v4674 = vunpack.c.l.b16 %v784
        %v4675 = vunpack.c.h.b16 %v784
        %v4676 = vunpack.c.l.b16 %v785
        %v4677 = vunpack.c.h.b16 %v785
        %v4678 = vunpack.c.l.b16 %v786
        %v4679 = vunpack.c.h.b16 %v786
        %v4680 = vunpack.c.l.b16 %v787
        %v4681 = vunpack.c.h.b16 %v787
        %v4682 = vunpack.c.l.b16 %v788
        %v4683 = vunpack.c.h.b16 %v788
        %v4684 = vunpack.c.l.b16 %v789
        %v4685 = vunpack.c.h.b16 %v789
        %v4686 = vunpack.c.l.b16 %v790
        %v4687 = vunpack.c.h.b16 %v790
        %v4688 = vunpack.c.l.b16 %v791
        %v4689 = vunpack.c.h.b16 %v791
        %v4690 = vunpack.c.l.b16 %v792
        %v4691 = vunpack.c.h.b16 %v792
        %v4692 = vunpack.c.l.b16 %v793
        %v4693 = vunpack.c.h.b16 %v793
        %v4694 = vunpack.c.l.b16 %v794
        %v4695 = vunpack.c.h.b16 %v794
        %v4696 = vunpack.c.l.b16 %v795
        %v4697 = vunpack.c.h.b16 %v795
        %v4698 = vunpack.c.l.b16 %v796
        %v4699 = vunpack.c.h.b16 %v796
        %v4700 = vunpack.c.l.b16 %v797
        %v4701 = vunpack.c.h.b16 %v797
        %v4702 = vunpack.c.l.b16 %v798
        %v4703 = vunpack.c.h.b16 %v798
        %v4704 = vunpack.c.l.b16 %v799
        %v4705 = vunpack.c.h.b16 %v799
        %v4706 = vunpack.c.l.b16 %v800
        %v4707 = vunpack.c.h.b16 %v800
        %v4708 = vunpack.c.l.b16 %v801
        %v4709 = vunpack.c.h.b16 %v801
        %v4710 = vunpack.c.l.b16 %v802
        %v4711 = vunpack.c.h.b16 %v802
        %v4712 = vunpack.c.l.b16 %v803
        %v4713 = vunpack.c.h.b16 %v803
        %v4714 = vunpack.c.l.b16 %v804
        %v4715 = vunpack.c.h.b16 %v804
        %v4716 = vunpack.c.l.b16 %v805
        %v4717 = vunpack.c.h.b16 %v805
        %v4718 = vunpack.c.l.b16 %v806
        %v4719 = vunpack.c.h.b16 %v806
        %v4720 = vunpack.c.l.b16 %v807
        %v4721 = vunpack.c.h.b16 %v807
        %v4722 = vunpack.c.l.b16 %v808
        %v4723 = vunpack.c.h.b16 %v808
        %v4724 = vunpack.c.l.b16 %v809
        %v4725 = vunpack.c.h.b16 %v809
        %v4726 = vunpack.c.l.b16 %v810
        %v4727 = vunpack.c.h.b16 %v810
        %v4728 = vunpack.c.l.b16 %v811
        %v4729 = vunpack.c.h.b16 %v811
        %v4730 = vunpack.c.l.b16 %v812
        %v4731 = vunpack.c.h.b16 %v812
        %v4732 = vunpack.c.l.b16 %v813
        %v4733 = vunpack.c.h.b16 %v813
        %v4734 = vunpack.c.l.b16 %v814
        %v4735 = vunpack.c.h.b16 %v814
        %v4736 = vunpack.c.l.b16 %v815
        %v4737 = vunpack.c.h.b16 %v815
        %v4738 = vunpack.c.l.b16 %v816
        %v4739 = vunpack.c.h.b16 %v816
        %v4740 = vunpack.c.l.b16 %v817
        %v4741 = vunpack.c.h.b16 %v817
        %v4742 = vunpack.c.l.b16 %v818
        %v4743 = vunpack.c.h.b16 %v818
        %v4744 = vunpack.c.l.b16 %v819
        %v4745 = vunpack.c.h.b16 %v819
        %v4746 = vunpack.c.l.b16 %v820
        %v4747 = vunpack.c.h.b16 %v820
        %v4748 = vunpack.c.l.b16 %v821
        %v4749 = vunpack.c.h.b16 %v821
        %v4750 = vunpack.c.l.b16 %v822
        %v4751 = vunpack.c.h.b16 %v822
        %v4752 = vunpack.c.l.b16 %v823
        %v4753 = vunpack.c.h.b16 %v823
        %v4754 = vunpack.c.l.b16 %v824
        %v4755 = vunpack.c.h.b16 %v824
        %v4756 = vunpack.c.l.b16 %v825
        %v4757 = vunpack.c.h.b16 %v825
        %v4758 = vunpack.c.l.b16 %v826
        %v4759 = vunpack.c.h.b16 %v826
        %v4760 = vunpack.c.l.b16 %v827
        %v4761 = vunpack.c.h.b16 %v827
        %v4762 = vunpack.c.l.b16 %v828
        %v4763 = vunpack.c.h.b16 %v828
        %v4764 = vunpack.c.l.b16 %v829
        %v4765 = vunpack.c.h.b16 %v829
        %v4766 = vunpack.c.l.b16 %v830
        %v4767 = vunpack.c.h.b16 %v830
        %v4768 = vunpack.c.l.b16 %v831
        %v4769 = vunpack.c.h.b16 %v831
        %v4770 = vunpack.c.l.b16 %v832
        %v4771 = vunpack.c.h.b16 %v832
        %v4772 = vunpack.c.l.b16 %v833
        %v4773 = vunpack.c.h.b16 %v833
        %v4774 = vunpack.c.l.b16 %v834
        %v4775 = vunpack.c.h.b16 %v834
        %v4776 = vunpack.c.l.b16 %v835
        %v4777 = vunpack.c.h.b16 %v835
        %v4778 = vunpack.c.l.b16 %v836
        %v4779 = vunpack.c.h.b16 %v836
        %v4780 = vunpack.c.l.b16 %v837
        %v4781 = vunpack.c.h.b16 %v837
        %v4782 = vunpack.c.l.b16 %v838
        %v4783 = vunpack.c.h.b16 %v838
        %v4784 = vunpack.c.l.b16 %v839
        %v4785 = vunpack.c.h.b16 %v839
        %v4786 = vunpack.c.l.b16 %v840
        %v4787 = vunpack.c.h.b16 %v840
        %v4788 = vunpack.c.l.b16 %v841
        %v4789 = vunpack.c.h.b16 %v841
        %v4790 = vunpack.c.l.b16 %v842
        %v4791 = vunpack.c.h.b16 %v842
        %v4792 = vunpack.c.l.b16 %v843
        %v4793 = vunpack.c.h.b16 %v843
        %v4794 = vunpack.c.l.b16 %v844
        %v4795 = vunpack.c.h.b16 %v844
        %v4796 = vunpack.c.l.b16 %v845
        %v4797 = vunpack.c.h.b16 %v845
        %v4798 = vunpack.c.l.b16 %v846
        %v4799 = vunpack.c.h.b16 %v846
        %v4800 = vunpack.c.l.b16 %v847
        %v4801 = vunpack.c.h.b16 %v847
        %v4802 = vunpack.c.l.b16 %v848
        %v4803 = vunpack.c.h.b16 %v848
        %v4804 = vunpack.c.l.b16 %v849
        %v4805 = vunpack.c.h.b16 %v849
        %v4806 = vunpack.c.l.b16 %v850
        %v4807 = vunpack.c.h.b16 %v850
        %v4808 = vunpack.c.l.b16 %v851
        %v4809 = vunpack.c.h.b16 %v851
        %v4810 = vunpack.c.l.b16 %v852
        %v4811 = vunpack.c.h.b16 %v852
        %v4812 = vunpack.c.l.b16 %v853
        %v4813 = vunpack.c.h.b16 %v853
        %v4814 = vunpack.c.l.b16 %v854
        %v4815 = vunpack.c.h.b16 %v854
        %v4816 = vunpack.c.l.b16 %v855
        %v4817 = vunpack.c.h.b16 %v855
        %v4818 = vunpack.c.l.b16 %v856
        %v4819 = vunpack.c.h.b16 %v856
        %v4820 = vunpack.c.l.b16 %v857
        %v4821 = vunpack.c.h.b16 %v857
        %v4822 = vunpack.c.l.b16 %v858
        %v4823 = vunpack.c.h.b16 %v858
        %v4824 = vunpack.c.l.b16 %v859
        %v4825 = vunpack.c.h.b16 %v859
        %v4826 = vunpack.c.l.b16 %v860
        %v4827 = vunpack.c.h.b16 %v860
        %v4828 = vunpack.c.l.b16 %v861
        %v4829 = vunpack.c.h.b16 %v861
        %v4830 = vunpack.c.l.b16 %v862
        %v4831 = vunpack.c.h.b16 %v862
        %v4832 = vunpack.c.l.b16 %v863
        %v4833 = vunpack.c.h.b16 %v863
        %v4834 = vunpack.c.l.b16 %v864
        %v4835 = vunpack.c.h.b16 %v864
        %v4836 = vunpack.c.l.b16 %v865
        %v4837 = vunpack.c.h.b16 %v865
        %v4838 = vunpack.c.l.b16 %v866
        %v4839 = vunpack.c.h.b16 %v866
        %v4840 = vunpack.c.l.b16 %v867
        %v4841 = vunpack.c.h.b16 %v867
        %v4842 = vunpack.c.l.b16 %v868
        %v4843 = vunpack.c.h.b16 %v868
        %v4844 = vunpack.c.l.b16 %v869
        %v4845 = vunpack.c.h.b16 %v869
        %v4846 = vunpack.c.l.b16 %v870
        %v4847 = vunpack.c.h.b16 %v870
        %v4848 = vunpack.c.l.b16 %v871
        %v4849 = vunpack.c.h.b16 %v871
        %v4850 = vunpack.c.l.b16 %v872
        %v4851 = vunpack.c.h.b16 %v872
        %v4852 = vunpack.c.l.b16 %v873
        %v4853 = vunpack.c.h.b16 %v873
        %v4854 = vunpack.c.l.b16 %v874
        %v4855 = vunpack.c.h.b16 %v874
        %v4856 = vunpack.c.l.b16 %v875
        %v4857 = vunpack.c.h.b16 %v875
        %v4858 = vunpack.c.l.b16 %v876
        %v4859 = vunpack.c.h.b16 %v876
        %v4860 = vunpack.c.l.b16 %v877
        %v4861 = vunpack.c.h.b16 %v877
        %v4862 = vunpack.c.l.b16 %v878
        %v4863 = vunpack.c.h.b16 %v878
        %v4864 = vunpack.c.l.b16 %v879
        %v4865 = vunpack.c.h.b16 %v879
        %v4866 = vpack.c.b16 %v4614, %v4610
        %v4867 = vpack.c.b16 %v4615, %v4611
        %v4868 = vpack.c.b16 %v4616, %v4612
        %v4869 = vpack.c.b16 %v4617, %v4613
        %v4870 = vpack.c.b16 %v4622, %v4618
        %v4871 = vpack.c.b16 %v4623, %v4619
        %v4872 = vpack.c.b16 %v4624, %v4620
        %v4873 = vpack.c.b16 %v4625, %v4621
        %v4874 = vpack.c.b16 %v4630, %v4626
        %v4875 = vpack.c.b16 %v4631, %v4627
        %v4876 = vpack.c.b16 %v4632, %v4628
        %v4877 = vpack.c.b16 %v4633, %v4629
        %v4878 = vpack.c.b16 %v4638, %v4634
        %v4879 = vpack.c.b16 %v4639, %v4635
        %v4880 = vpack.c.b16 %v4640, %v4636
        %v4881 = vpack.c.b16 %v4641, %v4637
        %v4882 = vpack.c.b16 %v4646, %v4642
        %v4883 = vpack.c.b16 %v4647, %v4643
        %v4884 = vpack.c.b16 %v4648, %v4644
        %v4885 = vpack.c.b16 %v4649, %v4645
        %v4886 = vpack.c.b16 %v4654, %v4650
        %v4887 = vpack.c.b16 %v4655, %v4651
        %v4888 = vpack.c.b16 %v4656, %v4652
        %v4889 = vpack.c.b16 %v4657, %v4653
        %v4890 = vpack.c.b16 %v4662, %v4658
        %v4891 = vpack.c.b16 %v4663, %v4659
        %v4892 = vpack.c.b16 %v4664, %v4660
        %v4893 = vpack.c.b16 %v4665, %v4661
        %v4894 = vpack.c.b16 %v4670, %v4666
        %v4895 = vpack.c.b16 %v4671, %v4667
        %v4896 = vpack.c.b16 %v4672, %v4668
        %v4897 = vpack.c.b16 %v4673, %v4669
        %v4898 = vpack.c.b16 %v4678, %v4674
        %v4899 = vpack.c.b16 %v4679, %v4675
        %v4900 = vpack.c.b16 %v4680, %v4676
        %v4901 = vpack.c.b16 %v4681, %v4677
        %v4902 = vpack.c.b16 %v4686, %v4682
        %v4903 = vpack.c.b16 %v4687, %v4683
        %v4904 = vpack.c.b16 %v4688, %v4684
        %v4905 = vpack.c.b16 %v4689, %v4685
        %v4906 = vpack.c.b16 %v4694, %v4690
        %v4907 = vpack.c.b16 %v4695, %v4691
        %v4908 = vpack.c.b16 %v4696, %v4692
        %v4909 = vpack.c.b16 %v4697, %v4693
        %v4910 = vpack.c.b16 %v4702, %v4698
        %v4911 = vpack.c.b16 %v4703, %v4699
        %v4912 = vpack.c.b16 %v4704, %v4700
        %v4913 = vpack.c.b16 %v4705, %v4701
        %v4914 = vpack.c.b16 %v4710, %v4706
        %v4915 = vpack.c.b16 %v4711, %v4707
        %v4916 = vpack.c.b16 %v4712, %v4708
        %v4917 = vpack.c.b16 %v4713, %v4709
        %v4918 = vpack.c.b16 %v4718, %v4714
        %v4919 = vpack.c.b16 %v4719, %v4715
        %v4920 = vpack.c.b16 %v4720, %v4716
        %v4921 = vpack.c.b16 %v4721, %v4717
        %v4922 = vpack.c.b16 %v4726, %v4722
        %v4923 = vpack.c.b16 %v4727, %v4723
        %v4924 = vpack.c.b16 %v4728, %v4724
        %v4925 = vpack.c.b16 %v4729, %v4725
        %v4926 = vpack.c.b16 %v4734, %v4730
        %v4927 = vpack.c.b16 %v4735, %v4731
        %v4928 = vpack.c.b16 %v4736, %v4732
        %v4929 = vpack.c.b16 %v4737, %v4733
        %v4930 = vpack.c.b16 %v4742, %v4738
        %v4931 = vpack.c.b16 %v4743, %v4739
        %v4932 = vpack.c.b16 %v4744, %v4740
        %v4933 = vpack.c.b16 %v4745, %v4741
        %v4934 = vpack.c.b16 %v4750, %v4746
        %v4935 = vpack.c.b16 %v4751, %v4747
        %v4936 = vpack.c.b16 %v4752, %v4748
        %v4937 = vpack.c.b16 %v4753, %v4749
        %v4938 = vpack.c.b16 %v4758, %v4754
        %v4939 = vpack.c.b16 %v4759, %v4755
        %v4940 = vpack.c.b16 %v4760, %v4756
        %v4941 = vpack.c.b16 %v4761, %v4757
        %v4942 = vpack.c.b16 %v4766, %v4762
        %v4943 = vpack.c.b16 %v4767, %v4763
        %v4944 = vpack.c.b16 %v4768, %v4764
        %v4945 = vpack.c.b16 %v4769, %v4765
        %v4946 = vpack.c.b16 %v4774, %v4770
        %v4947 = vpack.c.b16 %v4775, %v4771
        %v4948 = vpack.c.b16 %v4776, %v4772
        %v4949 = vpack.c.b16 %v4777, %v4773
        %v4950 = vpack.c.b16 %v4782, %v4778
        %v4951 = vpack.c.b16 %v4783, %v4779
        %v4952 = vpack.c.b16 %v4784, %v4780
        %v4953 = vpack.c.b16 %v4785, %v4781
        %v4954 = vpack.c.b16 %v4790, %v4786
        %v4955 = vpack.c.b16 %v4791, %v4787
        %v4956 = vpack.c.b16 %v4792, %v4788
        %v4957 = vpack.c.b16 %v4793, %v4789
        %v4958 = vpack.c.b16 %v4798, %v4794
        %v4959 = vpack.c.b16 %v4799, %v4795
        %v4960 = vpack.c.b16 %v4800, %v4796
        %v4961 = vpack.c.b16 %v4801, %v4797
        %v4962 = vpack.c.b16 %v4806, %v4802
        %v4963 = vpack.c.b16 %v4807, %v4803
        %v4964 = vpack.c.b16 %v4808, %v4804
        %v4965 = vpack.c.b16 %v4809, %v4805
        %v4966 = vpack.c.b16 %v4814, %v4810
        %v4967 = vpack.c.b16 %v4815, %v4811
        %v4968 = vpack.c.b16 %v4816, %v4812
        %v4969 = vpack.c.b16 %v4817, %v4813
        %v4970 = vpack.c.b16 %v4822, %v4818
        %v4971 = vpack.c.b16 %v4823, %v4819
        %v4972 = vpack.c.b16 %v4824, %v4820
        %v4973 = vpack.c.b16 %v4825, %v4821
        %v4974 = vpack.c.b16 %v4830, %v4826
        %v4975 = vpack.c.b16 %v4831, %v4827
        %v4976 = vpack.c.b16 %v4832, %v4828
        %v4977 = vpack.c.b16 %v4833, %v4829
        %v4978 = vpack.c.b16 %v4838, %v4834
        %v4979 = vpack.c.b16 %v4839, %v4835
        %v4980 = vpack.c.b16 %v4840, %v4836
        %v4981 = vpack.c.b16 %v4841, %v4837
        %v4982 = vpack.c.b16 %v4846, %v4842
        %v4983 = vpack.c.b16 %v4847, %v4843
        %v4984 = vpack.c.b16 %v4848, %v4844
        %v4985 = vpack.c.b16 %v4849, %v4845
        %v4986 = vpack.c.b16 %v4854, %v4850
        %v4987 = vpack.c.b16 %v4855, %v4851
        %v4988 = vpack.c.b16 %v4856, %v4852
        %v4989 = vpack.c.b16 %v4857, %v4853
        %v4990 = vpack.c.b16 %v4862, %v4858
        %v4991 = vpack.c.b16 %v4863, %v4859
        %v4992 = vpack.c.b16 %v4864, %v4860
        %v4993 = vpack.c.b16 %v4865, %v4861
        %5122 = vmatprep.subr.bf16.mxu0 %v4895
        %5123 = vmatpush1.bf16.msra.mxu0 %v4894
        %5124 = vmatprep.subr.bf16.mxu0 %v4891
        %5125 = vmatpush1.bf16.msra.mxu0 %v4890
        %5126 = vmatprep.subr.bf16.mxu0 %v4887
        %5127 = vmatpush1.bf16.msra.mxu0 %v4886
        %5128 = vmatprep.subr.bf16.mxu0 %v4883
        %5129 = vmatpush1.bf16.msra.mxu0 %v4882
        %5130 = vmatprep.subr.bf16.mxu0 %v4879
        %5131 = vmatpush1.bf16.msra.mxu0 %v4878
        %5132 = vmatprep.subr.bf16.mxu0 %v4875
        %5133 = vmatpush1.bf16.msra.mxu0 %v4874
        %5134 = vmatprep.subr.bf16.mxu0 %v4871
        %5135 = vmatpush1.bf16.msra.mxu0 %v4870
        %5136 = vmatprep.subr.bf16.mxu0 %v4867
        %5137 = vmatpush1.bf16.msra.mxu0 %v4866
        %5138 = vmatprep.subr.bf16.mxu0 %v4927
        %5139 = vmatpush2.bf16.msra.mxu0 %v4926
        %5140 = vmatprep.subr.bf16.mxu0 %v4923
        %5141 = vmatpush2.bf16.msra.mxu0 %v4922
        %5142 = vmatprep.subr.bf16.mxu0 %v4919
        %5143 = vmatpush2.bf16.msra.mxu0 %v4918
        %5144 = vmatprep.subr.bf16.mxu0 %v4915
        %5145 = vmatpush2.bf16.msra.mxu0 %v4914
        %5146 = vmatprep.subr.bf16.mxu0 %v4911
        %5147 = vmatpush2.bf16.msra.mxu0 %v4910
        %5148 = vmatprep.subr.bf16.mxu0 %v4907
        %5149 = vmatpush2.bf16.msra.mxu0 %v4906
        %5150 = vmatprep.subr.bf16.mxu0 %v4903
        %5151 = vmatpush2.bf16.msra.mxu0 %v4902
        %5152 = vmatprep.subr.bf16.mxu0 %v4899
        %5153 = vmatpush2.bf16.msra.mxu0 %v4898
        %5154 = vmatprep.mubr.bf16.mxu0 %v4459
        %5155 = vmatmul.mubr.bf16.gmra.mxu0 %v4458
        %v5156 = vpop.f32.mrf.mxu0
        %v5157 = vadd.f32 %v4469, %v5156
        %v5158 = vpop.f32.mrf.mxu0
        %v5159 = vadd.f32 %v4473, %v5158
        %v5160 = vpop.f32.mrf.mxu0
        %v5161 = vadd.f32 %v4469, %v5160
        %v5162 = vpop.f32.mrf.mxu0
        %v5163 = vadd.f32 %v4473, %v5162
        %5164 = vmatprep.mubr.bf16.mxu0 %v4463
        %5165 = vmatmul.mubr.bf16.gmra.mxu0 %v4462
        %v5166 = vpop.f32.mrf.mxu0
        %v5167 = vadd.f32 %v4469, %v5166
        %v5168 = vpop.f32.mrf.mxu0
        %v5169 = vadd.f32 %v4473, %v5168
        %v5170 = vpop.f32.mrf.mxu0
        %v5171 = vadd.f32 %v4469, %v5170
        %v5172 = vpop.f32.mrf.mxu0
        %v5173 = vadd.f32 %v4473, %v5172
        %5174 = vdwg.mxu0
        %5175 = vmatprep.subr.bf16.mxu0 %v4959
        %5176 = vmatpush1.bf16.msra.mxu0 %v4958
        %5177 = vmatprep.subr.bf16.mxu0 %v4955
        %5178 = vmatpush1.bf16.msra.mxu0 %v4954
        %5179 = vmatprep.subr.bf16.mxu0 %v4951
        %5180 = vmatpush1.bf16.msra.mxu0 %v4950
        %5181 = vmatprep.subr.bf16.mxu0 %v4947
        %5182 = vmatpush1.bf16.msra.mxu0 %v4946
        %5183 = vmatprep.subr.bf16.mxu0 %v4943
        %5184 = vmatpush1.bf16.msra.mxu0 %v4942
        %5185 = vmatprep.subr.bf16.mxu0 %v4939
        %5186 = vmatpush1.bf16.msra.mxu0 %v4938
        %5187 = vmatprep.subr.bf16.mxu0 %v4935
        %5188 = vmatpush1.bf16.msra.mxu0 %v4934
        %5189 = vmatprep.subr.bf16.mxu0 %v4931
        %5190 = vmatpush1.bf16.msra.mxu0 %v4930
        %5191 = vmatprep.subr.bf16.mxu0 %v4991
        %5192 = vmatpush2.bf16.msra.mxu0 %v4990
        %5193 = vmatprep.subr.bf16.mxu0 %v4987
        %5194 = vmatpush2.bf16.msra.mxu0 %v4986
        %5195 = vmatprep.subr.bf16.mxu0 %v4983
        %5196 = vmatpush2.bf16.msra.mxu0 %v4982
        %5197 = vmatprep.subr.bf16.mxu0 %v4979
        %5198 = vmatpush2.bf16.msra.mxu0 %v4978
        %5199 = vmatprep.subr.bf16.mxu0 %v4975
        %5200 = vmatpush2.bf16.msra.mxu0 %v4974
        %5201 = vmatprep.subr.bf16.mxu0 %v4971
        %5202 = vmatpush2.bf16.msra.mxu0 %v4970
        %5203 = vmatprep.subr.bf16.mxu0 %v4967
        %5204 = vmatpush2.bf16.msra.mxu0 %v4966
        %5205 = vmatprep.subr.bf16.mxu0 %v4963
        %5206 = vmatpush2.bf16.msra.mxu0 %v4962
        %5207 = vmatprep.mubr.bf16.mxu0 %v4461
        %5208 = vmatmul.mubr.bf16.gmra.mxu0 %v4460
        %v5209 = vpop.f32.mrf.mxu0
        %v5210 = vadd.f32 %v5157, %v5209
        %v5211 = vpop.f32.mrf.mxu0
        %v5212 = vadd.f32 %v5159, %v5211
        %v5213 = vpop.f32.mrf.mxu0
        %v5214 = vadd.f32 %v5161, %v5213
        %v5215 = vpop.f32.mrf.mxu0
        %v5216 = vadd.f32 %v5163, %v5215
        %5217 = vmatprep.mubr.bf16.mxu0 %v4465
        %5218 = vmatmul.mubr.bf16.gmra.mxu0 %v4464
        %v5219 = vpop.f32.mrf.mxu0
        %v5220 = vadd.f32 %v5167, %v5219
        %v5221 = vpop.f32.mrf.mxu0
        %v5222 = vadd.f32 %v5169, %v5221
        %v5223 = vpop.f32.mrf.mxu0
        %v5224 = vadd.f32 %v5171, %v5223
        %v5225 = vpop.f32.mrf.mxu0
        %v5226 = vadd.f32 %v5173, %v5225
        %5227 = vdwg.mxu0
        %5228 = vmatprep.subr.bf16.mxu0 %v4897
        %5229 = vmatpush1.bf16.msra.mxu0 %v4896
        %5230 = vmatprep.subr.bf16.mxu0 %v4893
        %5231 = vmatpush1.bf16.msra.mxu0 %v4892
        %5232 = vmatprep.subr.bf16.mxu0 %v4889
        %5233 = vmatpush1.bf16.msra.mxu0 %v4888
        %5234 = vmatprep.subr.bf16.mxu0 %v4885
        %5235 = vmatpush1.bf16.msra.mxu0 %v4884
        %5236 = vmatprep.subr.bf16.mxu0 %v4881
        %5237 = vmatpush1.bf16.msra.mxu0 %v4880
        %5238 = vmatprep.subr.bf16.mxu0 %v4877
        %5239 = vmatpush1.bf16.msra.mxu0 %v4876
        %5240 = vmatprep.subr.bf16.mxu0 %v4873
        %5241 = vmatpush1.bf16.msra.mxu0 %v4872
        %5242 = vmatprep.subr.bf16.mxu0 %v4869
        %5243 = vmatpush1.bf16.msra.mxu0 %v4868
        %5244 = vmatprep.subr.bf16.mxu0 %v4929
        %5245 = vmatpush2.bf16.msra.mxu0 %v4928
        %5246 = vmatprep.subr.bf16.mxu0 %v4925
        %5247 = vmatpush2.bf16.msra.mxu0 %v4924
        %5248 = vmatprep.subr.bf16.mxu0 %v4921
        %5249 = vmatpush2.bf16.msra.mxu0 %v4920
        %5250 = vmatprep.subr.bf16.mxu0 %v4917
        %5251 = vmatpush2.bf16.msra.mxu0 %v4916
        %5252 = vmatprep.subr.bf16.mxu0 %v4913
        %5253 = vmatpush2.bf16.msra.mxu0 %v4912
        %5254 = vmatprep.subr.bf16.mxu0 %v4909
        %5255 = vmatpush2.bf16.msra.mxu0 %v4908
        %5256 = vmatprep.subr.bf16.mxu0 %v4905
        %5257 = vmatpush2.bf16.msra.mxu0 %v4904
        %5258 = vmatprep.subr.bf16.mxu0 %v4901
        %5259 = vmatpush2.bf16.msra.mxu0 %v4900
        %5260 = vmatprep.mubr.bf16.mxu0 %v4459
        %5261 = vmatmul.mubr.bf16.gmra.mxu0 %v4458
        %v5262 = vpop.f32.mrf.mxu0
        %v5263 = vadd.f32 %v4477, %v5262
        %v5264 = vpop.f32.mrf.mxu0
        %v5265 = vadd.f32 %v4481, %v5264
        %v5266 = vpop.f32.mrf.mxu0
        %v5267 = vadd.f32 %v4477, %v5266
        %v5268 = vpop.f32.mrf.mxu0
        %v5269 = vadd.f32 %v4481, %v5268
        %5270 = vmatprep.mubr.bf16.mxu0 %v4463
        %5271 = vmatmul.mubr.bf16.gmra.mxu0 %v4462
        %v5272 = vpop.f32.mrf.mxu0
        %v5273 = vadd.f32 %v4477, %v5272
        %v5274 = vpop.f32.mrf.mxu0
        %v5275 = vadd.f32 %v4481, %v5274
        %v5276 = vpop.f32.mrf.mxu0
        %v5277 = vadd.f32 %v4477, %v5276
        %v5278 = vpop.f32.mrf.mxu0
        %v5279 = vadd.f32 %v4481, %v5278
        %5280 = vdwg.mxu0
        %5281 = vmatprep.subr.bf16.mxu0 %v4961
        %5282 = vmatpush1.bf16.msra.mxu0 %v4960
        %5283 = vmatprep.subr.bf16.mxu0 %v4957
        %5284 = vmatpush1.bf16.msra.mxu0 %v4956
        %5285 = vmatprep.subr.bf16.mxu0 %v4953
        %5286 = vmatpush1.bf16.msra.mxu0 %v4952
        %5287 = vmatprep.subr.bf16.mxu0 %v4949
        %5288 = vmatpush1.bf16.msra.mxu0 %v4948
        %5289 = vmatprep.subr.bf16.mxu0 %v4945
        %5290 = vmatpush1.bf16.msra.mxu0 %v4944
        %5291 = vmatprep.subr.bf16.mxu0 %v4941
        %5292 = vmatpush1.bf16.msra.mxu0 %v4940
        %5293 = vmatprep.subr.bf16.mxu0 %v4937
        %5294 = vmatpush1.bf16.msra.mxu0 %v4936
        %5295 = vmatprep.subr.bf16.mxu0 %v4933
        %5296 = vmatpush1.bf16.msra.mxu0 %v4932
        %5297 = vmatprep.subr.bf16.mxu0 %v4993
        %5298 = vmatpush2.bf16.msra.mxu0 %v4992
        %5299 = vmatprep.subr.bf16.mxu0 %v4989
        %5300 = vmatpush2.bf16.msra.mxu0 %v4988
        %5301 = vmatprep.subr.bf16.mxu0 %v4985
        %5302 = vmatpush2.bf16.msra.mxu0 %v4984
        %5303 = vmatprep.subr.bf16.mxu0 %v4981
        %5304 = vmatpush2.bf16.msra.mxu0 %v4980
        %5305 = vmatprep.subr.bf16.mxu0 %v4977
        %5306 = vmatpush2.bf16.msra.mxu0 %v4976
        %5307 = vmatprep.subr.bf16.mxu0 %v4973
        %5308 = vmatpush2.bf16.msra.mxu0 %v4972
        %5309 = vmatprep.subr.bf16.mxu0 %v4969
        %5310 = vmatpush2.bf16.msra.mxu0 %v4968
        %5311 = vmatprep.subr.bf16.mxu0 %v4965
        %5312 = vmatpush2.bf16.msra.mxu0 %v4964
        %5313 = vmatprep.mubr.bf16.mxu0 %v4461
        %5314 = vmatmul.mubr.bf16.gmra.mxu0 %v4460
        %v5315 = vpop.f32.mrf.mxu0
        %v5316 = vadd.f32 %v5263, %v5315
        %v5317 = vpop.f32.mrf.mxu0
        %v5318 = vadd.f32 %v5265, %v5317
        %v5319 = vpop.f32.mrf.mxu0
        %v5320 = vadd.f32 %v5267, %v5319
        %v5321 = vpop.f32.mrf.mxu0
        %v5322 = vadd.f32 %v5269, %v5321
        %5323 = vmatprep.mubr.bf16.mxu0 %v4465
        %5324 = vmatmul.mubr.bf16.gmra.mxu0 %v4464
        %v5325 = vpop.f32.mrf.mxu0
        %v5326 = vadd.f32 %v5273, %v5325
        %v5327 = vpop.f32.mrf.mxu0
        %v5328 = vadd.f32 %v5275, %v5327
        %v5329 = vpop.f32.mrf.mxu0
        %v5330 = vadd.f32 %v5277, %v5329
        %v5331 = vpop.f32.mrf.mxu0
        %v5332 = vadd.f32 %v5279, %v5331
        %5333 = vdwg.mxu0
        %v5334 = vadd.f32 %v3550, %v5210
        %v5335 = vadd.f32 %v3551, %v5212
        %v5336 = vadd.f32 %v3552, %v5316
        %v5337 = vadd.f32 %v3553, %v5318
        %v5338 = vadd.f32 %v3554, %v5214
        %v5339 = vadd.f32 %v3555, %v5216
        %v5340 = vadd.f32 %v3556, %v5320
        %v5341 = vadd.f32 %v3557, %v5322
        %v5342 = vadd.f32 %v3558, %v5220
        %v5343 = vadd.f32 %v3559, %v5222
        %v5344 = vadd.f32 %v3560, %v5326
        %v5345 = vadd.f32 %v3561, %v5328
        %v5346 = vadd.f32 %v3562, %v5224
        %v5347 = vadd.f32 %v3563, %v5226
        %v5348 = vadd.f32 %v3564, %v5330
        %v5349 = vadd.f32 %v3565, %v5332
        %v5350 = vadd.f32 %v5334, %v5335
        %v5351 = vadd.f32 %v5350, %v5336
        %v5352 = vadd.f32 %v5351, %v5337
        %5353 = vadd.xlane.f32.xlu0 %v5352
        %v5354 = vpop.xlane.xlu0 %5353
        %v5355 = vadd.f32 %v5338, %v5339
        %v5356 = vadd.f32 %v5355, %v5340
        %v5357 = vadd.f32 %v5356, %v5341
        %5358 = vadd.xlane.f32.xlu0 %v5357
        %v5359 = vpop.xlane.xlu0 %5358
        %v5360 = vadd.f32 %v5342, %v5343
        %v5361 = vadd.f32 %v5360, %v5344
        %v5362 = vadd.f32 %v5361, %v5345
        %5363 = vadd.xlane.f32.xlu0 %v5362
        %v5364 = vpop.xlane.xlu0 %5363
        %v5365 = vadd.f32 %v5346, %v5347
        %v5366 = vadd.f32 %v5365, %v5348
        %v5367 = vadd.f32 %v5366, %v5349
        %5368 = vadd.xlane.f32.xlu0 %v5367
        %v5369 = vpop.xlane.xlu0 %5368
        %v5370 = vmul.f32 %v5354, %v2057
        %v5371 = vmul.f32 %v5359, %v2057
        %v5372 = vmul.f32 %v5364, %v2057
        %v5373 = vmul.f32 %v5369, %v2057
        %v5374 = vsub.f32 %v5334, %v5370
        %v5375 = vsub.f32 %v5335, %v5370
        %v5376 = vsub.f32 %v5336, %v5370
        %v5377 = vsub.f32 %v5337, %v5370
        %v5378 = vsub.f32 %v5338, %v5371
        %v5379 = vsub.f32 %v5339, %v5371
        %v5380 = vsub.f32 %v5340, %v5371
        %v5381 = vsub.f32 %v5341, %v5371
        %v5382 = vsub.f32 %v5342, %v5372
        %v5383 = vsub.f32 %v5343, %v5372
        %v5384 = vsub.f32 %v5344, %v5372
        %v5385 = vsub.f32 %v5345, %v5372
        %v5386 = vsub.f32 %v5346, %v5373
        %v5387 = vsub.f32 %v5347, %v5373
        %v5388 = vsub.f32 %v5348, %v5373
        %v5389 = vsub.f32 %v5349, %v5373
        %v5390 = vmul.f32 %v5374, %v5374
        %v5391 = vmul.f32 %v5375, %v5375
        %v5392 = vmul.f32 %v5376, %v5376
        %v5393 = vmul.f32 %v5377, %v5377
        %v5394 = vmul.f32 %v5378, %v5378
        %v5395 = vmul.f32 %v5379, %v5379
        %v5396 = vmul.f32 %v5380, %v5380
        %v5397 = vmul.f32 %v5381, %v5381
        %v5398 = vmul.f32 %v5382, %v5382
        %v5399 = vmul.f32 %v5383, %v5383
        %v5400 = vmul.f32 %v5384, %v5384
        %v5401 = vmul.f32 %v5385, %v5385
        %v5402 = vmul.f32 %v5386, %v5386
        %v5403 = vmul.f32 %v5387, %v5387
        %v5404 = vmul.f32 %v5388, %v5388
        %v5405 = vmul.f32 %v5389, %v5389
        %v5406 = vadd.f32 %v5390, %v5391
        %v5407 = vadd.f32 %v5406, %v5392
        %v5408 = vadd.f32 %v5407, %v5393
        %5409 = vadd.xlane.f32.xlu0 %v5408
        %v5410 = vpop.xlane.xlu0 %5409
        %v5411 = vadd.f32 %v5394, %v5395
        %v5412 = vadd.f32 %v5411, %v5396
        %v5413 = vadd.f32 %v5412, %v5397
        %5414 = vadd.xlane.f32.xlu0 %v5413
        %v5415 = vpop.xlane.xlu0 %5414
        %v5416 = vadd.f32 %v5398, %v5399
        %v5417 = vadd.f32 %v5416, %v5400
        %v5418 = vadd.f32 %v5417, %v5401
        %5419 = vadd.xlane.f32.xlu0 %v5418
        %v5420 = vpop.xlane.xlu0 %5419
        %v5421 = vadd.f32 %v5402, %v5403
        %v5422 = vadd.f32 %v5421, %v5404
        %v5423 = vadd.f32 %v5422, %v5405
        %5424 = vadd.xlane.f32.xlu0 %v5423
        %v5425 = vpop.xlane.xlu0 %5424
        %v5426 = vmul.f32 %v5410, %v2057
        %v5427 = vmul.f32 %v5415, %v2057
        %v5428 = vmul.f32 %v5420, %v2057
        %v5429 = vmul.f32 %v5425, %v2057
        %v5430 = vadd.f32 %v5426, 1e-05
        %v5431 = vadd.f32 %v5427, 1e-05
        %v5432 = vadd.f32 %v5428, 1e-05
        %v5433 = vadd.f32 %v5429, 1e-05
        %v5434 = vrsqrt.pop %v5430
        %v5435 = vrsqrt.pop %v5431
        %v5436 = vrsqrt.pop %v5432
        %v5437 = vrsqrt.pop %v5433
        %v5438 = vmul.f32 %v5374, %v5434
        %v5439 = vmul.f32 %v5375, %v5434
        %v5440 = vmul.f32 %v5376, %v5434
        %v5441 = vmul.f32 %v5377, %v5434
        %v5442 = vmul.f32 %v5378, %v5435
        %v5443 = vmul.f32 %v5379, %v5435
        %v5444 = vmul.f32 %v5380, %v5435
        %v5445 = vmul.f32 %v5381, %v5435
        %v5446 = vmul.f32 %v5382, %v5436
        %v5447 = vmul.f32 %v5383, %v5436
        %v5448 = vmul.f32 %v5384, %v5436
        %v5449 = vmul.f32 %v5385, %v5436
        %v5450 = vmul.f32 %v5386, %v5437
        %v5451 = vmul.f32 %v5387, %v5437
        %v5452 = vmul.f32 %v5388, %v5437
        %v5453 = vmul.f32 %v5389, %v5437
        %v5454 = vlaneseq
        %v5455 = vshrl.u32 %v5454, 7
        %v5456 = vsub.s32 6, %v5455
        %v5457 = vrot.slane %v880, %v5456
        %v5458 = vlaneseq
        %v5459 = vshrl.u32 %v5458, 7
        %v5460 = vsub.s32 6, %v5459
        %v5461 = vrot.slane %v881, %v5460
        %v5462 = vlaneseq
        %v5463 = vshrl.u32 %v5462, 7
        %v5464 = vsub.s32 6, %v5463
        %v5465 = vrot.slane %v882, %v5464
        %v5466 = vlaneseq
        %v5467 = vshrl.u32 %v5466, 7
        %v5468 = vsub.s32 6, %v5467
        %v5469 = vrot.slane %v883, %v5468
        %v5470 = vmul.f32 %v5438, %v5457
        %v5471 = vmul.f32 %v5439, %v5461
        %v5472 = vmul.f32 %v5440, %v5465
        %v5473 = vmul.f32 %v5441, %v5469
        %v5474 = vmul.f32 %v5442, %v5457
        %v5475 = vmul.f32 %v5443, %v5461
        %v5476 = vmul.f32 %v5444, %v5465
        %v5477 = vmul.f32 %v5445, %v5469
        %v5478 = vmul.f32 %v5446, %v5457
        %v5479 = vmul.f32 %v5447, %v5461
        %v5480 = vmul.f32 %v5448, %v5465
        %v5481 = vmul.f32 %v5449, %v5469
        %v5482 = vmul.f32 %v5450, %v5457
        %v5483 = vmul.f32 %v5451, %v5461
        %v5484 = vmul.f32 %v5452, %v5465
        %v5485 = vmul.f32 %v5453, %v5469
        %v5486 = vlaneseq
        %v5487 = vshrl.u32 %v5486, 7
        %v5488 = vsub.s32 7, %v5487
        %v5489 = vrot.slane %v880, %v5488
        %v5490 = vlaneseq
        %v5491 = vshrl.u32 %v5490, 7
        %v5492 = vsub.s32 7, %v5491
        %v5493 = vrot.slane %v881, %v5492
        %v5494 = vlaneseq
        %v5495 = vshrl.u32 %v5494, 7
        %v5496 = vsub.s32 7, %v5495
        %v5497 = vrot.slane %v882, %v5496
        %v5498 = vlaneseq
        %v5499 = vshrl.u32 %v5498, 7
        %v5500 = vsub.s32 7, %v5499
        %v5501 = vrot.slane %v883, %v5500
        %v5502 = vadd.f32 %v5470, %v5489
        %v5503 = vadd.f32 %v5471, %v5493
        %v5504 = vadd.f32 %v5472, %v5497
        %v5505 = vadd.f32 %v5473, %v5501
        %v5506 = vadd.f32 %v5474, %v5489
        %v5507 = vadd.f32 %v5475, %v5493
        %v5508 = vadd.f32 %v5476, %v5497
        %v5509 = vadd.f32 %v5477, %v5501
        %v5510 = vadd.f32 %v5478, %v5489
        %v5511 = vadd.f32 %v5479, %v5493
        %v5512 = vadd.f32 %v5480, %v5497
        %v5513 = vadd.f32 %v5481, %v5501
        %v5514 = vadd.f32 %v5482, %v5489
        %v5515 = vadd.f32 %v5483, %v5493
        %v5516 = vadd.f32 %v5484, %v5497
        %v5517 = vadd.f32 %v5485, %v5501
        %5518 = vst [vmem:[#allocation2] sm:$0xff] %v5502
        %5519 = vst [vmem:[#allocation2 + $0x8] sm:$0xff] %v5503
        %5520 = vst [vmem:[#allocation2 + $0x10] sm:$0xff] %v5504
        %5521 = vst [vmem:[#allocation2 + $0x18] sm:$0xff] %v5505
        %5522 = vst [vmem:[#allocation2 + $0x20] sm:$0xff] %v5506
        %5523 = vst [vmem:[#allocation2 + $0x28] sm:$0xff] %v5507
        %5524 = vst [vmem:[#allocation2 + $0x30] sm:$0xff] %v5508
        %5525 = vst [vmem:[#allocation2 + $0x38] sm:$0xff] %v5509
        %5526 = vst [vmem:[#allocation2 + $0x40] sm:$0xff] %v5510
        %5527 = vst [vmem:[#allocation2 + $0x48] sm:$0xff] %v5511
        %5528 = vst [vmem:[#allocation2 + $0x50] sm:$0xff] %v5512
        %5529 = vst [vmem:[#allocation2 + $0x58] sm:$0xff] %v5513
        %5530 = vst [vmem:[#allocation2 + $0x60] sm:$0xff] %v5514
        %5531 = vst [vmem:[#allocation2 + $0x68] sm:$0xff] %v5515
        %5532 = vst [vmem:[#allocation2 + $0x70] sm:$0xff] %v5516
        %5533 = vst [vmem:[#allocation2 + $0x78] sm:$0xff] %v5517
        %p5534 = scmp.eq.s32.totalorder %s23, 3
        // Predicated region
        $region61: #{sonata_decoder.1} parent=43 // pred_check
          %p5535 = pneg %p5534
        $region62: #{sonata_decoder.1} parent=43 // pred_check_branch
          %5537 = sbr.rel (%p5535) target = $region64
        $region63: #{sonata_decoder.1} parent=43 // pred_region
          %v5538 = vld [vmem:[#allocation7] sm:$0xff]
          %v5539 = vadd.f32 %v5502, %v5503
          %v5540 = vadd.f32 %v5539, %v5504
          %v5541 = vadd.f32 %v5540, %v5505
          %5542 = vadd.xlane.f32.xlu0 %v5541
          %v5543 = vpop.xlane.xlu0 %5542
          %v5544 = vadd.f32 %v5506, %v5507
          %v5545 = vadd.f32 %v5544, %v5508
          %v5546 = vadd.f32 %v5545, %v5509
          %5547 = vadd.xlane.f32.xlu0 %v5546
          %v5548 = vpop.xlane.xlu0 %5547
          %v5549 = vadd.f32 %v5510, %v5511
          %v5550 = vadd.f32 %v5549, %v5512
          %v5551 = vadd.f32 %v5550, %v5513
          %5552 = vadd.xlane.f32.xlu0 %v5551
          %v5553 = vpop.xlane.xlu0 %5552
          %v5554 = vadd.f32 %v5514, %v5515
          %v5555 = vadd.f32 %v5554, %v5516
          %v5556 = vadd.f32 %v5555, %v5517
          %5557 = vadd.xlane.f32.xlu0 %v5556
          %v5558 = vpop.xlane.xlu0 %5557
          %v5559 = vmul.f32 %v5543, %v2057
          %v5560 = vmul.f32 %v5548, %v2057
          %v5561 = vmul.f32 %v5553, %v2057
          %v5562 = vmul.f32 %v5558, %v2057
          %v5563 = vsub.f32 %v5502, %v5559
          %v5564 = vsub.f32 %v5503, %v5559
          %v5565 = vsub.f32 %v5504, %v5559
          %v5566 = vsub.f32 %v5505, %v5559
          %v5567 = vsub.f32 %v5506, %v5560
          %v5568 = vsub.f32 %v5507, %v5560
          %v5569 = vsub.f32 %v5508, %v5560
          %v5570 = vsub.f32 %v5509, %v5560
          %v5571 = vsub.f32 %v5510, %v5561
          %v5572 = vsub.f32 %v5511, %v5561
          %v5573 = vsub.f32 %v5512, %v5561
          %v5574 = vsub.f32 %v5513, %v5561
          %v5575 = vsub.f32 %v5514, %v5562
          %v5576 = vsub.f32 %v5515, %v5562
          %v5577 = vsub.f32 %v5516, %v5562
          %v5578 = vsub.f32 %v5517, %v5562
          %v5579 = vmul.f32 %v5563, %v5563
          %v5580 = vmul.f32 %v5564, %v5564
          %v5581 = vmul.f32 %v5565, %v5565
          %v5582 = vmul.f32 %v5566, %v5566
          %v5583 = vmul.f32 %v5567, %v5567
          %v5584 = vmul.f32 %v5568, %v5568
          %v5585 = vmul.f32 %v5569, %v5569
          %v5586 = vmul.f32 %v5570, %v5570
          %v5587 = vmul.f32 %v5571, %v5571
          %v5588 = vmul.f32 %v5572, %v5572
          %v5589 = vmul.f32 %v5573, %v5573
          %v5590 = vmul.f32 %v5574, %v5574
          %v5591 = vmul.f32 %v5575, %v5575
          %v5592 = vmul.f32 %v5576, %v5576
          %v5593 = vmul.f32 %v5577, %v5577
          %v5594 = vmul.f32 %v5578, %v5578
          %v5595 = vadd.f32 %v5579, %v5580
          %v5596 = vadd.f32 %v5595, %v5581
          %v5597 = vadd.f32 %v5596, %v5582
          %5598 = vadd.xlane.f32.xlu0 %v5597
          %v5599 = vpop.xlane.xlu0 %5598
          %v5600 = vadd.f32 %v5583, %v5584
          %v5601 = vadd.f32 %v5600, %v5585
          %v5602 = vadd.f32 %v5601, %v5586
          %5603 = vadd.xlane.f32.xlu0 %v5602
          %v5604 = vpop.xlane.xlu0 %5603
          %v5605 = vadd.f32 %v5587, %v5588
          %v5606 = vadd.f32 %v5605, %v5589
          %v5607 = vadd.f32 %v5606, %v5590
          %5608 = vadd.xlane.f32.xlu0 %v5607
          %v5609 = vpop.xlane.xlu0 %5608
          %v5610 = vadd.f32 %v5591, %v5592
          %v5611 = vadd.f32 %v5610, %v5593
          %v5612 = vadd.f32 %v5611, %v5594
          %5613 = vadd.xlane.f32.xlu0 %v5612
          %v5614 = vpop.xlane.xlu0 %5613
          %v5615 = vmul.f32 %v5599, %v2057
          %v5616 = vmul.f32 %v5604, %v2057
          %v5617 = vmul.f32 %v5609, %v2057
          %v5618 = vmul.f32 %v5614, %v2057
          %v5619 = vadd.f32 %v5615, 0.0001
          %v5620 = vadd.f32 %v5616, 0.0001
          %v5621 = vadd.f32 %v5617, 0.0001
          %v5622 = vadd.f32 %v5618, 0.0001
          %v5623 = vrsqrt.pop %v5619
          %v5624 = vrsqrt.pop %v5620
          %v5625 = vrsqrt.pop %v5621
          %v5626 = vrsqrt.pop %v5622
          %v5627 = vmul.f32 %v5563, %v5623
          %v5628 = vmul.f32 %v5564, %v5623
          %v5629 = vmul.f32 %v5565, %v5623
          %v5630 = vmul.f32 %v5566, %v5623
          %v5631 = vmul.f32 %v5567, %v5624
          %v5632 = vmul.f32 %v5568, %v5624
          %v5633 = vmul.f32 %v5569, %v5624
          %v5634 = vmul.f32 %v5570, %v5624
          %v5635 = vmul.f32 %v5571, %v5625
          %v5636 = vmul.f32 %v5572, %v5625
          %v5637 = vmul.f32 %v5573, %v5625
          %v5638 = vmul.f32 %v5574, %v5625
          %v5639 = vmul.f32 %v5575, %v5626
          %v5640 = vmul.f32 %v5576, %v5626
          %v5641 = vmul.f32 %v5577, %v5626
          %v5642 = vmul.f32 %v5578, %v5626
          %v5644 = vlaneseq
          %v5645 = vshrl.u32 %v5644, 7
          %v5646 = vsub.s32 0, %v5645
          %v5647 = vrot.slane %v5538, %v5646
          %v5648 = vlaneseq
          %v5649 = vshrl.u32 %v5648, 7
          %v5650 = vsub.s32 2, %v5649
          %v5651 = vrot.slane %v5538, %v5650
          %v5652 = vlaneseq
          %v5653 = vshrl.u32 %v5652, 7
          %v5654 = vsub.s32 4, %v5653
          %v5655 = vrot.slane %v5538, %v5654
          %v5656 = vlaneseq
          %v5657 = vshrl.u32 %v5656, 7
          %v5658 = vsub.s32 6, %v5657
          %v5659 = vrot.slane %v5538, %v5658
          %v5664 = vlaneseq
          %v5665 = vshrl.u32 %v5664, 7
          %v5666 = vsub.s32 0, %v5665
          %v5667 = vrot.slane %v5647, %v5666
          %v5668 = vlaneseq
          %v5669 = vshrl.u32 %v5668, 7
          %v5670 = vsub.s32 0, %v5669
          %v5671 = vrot.slane %v5651, %v5670
          %v5672 = vlaneseq
          %v5673 = vshrl.u32 %v5672, 7
          %v5674 = vsub.s32 0, %v5673
          %v5675 = vrot.slane %v5655, %v5674
          %v5676 = vlaneseq
          %v5677 = vshrl.u32 %v5676, 7
          %v5678 = vsub.s32 0, %v5677
          %v5679 = vrot.slane %v5659, %v5678
          %v5680 = vmul.f32 %v5627, %v5667
          %v5681 = vmul.f32 %v5628, %v5671
          %v5682 = vmul.f32 %v5629, %v5675
          %v5683 = vmul.f32 %v5630, %v5679
          %v5684 = vmul.f32 %v5631, %v5667
          %v5685 = vmul.f32 %v5632, %v5671
          %v5686 = vmul.f32 %v5633, %v5675
          %v5687 = vmul.f32 %v5634, %v5679
          %v5688 = vmul.f32 %v5635, %v5667
          %v5689 = vmul.f32 %v5636, %v5671
          %v5690 = vmul.f32 %v5637, %v5675
          %v5691 = vmul.f32 %v5638, %v5679
          %v5692 = vmul.f32 %v5639, %v5667
          %v5693 = vmul.f32 %v5640, %v5671
          %v5694 = vmul.f32 %v5641, %v5675
          %v5695 = vmul.f32 %v5642, %v5679
          %v5696 = vlaneseq
          %v5697 = vshrl.u32 %v5696, 7
          %v5698 = vsub.s32 1, %v5697
          %v5699 = vrot.slane %v5538, %v5698
          %v5700 = vlaneseq
          %v5701 = vshrl.u32 %v5700, 7
          %v5702 = vsub.s32 3, %v5701
          %v5703 = vrot.slane %v5538, %v5702
          %v5704 = vlaneseq
          %v5705 = vshrl.u32 %v5704, 7
          %v5706 = vsub.s32 5, %v5705
          %v5707 = vrot.slane %v5538, %v5706
          %v5708 = vlaneseq
          %v5709 = vshrl.u32 %v5708, 7
          %v5710 = vsub.s32 7, %v5709
          %v5711 = vrot.slane %v5538, %v5710
          %v5716 = vlaneseq
          %v5717 = vshrl.u32 %v5716, 7
          %v5718 = vsub.s32 1, %v5717
          %v5719 = vrot.slane %v5699, %v5718
          %v5720 = vlaneseq
          %v5721 = vshrl.u32 %v5720, 7
          %v5722 = vsub.s32 1, %v5721
          %v5723 = vrot.slane %v5703, %v5722
          %v5724 = vlaneseq
          %v5725 = vshrl.u32 %v5724, 7
          %v5726 = vsub.s32 1, %v5725
          %v5727 = vrot.slane %v5707, %v5726
          %v5728 = vlaneseq
          %v5729 = vshrl.u32 %v5728, 7
          %v5730 = vsub.s32 1, %v5729
          %v5731 = vrot.slane %v5711, %v5730
          %v5732 = vadd.f32 %v5680, %v5719
          %v5733 = vadd.f32 %v5681, %v5723
          %v5734 = vadd.f32 %v5682, %v5727
          %v5735 = vadd.f32 %v5683, %v5731
          %v5736 = vadd.f32 %v5684, %v5719
          %v5737 = vadd.f32 %v5685, %v5723
          %v5738 = vadd.f32 %v5686, %v5727
          %v5739 = vadd.f32 %v5687, %v5731
          %v5740 = vadd.f32 %v5688, %v5719
          %v5741 = vadd.f32 %v5689, %v5723
          %v5742 = vadd.f32 %v5690, %v5727
          %v5743 = vadd.f32 %v5691, %v5731
          %v5744 = vadd.f32 %v5692, %v5719
          %v5745 = vadd.f32 %v5693, %v5723
          %v5746 = vadd.f32 %v5694, %v5727
          %v5747 = vadd.f32 %v5695, %v5731
          %5748 = vst [vmem:[%s6] sm:$0xff] %v5732
          %5749 = vst [vmem:[%s6 + $0x8] sm:$0xff] %v5733
          %5750 = vst [vmem:[%s6 + $0x10] sm:$0xff] %v5734
          %5751 = vst [vmem:[%s6 + $0x18] sm:$0xff] %v5735
          %5752 = vst [vmem:[%s6 + $0x20] sm:$0xff] %v5736
          %5753 = vst [vmem:[%s6 + $0x28] sm:$0xff] %v5737
          %5754 = vst [vmem:[%s6 + $0x30] sm:$0xff] %v5738
          %5755 = vst [vmem:[%s6 + $0x38] sm:$0xff] %v5739
          %5756 = vst [vmem:[%s6 + $0x40] sm:$0xff] %v5740
          %5757 = vst [vmem:[%s6 + $0x48] sm:$0xff] %v5741
          %5758 = vst [vmem:[%s6 + $0x50] sm:$0xff] %v5742
          %5759 = vst [vmem:[%s6 + $0x58] sm:$0xff] %v5743
          %5760 = vst [vmem:[%s6 + $0x60] sm:$0xff] %v5744
          %5761 = vst [vmem:[%s6 + $0x68] sm:$0xff] %v5745
          %5762 = vst [vmem:[%s6 + $0x70] sm:$0xff] %v5746
          %5763 = vst [vmem:[%s6 + $0x78] sm:$0xff] %v5747
        $region64: #{sonata_decoder.1} parent=43 // pred_fallthru
          _
        // Predicated region
        $region65: #{sonata_decoder.1} parent=43 // pred_check
          %p5764 = pneg %p172
        $region66: #{sonata_decoder.1} parent=43 // pred_check_branch
          %5766 = sbr.rel (%p5764) target = $region68
        $region67: #{sonata_decoder.1} parent=43 // pred_region
          _
        $region68: #{sonata_decoder.1} parent=43 // pred_fallthru
          _
        // Predicated region
        $region69: #{sonata_decoder.1} parent=43 // pred_check
          %p5767 = pneg %p172
        $region70: #{sonata_decoder.1} parent=43 // pred_check_branch
          %5769 = sbr.rel (%p5767) target = $region72
        $region71: #{sonata_decoder.1} parent=43 // pred_region
          _
        $region72: #{sonata_decoder.1} parent=43 // pred_fallthru
          _
      $region44: #{sonata_decoder.1} parent=5 // pred_fallthru
        _
      %p5770 = scmp.le.s32.totalorder 2, %s18
      // Predicated region
      $region73: #{sonata_decoder.1} parent=5 // pred_check
        %p5771 = pneg %p5770
      $region74: #{sonata_decoder.1} parent=5 // pred_check_branch
        %5773 = sbr.rel (%p5771) target = $region76
      $region75: #{sonata_decoder.1} parent=5 // pred_region
        %s5774 = ssub.s32 %s18, 2
      $region76: #{sonata_decoder.1} parent=5 // pred_fallthru
        _
    $region6: #{sonata_decoder.1} parent=1 // loop_footer
      %s22 = sadd.s32 1, %s18
    $region7: #{sonata_decoder.1} parent=1 // loop_footer_branch
      %17 = sbr.rel target = $region3
    $region8: #{sonata_decoder.1} parent=1 // loop_exit
      _
    %5775 = vsyncpa [#allocation4], 1
    %s5776 = scalar_lea.sflag [#allocation4], 1
    %5777 = vsyncpa %s5776, 1
    %5778 = vsyncpa [#allocation6], 1
    %s5779 = scalar_lea.sflag [#allocation6], 1
    %5780 = vsyncpa %s5779, 1

</llo_original>
